<compile_context>
chip_gen: v7x
topology: tpu7x:2x2x1
jax: 0.10.0
libtpu: 0.0.40
codegen_flags: <defaults>
</compile_context>

<pallas_src>
import math

import jax
import jax.numpy as jnp
from jax.experimental import pallas as pl
from jax.experimental.pallas import tpu as pltpu


# ----------------------------------------------------------------------------
# Fused Pallas kernel: entire Critic forward (pre-conv, ascend, conv stack,
# fc1, value head) as chained matmul + bias + ReLU on VMEM-resident operands.
# ----------------------------------------------------------------------------
def _make_fused_kernel(n_conv_layers):
    def kernel(*refs):
        ch_ref, rw_ref, a_ch_ref, a_rw_ref, b0_ref, m_asc_ref, b_asc_ref = refs[:7]
        idx = 7
        f32 = jnp.float32

        # pre-conv (1e6 scale + reward broadcast folded into the matrices) + ReLU
        h = jnp.dot(ch_ref[...], a_ch_ref[...], preferred_element_type=f32)
        h = h + jnp.dot(rw_ref[...], a_rw_ref[...], preferred_element_type=f32)
        h = jnp.maximum(h + b0_ref[...], 0.0)

        # ascend: Linear over the W axis == block-diagonal matmul, + ReLU
        h = jnp.dot(h, m_asc_ref[...], preferred_element_type=f32) + b_asc_ref[...]
        h = jnp.maximum(h, 0.0)

        # conv stack (each conv pre-lowered to a dense matrix) + ReLU
        for _ in range(n_conv_layers):
            t_ref, b_ref = refs[idx], refs[idx + 1]
            idx += 2
            h = jnp.dot(h, t_ref[...], preferred_element_type=f32) + b_ref[...]
            h = jnp.maximum(h, 0.0)

        # fc1 + ReLU, then value head
        wfc_ref, bfc_ref, wout_ref, bout_ref, o_ref = refs[idx:idx + 5]
        h = jnp.maximum(
            jnp.dot(h, wfc_ref[...], preferred_element_type=f32) + bfc_ref[...], 0.0)
        v = jnp.dot(h, wout_ref[...], preferred_element_type=f32) + bout_ref[...]
        o_ref[...] = v.astype(o_ref.dtype)

    return kernel


# ----------------------------------------------------------------------------
# One-time parameter preparation (host side, outside the jitted forward)
# ----------------------------------------------------------------------------
def _conv_to_matrix(w, in_hw, stride, padding, dilation):
    """Lower conv2d (weight w, OIHW) acting on a (Cin,H,W) input to a dense
    matrix T of shape (Cin*H*W, Cout*Ho*Wo) so that
        flatten_chw(conv(x)) = flatten_chw(x) @ T."""
    cout, cin, kh, kw = w.shape
    H, W = in_hw
    n = cin * H * W
    basis = jnp.eye(n, dtype=jnp.float32).reshape(n, cin, H, W)
    out = jax.lax.conv_general_dilated(
        basis, w.astype(jnp.float32), window_strides=stride,
        padding=[(padding[0], padding[0]), (padding[1], padding[1])],
        rhs_dilation=dilation,
        dimension_numbers=("NCHW", "OIHW", "NCHW"))
    ho, wo = out.shape[2], out.shape[3]
    return out.reshape(n, cout * ho * wo), (ho, wo)


def prepare_fused_params(params, cfg, state_dim1, state_dim2,
                         n_channel_mats, n_reward_mats):
    H, W = state_dim1, state_dim2
    n_ch_rows = n_channel_mats * H * W

    # --- pre-conv -> dense matrix; fold 1e6 scale + reward repeat/concat ---
    t0, (h0, w0) = _conv_to_matrix(
        params["pre_w"], (H, W),
        (cfg["pre_stride"],) * 2, (cfg["pre_padding"],) * 2, (1, 1))
    a_ch = 1e6 * t0[:n_ch_rows]                                 # (n_ch*H*W, C0*H0*W0)
    t0_rw = t0[n_ch_rows:].reshape(n_reward_mats, H, W, -1)
    a_rw = t0_rw.sum(axis=2).reshape(n_reward_mats * H, -1)     # reward broadcast folded
    b0 = jnp.repeat(params["pre_b"], h0 * w0)[None, :]

    # --- ascend Linear(state_dim2, state_dim2) over W -> block-diagonal ---
    assert w0 == state_dim2, "ascend Linear requires pre-conv W_out == state_dim2"
    c0 = cfg["cell_number"]
    m_asc = jnp.kron(jnp.eye(c0 * h0, dtype=jnp.float32), params["ascend_w"].T)
    b_asc = jnp.tile(params["ascend_b"], c0 * h0)[None, :]

    # --- conv stack -> dense matrices ---
    conv_flat = []
    hh, ww = h0, w0
    for layer in range(cfg["layer_number"]):
        t, (hh, ww) = _conv_to_matrix(
            params["conv_ws"][layer], (hh, ww),
            cfg["kernal_stride"][layer], cfg["padding_size"][layer],
            cfg["dilation"][layer])
        b = jnp.repeat(params["conv_bs"][layer], hh * ww)[None, :]
        conv_flat += [t, b]

    # --- fc / head weights pre-transposed ---
    wfc = params["fc1_w"].T
    bfc = params["fc1_b"][None, :]
    wout = params["out_w"].T
    bout = params["out_b"][None, :]

    fused = [a_ch, a_rw, b0, m_asc, b_asc] + conv_flat + [wfc, bfc, wout, bout]
    return tuple(jax.device_put(x.astype(jnp.float32)) for x in fused)


# ----------------------------------------------------------------------------
# Critic forward (single fused pallas_call)
# ----------------------------------------------------------------------------
def make_critic_forward(cfg):
    kernel = _make_fused_kernel(cfg["layer_number"])

    @jax.jit
    def forward(fused_params, channel, user_instant_reward):
        B = channel.shape[0]
        ch_flat = channel.reshape(B, -1)                 # (B, n_ch*H*W)
        rw_flat = user_instant_reward.reshape(B, -1)     # (B, n_rw*H)
        args = (ch_flat, rw_flat) + tuple(fused_params)
        # Note: with larger batches a leading "parallel" grid axis over B-tiles
        # would let v7x's two TensorCores both work; at B=2 a single invocation
        # with everything VMEM-resident is optimal.
        return pl.pallas_call(
            kernel,
            out_shape=jax.ShapeDtypeStruct((B, 1), jnp.float32),
            in_specs=[pl.BlockSpec(memory_space=pltpu.MemorySpace.VMEM)] * len(args),
            out_specs=pl.BlockSpec(memory_space=pltpu.MemorySpace.VMEM),
        )(*args)

    return forward


# ----------------------------------------------------------------------------
# Plain-JAX reference of the original PyTorch semantics (sanity check only)
# ----------------------------------------------------------------------------
def make_ref_forward(cfg):
    def conv(x, w, b, s, p, d):
        y = jax.lax.conv_general_dilated(
            x, w, window_strides=s,
            padding=[(p[0], p[0]), (p[1], p[1])], rhs_dilation=d,
            dimension_numbers=("NCHW", "OIHW", "NCHW"))
        return jax.nn.relu(y + b[None, :, None, None])

    def forward(params, channel, user_instant_reward):
        aug = jnp.repeat(user_instant_reward[..., None], cfg["feature_number"], axis=-1)
        x = jnp.concatenate([1e6 * channel, aug], axis=1)
        x = conv(x, params["pre_w"], params["pre_b"],
                 (cfg["pre_stride"],) * 2, (cfg["pre_padding"],) * 2, (1, 1))
        x = jax.nn.relu(jnp.einsum("bchw,vw->bchv", x, params["ascend_w"])
                        + params["ascend_b"])
        for layer in range(cfg["layer_number"]):
            x = conv(x, params["conv_ws"][layer], params["conv_bs"][layer],
                     cfg["kernal_stride"][layer], cfg["padding_size"][layer],
                     cfg["dilation"][layer])
        flat = x.reshape(x.shape[0], -1)
        h = jax.nn.relu(flat @ params["fc1_w"].T + params["fc1_b"])
        return h @ params["out_w"].T + params["out_b"]

    return forward


# ----------------------------------------------------------------------------
# main
# ----------------------------------------------------------------------------
if __name__ == "__main__":
    # ---- "args" (small, consistent with the module's constructor) ----
    B = 2
    state_dim1, state_dim2 = 8, 16
    obs_dim2 = state_dim2                 # feature_number == W so concat works
    n_channel_mats = 2
    n_reward_mats = 1
    cfg = dict(
        feature_number=obs_dim2,
        pre_stride=1, pre_kernel_size=3, pre_padding=1,
        layer_number=2,
        kernal_number=[8, 4],
        kernal_size=[(3, 3), (3, 3)],
        kernal_stride=[(1, 1), (2, 2)],
        padding_size=[(1, 1), (1, 1)],
        dilation=[(1, 1), (1, 1)],
        cell_number=4,
        fc_dim=32,
        total_state_matrix_number=n_channel_mats + n_reward_mats,
    )

    # ---- deterministic parameter init (PyTorch-style U(-1/sqrt(fan_in), ..)) ----
    keys = iter(jax.random.split(jax.random.PRNGKey(1234), 64))

    def uni(shape, fan_in):
        b = 1.0 / math.sqrt(fan_in)
        return jax.random.uniform(next(keys), shape, jnp.float32, -b, b)

    params = {}
    fan = cfg["total_state_matrix_number"] * cfg["pre_kernel_size"] ** 2
    params["pre_w"] = uni((cfg["cell_number"], cfg["total_state_matrix_number"],
                           cfg["pre_kernel_size"], cfg["pre_kernel_size"]), fan)
    params["pre_b"] = uni((cfg["cell_number"],), fan)
    params["ascend_w"] = uni((state_dim2, state_dim2), state_dim2)   # (out, in) like torch
    params["ascend_b"] = uni((state_dim2,), state_dim2)

    conv_ws, conv_bs = [], []
    in_c, H_in, W_in = cfg["cell_number"], state_dim1, state_dim2
    for layer in range(cfg["layer_number"]):
        kh, kw = cfg["kernal_size"][layer]
        fan = in_c * kh * kw
        conv_ws.append(uni((cfg["kernal_number"][layer], in_c, kh, kw), fan))
        conv_bs.append(uni((cfg["kernal_number"][layer],), fan))
        H_in = math.floor((H_in + 2 * cfg["padding_size"][layer][0]
                           - cfg["dilation"][layer][0] * (kh - 1) - 1)
                          / cfg["kernal_stride"][layer][0] + 1)
        W_in = math.floor((W_in + 2 * cfg["padding_size"][layer][1]
                           - cfg["dilation"][layer][1] * (kw - 1) - 1)
                          / cfg["kernal_stride"][layer][1] + 1)
        in_c = cfg["kernal_number"][layer]
    params["conv_ws"], params["conv_bs"] = conv_ws, conv_bs

    flat_dim = cfg["kernal_number"][-1] * H_in * W_in
    params["fc1_w"] = uni((cfg["fc_dim"], flat_dim), flat_dim)
    params["fc1_b"] = uni((cfg["fc_dim"],), flat_dim)
    params["out_w"] = uni((1, cfg["fc_dim"]), cfg["fc_dim"])
    params["out_b"] = uni((1,), cfg["fc_dim"])

    # ---- one-time fusion / re-layout of the parameters ----
    fused_params = prepare_fused_params(params, cfg, state_dim1, state_dim2,
                                        n_channel_mats, n_reward_mats)

    # ---- deterministic example inputs ----
    k1, k2 = jax.random.split(jax.random.PRNGKey(0))
    # channel gains are tiny in the original env, hence the in-model 1e6 scale
    channel = 1e-6 * jax.random.normal(
        k1, (B, n_channel_mats, state_dim1, state_dim2), jnp.float32)
    user_instant_reward = jax.random.normal(
        k2, (B, n_reward_mats, state_dim1), jnp.float32)

    # ---- run fused Pallas forward ----
    critic_forward = make_critic_forward(cfg)
    v_value = critic_forward(fused_params, channel, user_instant_reward)
    v_value = jax.block_until_ready(v_value)
    assert v_value.shape == (B, 1)

    # ---- sanity check vs plain-JAX reference of the original module ----
    v_ref = make_ref_forward(cfg)(params, channel, user_instant_reward)
    assert jnp.allclose(v_value, v_ref, rtol=1e-2, atol=1e-2), (v_value, v_ref)

    print("KERNEL_OK")
</pallas_src>

<mosaic_0001>
module attributes {stable_mosaic.version = 11 : i64} {
  func.func @kernel(%arg0: memref<2x256xf32, #tpu.memory_space<vmem>>, %arg1: memref<2x8xf32, #tpu.memory_space<vmem>>, %arg2: memref<256x512xf32, #tpu.memory_space<vmem>>, %arg3: memref<8x512xf32, #tpu.memory_space<vmem>>, %arg4: memref<1x512xf32, #tpu.memory_space<vmem>>, %arg5: memref<512x512xf32, #tpu.memory_space<vmem>>, %arg6: memref<1x512xf32, #tpu.memory_space<vmem>>, %arg7: memref<512x1024xf32, #tpu.memory_space<vmem>>, %arg8: memref<1x1024xf32, #tpu.memory_space<vmem>>, %arg9: memref<1024x128xf32, #tpu.memory_space<vmem>>, %arg10: memref<1x128xf32, #tpu.memory_space<vmem>>, %arg11: memref<128x32xf32, #tpu.memory_space<vmem>>, %arg12: memref<1x32xf32, #tpu.memory_space<vmem>>, %arg13: memref<32x1xf32, #tpu.memory_space<vmem>>, %arg14: memref<1x1xf32, #tpu.memory_space<vmem>>, %arg15: memref<2x1xf32, #tpu.memory_space<vmem>>) attributes {dimension_semantics = [], scalar_prefetch = 0 : i64, scratch_operands = 0 : i64, tpu.core_type = #tpu.core_type<tc>} {
    %c0 = arith.constant 0 : index
    %c0_0 = arith.constant 0 : index
    %0 = vector.load %arg0[%c0, %c0_0] : memref<2x256xf32, #tpu.memory_space<vmem>>, vector<2x256xf32>
    %c0_1 = arith.constant 0 : index
    %c0_2 = arith.constant 0 : index
    %1 = vector.load %arg2[%c0_1, %c0_2] : memref<256x512xf32, #tpu.memory_space<vmem>>, vector<256x512xf32>
    %cst = arith.constant dense<0.000000e+00> : vector<2x512xf32>
    %2 = tpu.matmul %0, %1, %cst {dimension_numbers = #tpu.dot_dimension_numbers<[1], [0], [0], [1], [0, 0, 1, 1], [], []>} : vector<2x256xf32>, vector<256x512xf32>, vector<2x512xf32> -> vector<2x512xf32>
    %c0_3 = arith.constant 0 : index
    %c0_4 = arith.constant 0 : index
    %3 = vector.load %arg1[%c0_3, %c0_4] : memref<2x8xf32, #tpu.memory_space<vmem>>, vector<2x8xf32>
    %c0_5 = arith.constant 0 : index
    %c0_6 = arith.constant 0 : index
    %4 = vector.load %arg3[%c0_5, %c0_6] : memref<8x512xf32, #tpu.memory_space<vmem>>, vector<8x512xf32>
    %cst_7 = arith.constant dense<0.000000e+00> : vector<2x512xf32>
    %5 = tpu.matmul %3, %4, %cst_7 {dimension_numbers = #tpu.dot_dimension_numbers<[1], [0], [0], [1], [0, 0, 1, 1], [], []>} : vector<2x8xf32>, vector<8x512xf32>, vector<2x512xf32> -> vector<2x512xf32>
    %6 = arith.addf %2, %5 : vector<2x512xf32>
    %c0_8 = arith.constant 0 : index
    %c0_9 = arith.constant 0 : index
    %7 = vector.load %arg4[%c0_8, %c0_9] : memref<1x512xf32, #tpu.memory_space<vmem>>, vector<1x512xf32>
    %8 = vector.broadcast %7 : vector<1x512xf32> to vector<2x512xf32>
    %9 = arith.addf %6, %8 : vector<2x512xf32>
    %cst_10 = arith.constant 0.000000e+00 : f32
    %10 = vector.broadcast %cst_10 : f32 to vector<2x512xf32>
    %11 = arith.maximumf %9, %10 : vector<2x512xf32>
    %c0_11 = arith.constant 0 : index
    %c0_12 = arith.constant 0 : index
    %12 = vector.load %arg5[%c0_11, %c0_12] : memref<512x512xf32, #tpu.memory_space<vmem>>, vector<512x512xf32>
    %cst_13 = arith.constant dense<0.000000e+00> : vector<2x512xf32>
    %13 = tpu.matmul %11, %12, %cst_13 {dimension_numbers = #tpu.dot_dimension_numbers<[1], [0], [0], [1], [0, 0, 1, 1], [], []>} : vector<2x512xf32>, vector<512x512xf32>, vector<2x512xf32> -> vector<2x512xf32>
    %c0_14 = arith.constant 0 : index
    %c0_15 = arith.constant 0 : index
    %14 = vector.load %arg6[%c0_14, %c0_15] : memref<1x512xf32, #tpu.memory_space<vmem>>, vector<1x512xf32>
    %15 = vector.broadcast %14 : vector<1x512xf32> to vector<2x512xf32>
    %16 = arith.addf %13, %15 : vector<2x512xf32>
    %cst_16 = arith.constant 0.000000e+00 : f32
    %17 = vector.broadcast %cst_16 : f32 to vector<2x512xf32>
    %18 = arith.maximumf %16, %17 : vector<2x512xf32>
    %c0_17 = arith.constant 0 : index
    %c0_18 = arith.constant 0 : index
    %19 = vector.load %arg7[%c0_17, %c0_18] : memref<512x1024xf32, #tpu.memory_space<vmem>>, vector<512x1024xf32>
    %cst_19 = arith.constant dense<0.000000e+00> : vector<2x1024xf32>
    %20 = tpu.matmul %18, %19, %cst_19 {dimension_numbers = #tpu.dot_dimension_numbers<[1], [0], [0], [1], [0, 0, 1, 1], [], []>} : vector<2x512xf32>, vector<512x1024xf32>, vector<2x1024xf32> -> vector<2x1024xf32>
    %c0_20 = arith.constant 0 : index
    %c0_21 = arith.constant 0 : index
    %21 = vector.load %arg8[%c0_20, %c0_21] : memref<1x1024xf32, #tpu.memory_space<vmem>>, vector<1x1024xf32>
    %22 = vector.broadcast %21 : vector<1x1024xf32> to vector<2x1024xf32>
    %23 = arith.addf %20, %22 : vector<2x1024xf32>
    %cst_22 = arith.constant 0.000000e+00 : f32
    %24 = vector.broadcast %cst_22 : f32 to vector<2x1024xf32>
    %25 = arith.maximumf %23, %24 : vector<2x1024xf32>
    %c0_23 = arith.constant 0 : index
    %c0_24 = arith.constant 0 : index
    %26 = vector.load %arg9[%c0_23, %c0_24] : memref<1024x128xf32, #tpu.memory_space<vmem>>, vector<1024x128xf32>
    %cst_25 = arith.constant dense<0.000000e+00> : vector<2x128xf32>
    %27 = tpu.matmul %25, %26, %cst_25 {dimension_numbers = #tpu.dot_dimension_numbers<[1], [0], [0], [1], [0, 0, 1, 1], [], []>} : vector<2x1024xf32>, vector<1024x128xf32>, vector<2x128xf32> -> vector<2x128xf32>
    %c0_26 = arith.constant 0 : index
    %c0_27 = arith.constant 0 : index
    %28 = vector.load %arg10[%c0_26, %c0_27] : memref<1x128xf32, #tpu.memory_space<vmem>>, vector<1x128xf32>
    %29 = vector.broadcast %28 : vector<1x128xf32> to vector<2x128xf32>
    %30 = arith.addf %27, %29 : vector<2x128xf32>
    %cst_28 = arith.constant 0.000000e+00 : f32
    %31 = vector.broadcast %cst_28 : f32 to vector<2x128xf32>
    %32 = arith.maximumf %30, %31 : vector<2x128xf32>
    %c0_29 = arith.constant 0 : index
    %c0_30 = arith.constant 0 : index
    %33 = vector.load %arg11[%c0_29, %c0_30] : memref<128x32xf32, #tpu.memory_space<vmem>>, vector<128x32xf32>
    %cst_31 = arith.constant dense<0.000000e+00> : vector<2x32xf32>
    %34 = tpu.matmul %32, %33, %cst_31 {dimension_numbers = #tpu.dot_dimension_numbers<[1], [0], [0], [1], [0, 0, 1, 1], [], []>} : vector<2x128xf32>, vector<128x32xf32>, vector<2x32xf32> -> vector<2x32xf32>
    %c0_32 = arith.constant 0 : index
    %c0_33 = arith.constant 0 : index
    %35 = vector.load %arg12[%c0_32, %c0_33] : memref<1x32xf32, #tpu.memory_space<vmem>>, vector<1x32xf32>
    %36 = vector.broadcast %35 : vector<1x32xf32> to vector<2x32xf32>
    %37 = arith.addf %34, %36 : vector<2x32xf32>
    %cst_34 = arith.constant 0.000000e+00 : f32
    %38 = vector.broadcast %cst_34 : f32 to vector<2x32xf32>
    %39 = arith.maximumf %37, %38 : vector<2x32xf32>
    %c0_35 = arith.constant 0 : index
    %c0_36 = arith.constant 0 : index
    %40 = vector.load %arg13[%c0_35, %c0_36] : memref<32x1xf32, #tpu.memory_space<vmem>>, vector<32x1xf32>
    %cst_37 = arith.constant dense<0.000000e+00> : vector<2x1xf32>
    %41 = tpu.matmul %39, %40, %cst_37 {dimension_numbers = #tpu.dot_dimension_numbers<[1], [0], [0], [1], [0, 0, 1, 1], [], []>} : vector<2x32xf32>, vector<32x1xf32>, vector<2x1xf32> -> vector<2x1xf32>
    %c0_38 = arith.constant 0 : index
    %c0_39 = arith.constant 0 : index
    %42 = vector.load %arg14[%c0_38, %c0_39] : memref<1x1xf32, #tpu.memory_space<vmem>>, vector<1x1xf32>
    %43 = vector.broadcast %42 : vector<1x1xf32> to vector<2x1xf32>
    %44 = arith.addf %41, %43 : vector<2x1xf32>
    %c0_40 = arith.constant 0 : index
    %c0_41 = arith.constant 0 : index
    %45 = vector.load %arg15[%c0_40, %c0_41] : memref<2x1xf32, #tpu.memory_space<vmem>>, vector<2x1xf32>
    tpu.vector_store %arg15[%c0_40, %c0_41], %44 {strides = array<i32>} : memref<2x1xf32, #tpu.memory_space<vmem>>, vector<2x1xf32>,
    return
  }
}

</mosaic_0001>

<llo_original>
// kernel: forward.1
$region0: #{forward.1}
  #allocation0 [shape = 'u32[]', space=smem, size = 0x4, offset = 0x4, fixed_abs, tag = 'smem constant byte address 0x4 - core index']
  #allocation1 [shape = 'u32[144,128]{1,0:T(1,128)}', space=vmem, size = 0x12000, scoped, tag = 'internal scratch']
  #allocation2 [shape = 'f32[1,1]{1,0:T(1,128)S(1)}', space=vmem, size = 0x200, scoped, tag = 'scoped memory for forward.1']
  %s0 = inlined_call_operand.vmem [shape: f32[2,256], index: 0, kind: input, shape index: {}]
  %s1 = inlined_call_operand.hbm [shape: f32[2,8], index: 1, kind: input, shape index: {}]
  %s2 = inlined_call_operand.hbm [shape: f32[256,512], index: 2, kind: input, shape index: {}]
  %s3 = inlined_call_operand.hbm [shape: f32[8,512], index: 3, kind: input, shape index: {}]
  %s4 = inlined_call_operand.hbm [shape: f32[1,512], index: 4, kind: input, shape index: {}]
  %s5 = inlined_call_operand.hbm [shape: f32[512,512], index: 5, kind: input, shape index: {}]
  %s6 = inlined_call_operand.hbm [shape: f32[1,512], index: 6, kind: input, shape index: {}]
  %s7 = inlined_call_operand.hbm [shape: f32[512,1024], index: 7, kind: input, shape index: {}]
  %s8 = inlined_call_operand.hbm [shape: f32[1,1024], index: 8, kind: input, shape index: {}]
  %s9 = inlined_call_operand.hbm [shape: f32[1024,128], index: 9, kind: input, shape index: {}]
  %s10 = inlined_call_operand.hbm [shape: f32[1,128], index: 10, kind: input, shape index: {}]
  %s11 = inlined_call_operand.vmem [shape: f32[128,32], index: 11, kind: input, shape index: {}]
  %s12 = inlined_call_operand.hbm [shape: f32[1,32], index: 12, kind: input, shape index: {}]
  %s13 = inlined_call_operand.vmem [shape: f32[32,1], index: 13, kind: input, shape index: {}]
  %s14 = inlined_call_operand.<no memory space> [shape: f32[1,1], index: 14, kind: input, shape index: {}]
  %s15 = inlined_call_operand.vmem [shape: f32[2,1], index: 15, kind: output, shape index: {}]
  %s16 = sld [smem:[#allocation0]]
  $region114: #{forward.1} parent=0
    _
  %s18 = ssub.s32 1, %s16
  %s19 = scalar_select 0, %s18, %s16
  %v20 = vstv %s14
  %21 = vst [vmem:[#allocation2] sm:$0x1] %v20
  $region1: #{forward.1} parent=0
    #allocation3 [shape = 'u8[1024]{0}', space=vmem, size = 0x400, scoped, tag = 'input window, operand 1, single buffered']
    #allocation4 [shape = 's32[1]{0}', space=sflag, size = 0x4, scoped, tag = 'scoped memory for forward.1']
    #allocation5 [shape = 'u8[524288]{0}', space=vmem, size = 0x80000, scoped, tag = 'input window, operand 2, single buffered']
    #allocation6 [shape = 's32[1]{0}', space=sflag, size = 0x4, scoped, tag = 'scoped memory for forward.1']
    #allocation7 [shape = 'u8[16384]{0}', space=vmem, size = 0x4000, scoped, tag = 'input window, operand 3, single buffered']
    #allocation8 [shape = 'u8[2048]{0}', space=vmem, size = 0x800, scoped, tag = 'input window, operand 4, single buffered']
    #allocation9 [shape = 's32[1]{0}', space=sflag, size = 0x4, scoped, tag = 'scoped memory for forward.1']
    #allocation10 [shape = 'u8[1048576]{0}', space=vmem, size = 0x100000, scoped, tag = 'input window, operand 5, single buffered']
    #allocation11 [shape = 'u8[2048]{0}', space=vmem, size = 0x800, scoped, tag = 'input window, operand 6, single buffered']
    #allocation12 [shape = 's32[1]{0}', space=sflag, size = 0x4, scoped, tag = 'scoped memory for forward.1']
    #allocation13 [shape = 'u8[2097152]{0}', space=vmem, size = 0x200000, scoped, tag = 'input window, operand 7, single buffered']
    #allocation14 [shape = 'u8[4096]{0}', space=vmem, size = 0x1000, scoped, tag = 'input window, operand 8, single buffered']
    #allocation15 [shape = 's32[1]{0}', space=sflag, size = 0x4, scoped, tag = 'scoped memory for forward.1']
    #allocation16 [shape = 'u8[524288]{0}', space=vmem, size = 0x80000, scoped, tag = 'input window, operand 9, single buffered']
    #allocation17 [shape = 'u8[512]{0}', space=vmem, size = 0x400, scoped, tag = 'input window, operand 10, single buffered']
    #allocation18 [shape = 's32[1]{0}', space=sflag, size = 0x4, scoped, tag = 'scoped memory for forward.1']
    #allocation19 [shape = 'u8[512]{0}', space=vmem, size = 0x400, scoped, tag = 'input window, operand 12, single buffered']
    %22 = vsyncpa [#allocation4], 0
    %23 = vsyncpa [#allocation6], 0
    %24 = vsyncpa [#allocation9], 0
    %25 = vsyncpa [#allocation12], 0
    %26 = vsyncpa [#allocation15], 0
    %27 = vsyncpa [#allocation18], 0
    // Predicated region
    $region2: #{forward.1} parent=1 // pred_check
      _
    $region3: #{forward.1} parent=1 // pred_check_branch
      %29 = sbr.rel (0) target = $region5
    $region4: #{forward.1} parent=1 // pred_region
      _
    $region5: #{forward.1} parent=1 // pred_fallthru
      _
    // Predicated region
    $region6: #{forward.1} parent=1 // pred_check
      _
    $region7: #{forward.1} parent=1 // pred_check_branch
      %31 = sbr.rel (0) target = $region9
    $region8: #{forward.1} parent=1 // pred_region
      %s33 = ssub.s32 32, 32
      %34 = vsyncadd [#allocation4], %s33
      %s36 = sshll.u32 [#allocation3], 4
      %s37 = int_to_ptr.vmem [resolvable:$true] %s36
      %39 = dma.hbm_to_vmem [thread:$0]  %s1, 32, %s37, [#allocation4]
    $region9: #{forward.1} parent=1 // pred_fallthru
      _
    // Predicated region
    $region10: #{forward.1} parent=1 // pred_check
      _
    $region11: #{forward.1} parent=1 // pred_check_branch
      %41 = sbr.rel (0) target = $region13
    $region12: #{forward.1} parent=1 // pred_region
      %s43 = ssub.s32 16384, 16384
      %44 = vsyncadd [#allocation6], %s43
      %s45 = sshll.u32 [#allocation5], 4
      %s46 = int_to_ptr.vmem [resolvable:$true] %s45
      %51 = dma.hbm_to_vmem [thread:$0]  %s2, 16384, %s46, [#allocation6], 512, 512, 32
    $region13: #{forward.1} parent=1 // pred_fallthru
      _
    // Predicated region
    $region14: #{forward.1} parent=1 // pred_check
      _
    $region15: #{forward.1} parent=1 // pred_check_branch
      %53 = sbr.rel (0) target = $region17
    $region16: #{forward.1} parent=1 // pred_region
      %s55 = ssub.s32 512, 512
      %56 = vsyncadd [#allocation6], %s55
      %s58 = sshll.u32 [#allocation7], 4
      %s59 = int_to_ptr.vmem [resolvable:$true] %s58
      %61 = dma.hbm_to_vmem [thread:$0]  %s3, 512, %s59, [#allocation6]
    $region17: #{forward.1} parent=1 // pred_fallthru
      _
    // Predicated region
    $region18: #{forward.1} parent=1 // pred_check
      _
    $region19: #{forward.1} parent=1 // pred_check_branch
      %63 = sbr.rel (0) target = $region21
    $region20: #{forward.1} parent=1 // pred_region
      %s65 = ssub.s32 64, 64
      %66 = vsyncadd [#allocation9], %s65
      %s68 = sshll.u32 [#allocation8], 4
      %s69 = int_to_ptr.vmem [resolvable:$true] %s68
      %71 = dma.hbm_to_vmem [thread:$0]  %s4, 64, %s69, [#allocation9]
    $region21: #{forward.1} parent=1 // pred_fallthru
      _
    // Predicated region
    $region22: #{forward.1} parent=1 // pred_check
      _
    $region23: #{forward.1} parent=1 // pred_check_branch
      %73 = sbr.rel (0) target = $region25
    $region24: #{forward.1} parent=1 // pred_region
      %s75 = ssub.s32 32768, 32768
      %76 = vsyncadd [#allocation9], %s75
      %s77 = sshll.u32 [#allocation10], 4
      %s78 = int_to_ptr.vmem [resolvable:$true] %s77
      %83 = dma.hbm_to_vmem [thread:$0]  %s5, 32768, %s78, [#allocation9], 512, 512, 32
    $region25: #{forward.1} parent=1 // pred_fallthru
      _
    // Predicated region
    $region26: #{forward.1} parent=1 // pred_check
      _
    $region27: #{forward.1} parent=1 // pred_check_branch
      %85 = sbr.rel (0) target = $region29
    $region28: #{forward.1} parent=1 // pred_region
      %s87 = ssub.s32 64, 64
      %88 = vsyncadd [#allocation12], %s87
      %s90 = sshll.u32 [#allocation11], 4
      %s91 = int_to_ptr.vmem [resolvable:$true] %s90
      %93 = dma.hbm_to_vmem [thread:$0]  %s6, 64, %s91, [#allocation12]
    $region29: #{forward.1} parent=1 // pred_fallthru
      _
    // Predicated region
    $region30: #{forward.1} parent=1 // pred_check
      _
    $region31: #{forward.1} parent=1 // pred_check_branch
      %95 = sbr.rel (0) target = $region33
    $region32: #{forward.1} parent=1 // pred_region
      %s97 = ssub.s32 65536, 65536
      %98 = vsyncadd [#allocation12], %s97
      %s99 = sshll.u32 [#allocation13], 4
      %s100 = int_to_ptr.vmem [resolvable:$true] %s99
      %105 = dma.hbm_to_vmem [thread:$0]  %s7, 65536, %s100, [#allocation12], 1024, 1024, 64
    $region33: #{forward.1} parent=1 // pred_fallthru
      _
    // Predicated region
    $region34: #{forward.1} parent=1 // pred_check
      _
    $region35: #{forward.1} parent=1 // pred_check_branch
      %107 = sbr.rel (0) target = $region37
    $region36: #{forward.1} parent=1 // pred_region
      %s109 = ssub.s32 128, 128
      %110 = vsyncadd [#allocation15], %s109
      %s112 = sshll.u32 [#allocation14], 4
      %s113 = int_to_ptr.vmem [resolvable:$true] %s112
      %115 = dma.hbm_to_vmem [thread:$0]  %s8, 128, %s113, [#allocation15]
    $region37: #{forward.1} parent=1 // pred_fallthru
      _
    // Predicated region
    $region38: #{forward.1} parent=1 // pred_check
      _
    $region39: #{forward.1} parent=1 // pred_check_branch
      %117 = sbr.rel (0) target = $region41
    $region40: #{forward.1} parent=1 // pred_region
      %s119 = ssub.s32 16384, 16384
      %120 = vsyncadd [#allocation15], %s119
      %s121 = sshll.u32 [#allocation16], 4
      %s122 = int_to_ptr.vmem [resolvable:$true] %s121
      %127 = dma.hbm_to_vmem [thread:$0]  %s9, 16384, %s122, [#allocation15], 128, 128, 8
    $region41: #{forward.1} parent=1 // pred_fallthru
      _
    // Predicated region
    $region42: #{forward.1} parent=1 // pred_check
      _
    $region43: #{forward.1} parent=1 // pred_check_branch
      %129 = sbr.rel (0) target = $region45
    $region44: #{forward.1} parent=1 // pred_region
      %s131 = ssub.s32 16, 16
      %132 = vsyncadd [#allocation18], %s131
      %s134 = sshll.u32 [#allocation17], 4
      %s135 = int_to_ptr.vmem [resolvable:$true] %s134
      %137 = dma.hbm_to_vmem [thread:$0]  %s10, 16, %s135, [#allocation18]
    $region45: #{forward.1} parent=1 // pred_fallthru
      _
    // Predicated region
    $region46: #{forward.1} parent=1 // pred_check
      _
    $region47: #{forward.1} parent=1 // pred_check_branch
      %139 = sbr.rel (0) target = $region49
    $region48: #{forward.1} parent=1 // pred_region
      _
    $region49: #{forward.1} parent=1 // pred_fallthru
      _
    // Predicated region
    $region50: #{forward.1} parent=1 // pred_check
      _
    $region51: #{forward.1} parent=1 // pred_check_branch
      %141 = sbr.rel (0) target = $region53
    $region52: #{forward.1} parent=1 // pred_region
      %s143 = ssub.s32 16, 16
      %144 = vsyncadd [#allocation18], %s143
      %s146 = sshll.u32 [#allocation19], 4
      %s147 = int_to_ptr.vmem [resolvable:$true] %s146
      %149 = dma.hbm_to_vmem [thread:$0]  %s12, 16, %s147, [#allocation18]
    $region53: #{forward.1} parent=1 // pred_fallthru
      _
    // Predicated region
    $region54: #{forward.1} parent=1 // pred_check
      _
    $region55: #{forward.1} parent=1 // pred_check_branch
      %151 = sbr.rel (0) target = $region57
    $region56: #{forward.1} parent=1 // pred_region
      _
    $region57: #{forward.1} parent=1 // pred_fallthru
      _
    // Predicated region
    $region58: #{forward.1} parent=1 // pred_check
      _
    $region59: #{forward.1} parent=1 // pred_check_branch
      %153 = sbr.rel (0) target = $region61
    $region60: #{forward.1} parent=1 // pred_region
      _
    $region61: #{forward.1} parent=1 // pred_fallthru
      _
    // Predicated region
    $region62: #{forward.1} parent=1 // pred_check
      _
    $region63: #{forward.1} parent=1 // pred_check_branch
      %155 = sbr.rel (0) target = $region65
    $region64: #{forward.1} parent=1 // pred_region
      %156 = dma.done [#allocation4], 32
    $region65: #{forward.1} parent=1 // pred_fallthru
      _
    // Predicated region
    $region66: #{forward.1} parent=1 // pred_check
      _
    $region67: #{forward.1} parent=1 // pred_check_branch
      %158 = sbr.rel (0) target = $region69
    $region68: #{forward.1} parent=1 // pred_region
      %159 = dma.done [#allocation6], 16384
    $region69: #{forward.1} parent=1 // pred_fallthru
      _
    // Predicated region
    $region70: #{forward.1} parent=1 // pred_check
      _
    $region71: #{forward.1} parent=1 // pred_check_branch
      %161 = sbr.rel (0) target = $region73
    $region72: #{forward.1} parent=1 // pred_region
      %162 = dma.done [#allocation6], 512
    $region73: #{forward.1} parent=1 // pred_fallthru
      _
    // Predicated region
    $region74: #{forward.1} parent=1 // pred_check
      _
    $region75: #{forward.1} parent=1 // pred_check_branch
      %164 = sbr.rel (0) target = $region77
    $region76: #{forward.1} parent=1 // pred_region
      %165 = dma.done [#allocation9], 64
    $region77: #{forward.1} parent=1 // pred_fallthru
      _
    // Predicated region
    $region78: #{forward.1} parent=1 // pred_check
      _
    $region79: #{forward.1} parent=1 // pred_check_branch
      %167 = sbr.rel (0) target = $region81
    $region80: #{forward.1} parent=1 // pred_region
      %168 = dma.done [#allocation9], 32768
    $region81: #{forward.1} parent=1 // pred_fallthru
      _
    // Predicated region
    $region82: #{forward.1} parent=1 // pred_check
      _
    $region83: #{forward.1} parent=1 // pred_check_branch
      %170 = sbr.rel (0) target = $region85
    $region84: #{forward.1} parent=1 // pred_region
      %171 = dma.done [#allocation12], 64
    $region85: #{forward.1} parent=1 // pred_fallthru
      _
    // Predicated region
    $region86: #{forward.1} parent=1 // pred_check
      _
    $region87: #{forward.1} parent=1 // pred_check_branch
      %173 = sbr.rel (0) target = $region89
    $region88: #{forward.1} parent=1 // pred_region
      %174 = dma.done [#allocation12], 65536
    $region89: #{forward.1} parent=1 // pred_fallthru
      _
    // Predicated region
    $region90: #{forward.1} parent=1 // pred_check
      _
    $region91: #{forward.1} parent=1 // pred_check_branch
      %176 = sbr.rel (0) target = $region93
    $region92: #{forward.1} parent=1 // pred_region
      %177 = dma.done [#allocation15], 128
    $region93: #{forward.1} parent=1 // pred_fallthru
      _
    // Predicated region
    $region94: #{forward.1} parent=1 // pred_check
      _
    $region95: #{forward.1} parent=1 // pred_check_branch
      %179 = sbr.rel (0) target = $region97
    $region96: #{forward.1} parent=1 // pred_region
      %180 = dma.done [#allocation15], 16384
    $region97: #{forward.1} parent=1 // pred_fallthru
      _
    // Predicated region
    $region98: #{forward.1} parent=1 // pred_check
      _
    $region99: #{forward.1} parent=1 // pred_check_branch
      %182 = sbr.rel (0) target = $region101
    $region100: #{forward.1} parent=1 // pred_region
      %183 = dma.done [#allocation18], 16
    $region101: #{forward.1} parent=1 // pred_fallthru
      _
    // Predicated region
    $region102: #{forward.1} parent=1 // pred_check
      _
    $region103: #{forward.1} parent=1 // pred_check_branch
      %185 = sbr.rel (0) target = $region105
    $region104: #{forward.1} parent=1 // pred_region
      %186 = dma.done [#allocation18], 16
    $region105: #{forward.1} parent=1 // pred_fallthru
      _
    %v187 = vld [vmem:[%s0] sm:$0xf]
    %v188 = vld [vmem:[#allocation5] sm:$0xff]
    %v189 = vld [vmem:[#allocation5 + $0x8] sm:$0xff]
    %v190 = vld [vmem:[#allocation5 + $0x10] sm:$0xff]
    %v191 = vld [vmem:[#allocation5 + $0x18] sm:$0xff]
    %v192 = vld [vmem:[#allocation5 + $0x20] sm:$0xff]
    %v193 = vld [vmem:[#allocation5 + $0x28] sm:$0xff]
    %v194 = vld [vmem:[#allocation5 + $0x30] sm:$0xff]
    %v195 = vld [vmem:[#allocation5 + $0x38] sm:$0xff]
    %v196 = vld [vmem:[#allocation5 + $0x40] sm:$0xff]
    %v197 = vld [vmem:[#allocation5 + $0x48] sm:$0xff]
    %v198 = vld [vmem:[#allocation5 + $0x50] sm:$0xff]
    %v199 = vld [vmem:[#allocation5 + $0x58] sm:$0xff]
    %v200 = vld [vmem:[#allocation5 + $0x60] sm:$0xff]
    %v201 = vld [vmem:[#allocation5 + $0x68] sm:$0xff]
    %v202 = vld [vmem:[#allocation5 + $0x70] sm:$0xff]
    %v203 = vld [vmem:[#allocation5 + $0x78] sm:$0xff]
    %v204 = vld [vmem:[#allocation5 + $0x80] sm:$0xff]
    %v205 = vld [vmem:[#allocation5 + $0x88] sm:$0xff]
    %v206 = vld [vmem:[#allocation5 + $0x90] sm:$0xff]
    %v207 = vld [vmem:[#allocation5 + $0x98] sm:$0xff]
    %v208 = vld [vmem:[#allocation5 + $0xa0] sm:$0xff]
    %v209 = vld [vmem:[#allocation5 + $0xa8] sm:$0xff]
    %v210 = vld [vmem:[#allocation5 + $0xb0] sm:$0xff]
    %v211 = vld [vmem:[#allocation5 + $0xb8] sm:$0xff]
    %v212 = vld [vmem:[#allocation5 + $0xc0] sm:$0xff]
    %v213 = vld [vmem:[#allocation5 + $0xc8] sm:$0xff]
    %v214 = vld [vmem:[#allocation5 + $0xd0] sm:$0xff]
    %v215 = vld [vmem:[#allocation5 + $0xd8] sm:$0xff]
    %v216 = vld [vmem:[#allocation5 + $0xe0] sm:$0xff]
    %v217 = vld [vmem:[#allocation5 + $0xe8] sm:$0xff]
    %v218 = vld [vmem:[#allocation5 + $0xf0] sm:$0xff]
    %v219 = vld [vmem:[#allocation5 + $0xf8] sm:$0xff]
    %v220 = vld [vmem:[#allocation5 + $0x100] sm:$0xff]
    %v221 = vld [vmem:[#allocation5 + $0x108] sm:$0xff]
    %v222 = vld [vmem:[#allocation5 + $0x110] sm:$0xff]
    %v223 = vld [vmem:[#allocation5 + $0x118] sm:$0xff]
    %v224 = vld [vmem:[#allocation5 + $0x120] sm:$0xff]
    %v225 = vld [vmem:[#allocation5 + $0x128] sm:$0xff]
    %v226 = vld [vmem:[#allocation5 + $0x130] sm:$0xff]
    %v227 = vld [vmem:[#allocation5 + $0x138] sm:$0xff]
    %v228 = vld [vmem:[#allocation5 + $0x140] sm:$0xff]
    %v229 = vld [vmem:[#allocation5 + $0x148] sm:$0xff]
    %v230 = vld [vmem:[#allocation5 + $0x150] sm:$0xff]
    %v231 = vld [vmem:[#allocation5 + $0x158] sm:$0xff]
    %v232 = vld [vmem:[#allocation5 + $0x160] sm:$0xff]
    %v233 = vld [vmem:[#allocation5 + $0x168] sm:$0xff]
    %v234 = vld [vmem:[#allocation5 + $0x170] sm:$0xff]
    %v235 = vld [vmem:[#allocation5 + $0x178] sm:$0xff]
    %v236 = vld [vmem:[#allocation5 + $0x180] sm:$0xff]
    %v237 = vld [vmem:[#allocation5 + $0x188] sm:$0xff]
    %v238 = vld [vmem:[#allocation5 + $0x190] sm:$0xff]
    %v239 = vld [vmem:[#allocation5 + $0x198] sm:$0xff]
    %v240 = vld [vmem:[#allocation5 + $0x1a0] sm:$0xff]
    %v241 = vld [vmem:[#allocation5 + $0x1a8] sm:$0xff]
    %v242 = vld [vmem:[#allocation5 + $0x1b0] sm:$0xff]
    %v243 = vld [vmem:[#allocation5 + $0x1b8] sm:$0xff]
    %v244 = vld [vmem:[#allocation5 + $0x1c0] sm:$0xff]
    %v245 = vld [vmem:[#allocation5 + $0x1c8] sm:$0xff]
    %v246 = vld [vmem:[#allocation5 + $0x1d0] sm:$0xff]
    %v247 = vld [vmem:[#allocation5 + $0x1d8] sm:$0xff]
    %v248 = vld [vmem:[#allocation5 + $0x1e0] sm:$0xff]
    %v249 = vld [vmem:[#allocation5 + $0x1e8] sm:$0xff]
    %v250 = vld [vmem:[#allocation5 + $0x1f0] sm:$0xff]
    %v251 = vld [vmem:[#allocation5 + $0x1f8] sm:$0xff]
    %v252 = vld [vmem:[#allocation5 + $0x200] sm:$0xff]
    %v253 = vld [vmem:[#allocation5 + $0x208] sm:$0xff]
    %v254 = vld [vmem:[#allocation5 + $0x210] sm:$0xff]
    %v255 = vld [vmem:[#allocation5 + $0x218] sm:$0xff]
    %v256 = vld [vmem:[#allocation5 + $0x220] sm:$0xff]
    %v257 = vld [vmem:[#allocation5 + $0x228] sm:$0xff]
    %v258 = vld [vmem:[#allocation5 + $0x230] sm:$0xff]
    %v259 = vld [vmem:[#allocation5 + $0x238] sm:$0xff]
    %v260 = vld [vmem:[#allocation5 + $0x240] sm:$0xff]
    %v261 = vld [vmem:[#allocation5 + $0x248] sm:$0xff]
    %v262 = vld [vmem:[#allocation5 + $0x250] sm:$0xff]
    %v263 = vld [vmem:[#allocation5 + $0x258] sm:$0xff]
    %v264 = vld [vmem:[#allocation5 + $0x260] sm:$0xff]
    %v265 = vld [vmem:[#allocation5 + $0x268] sm:$0xff]
    %v266 = vld [vmem:[#allocation5 + $0x270] sm:$0xff]
    %v267 = vld [vmem:[#allocation5 + $0x278] sm:$0xff]
    %v268 = vld [vmem:[#allocation5 + $0x280] sm:$0xff]
    %v269 = vld [vmem:[#allocation5 + $0x288] sm:$0xff]
    %v270 = vld [vmem:[#allocation5 + $0x290] sm:$0xff]
    %v271 = vld [vmem:[#allocation5 + $0x298] sm:$0xff]
    %v272 = vld [vmem:[#allocation5 + $0x2a0] sm:$0xff]
    %v273 = vld [vmem:[#allocation5 + $0x2a8] sm:$0xff]
    %v274 = vld [vmem:[#allocation5 + $0x2b0] sm:$0xff]
    %v275 = vld [vmem:[#allocation5 + $0x2b8] sm:$0xff]
    %v276 = vld [vmem:[#allocation5 + $0x2c0] sm:$0xff]
    %v277 = vld [vmem:[#allocation5 + $0x2c8] sm:$0xff]
    %v278 = vld [vmem:[#allocation5 + $0x2d0] sm:$0xff]
    %v279 = vld [vmem:[#allocation5 + $0x2d8] sm:$0xff]
    %v280 = vld [vmem:[#allocation5 + $0x2e0] sm:$0xff]
    %v281 = vld [vmem:[#allocation5 + $0x2e8] sm:$0xff]
    %v282 = vld [vmem:[#allocation5 + $0x2f0] sm:$0xff]
    %v283 = vld [vmem:[#allocation5 + $0x2f8] sm:$0xff]
    %v284 = vld [vmem:[#allocation5 + $0x300] sm:$0xff]
    %v285 = vld [vmem:[#allocation5 + $0x308] sm:$0xff]
    %v286 = vld [vmem:[#allocation5 + $0x310] sm:$0xff]
    %v287 = vld [vmem:[#allocation5 + $0x318] sm:$0xff]
    %v288 = vld [vmem:[#allocation5 + $0x320] sm:$0xff]
    %v289 = vld [vmem:[#allocation5 + $0x328] sm:$0xff]
    %v290 = vld [vmem:[#allocation5 + $0x330] sm:$0xff]
    %v291 = vld [vmem:[#allocation5 + $0x338] sm:$0xff]
    %v292 = vld [vmem:[#allocation5 + $0x340] sm:$0xff]
    %v293 = vld [vmem:[#allocation5 + $0x348] sm:$0xff]
    %v294 = vld [vmem:[#allocation5 + $0x350] sm:$0xff]
    %v295 = vld [vmem:[#allocation5 + $0x358] sm:$0xff]
    %v296 = vld [vmem:[#allocation5 + $0x360] sm:$0xff]
    %v297 = vld [vmem:[#allocation5 + $0x368] sm:$0xff]
    %v298 = vld [vmem:[#allocation5 + $0x370] sm:$0xff]
    %v299 = vld [vmem:[#allocation5 + $0x378] sm:$0xff]
    %v300 = vld [vmem:[#allocation5 + $0x380] sm:$0xff]
    %v301 = vld [vmem:[#allocation5 + $0x388] sm:$0xff]
    %v302 = vld [vmem:[#allocation5 + $0x390] sm:$0xff]
    %v303 = vld [vmem:[#allocation5 + $0x398] sm:$0xff]
    %v304 = vld [vmem:[#allocation5 + $0x3a0] sm:$0xff]
    %v305 = vld [vmem:[#allocation5 + $0x3a8] sm:$0xff]
    %v306 = vld [vmem:[#allocation5 + $0x3b0] sm:$0xff]
    %v307 = vld [vmem:[#allocation5 + $0x3b8] sm:$0xff]
    %v308 = vld [vmem:[#allocation5 + $0x3c0] sm:$0xff]
    %v309 = vld [vmem:[#allocation5 + $0x3c8] sm:$0xff]
    %v310 = vld [vmem:[#allocation5 + $0x3d0] sm:$0xff]
    %v311 = vld [vmem:[#allocation5 + $0x3d8] sm:$0xff]
    %v312 = vld [vmem:[#allocation5 + $0x3e0] sm:$0xff]
    %v313 = vld [vmem:[#allocation5 + $0x3e8] sm:$0xff]
    %v314 = vld [vmem:[#allocation5 + $0x3f0] sm:$0xff]
    %v315 = vld [vmem:[#allocation5 + $0x3f8] sm:$0xff]
    %v316 = vld [vmem:[#allocation3] sm:$0x3]
    %v317 = vld [vmem:[#allocation7] sm:$0xff]
    %v318 = vld [vmem:[#allocation7 + $0x8] sm:$0xff]
    %v319 = vld [vmem:[#allocation7 + $0x10] sm:$0xff]
    %v320 = vld [vmem:[#allocation7 + $0x18] sm:$0xff]
    %vm321 = vcmask 64512
    %v323 = vsel %vm321, %v316, 0
    %325 = vmatprep.subr.mxu0 %v318
    %326 = vmatpush1.msra.mxu0 %v317
    %327 = vmatprep.subr.mxu0 0.0
    %328 = vmatpush1.msra.mxu0 0.0
    %329 = vmatprep.subr.mxu0 0.0
    %330 = vmatpush1.msra.mxu0 0.0
    %331 = vmatprep.subr.mxu0 0.0
    %332 = vmatpush1.msra.mxu0 0.0
    %333 = vmatprep.subr.mxu0 0.0
    %334 = vmatpush1.msra.mxu0 0.0
    %335 = vmatprep.subr.mxu0 0.0
    %336 = vmatpush1.msra.mxu0 0.0
    %337 = vmatprep.subr.mxu0 0.0
    %338 = vmatpush1.msra.mxu0 0.0
    %339 = vmatprep.subr.mxu0 0.0
    %340 = vmatpush1.msra.mxu0 0.0
    %341 = vmatprep.subr.mxu0 0.0
    %342 = vmatpush1.msra.mxu0 0.0
    %343 = vmatprep.subr.mxu0 0.0
    %344 = vmatpush1.msra.mxu0 0.0
    %345 = vmatprep.subr.mxu0 0.0
    %346 = vmatpush1.msra.mxu0 0.0
    %347 = vmatprep.subr.mxu0 0.0
    %348 = vmatpush1.msra.mxu0 0.0
    %349 = vmatprep.subr.mxu0 0.0
    %350 = vmatpush1.msra.mxu0 0.0
    %351 = vmatprep.subr.mxu0 0.0
    %352 = vmatpush1.msra.mxu0 0.0
    %353 = vmatprep.subr.mxu0 0.0
    %354 = vmatpush1.msra.mxu0 0.0
    %355 = vmatprep.subr.mxu0 0.0
    %356 = vmatpush1.msra.mxu0 0.0
    %357 = vmatprep.subr.mxu0 0.0
    %358 = vmatpush1.msra.mxu0 0.0
    %359 = vmatprep.subr.mxu0 0.0
    %360 = vmatpush1.msra.mxu0 0.0
    %361 = vmatprep.subr.mxu0 0.0
    %362 = vmatpush1.msra.mxu0 0.0
    %363 = vmatprep.subr.mxu0 0.0
    %364 = vmatpush1.msra.mxu0 0.0
    %365 = vmatprep.subr.mxu0 0.0
    %366 = vmatpush1.msra.mxu0 0.0
    %367 = vmatprep.subr.mxu0 0.0
    %368 = vmatpush1.msra.mxu0 0.0
    %369 = vmatprep.subr.mxu0 0.0
    %370 = vmatpush1.msra.mxu0 0.0
    %371 = vmatprep.subr.mxu0 0.0
    %372 = vmatpush1.msra.mxu0 0.0
    %373 = vmatprep.subr.mxu0 0.0
    %374 = vmatpush1.msra.mxu0 0.0
    %375 = vmatprep.subr.mxu0 0.0
    %376 = vmatpush1.msra.mxu0 0.0
    %377 = vmatprep.subr.mxu0 0.0
    %378 = vmatpush1.msra.mxu0 0.0
    %379 = vmatprep.subr.mxu0 0.0
    %380 = vmatpush1.msra.mxu0 0.0
    %381 = vmatprep.subr.mxu0 0.0
    %382 = vmatpush1.msra.mxu0 0.0
    %383 = vmatprep.subr.mxu0 0.0
    %384 = vmatpush1.msra.mxu0 0.0
    %385 = vmatprep.subr.mxu0 0.0
    %386 = vmatpush1.msra.mxu0 0.0
    %387 = vmatprep.subr.mxu0 0.0
    %388 = vmatpush1.msra.mxu0 0.0
    %389 = vmatprep.mubr.f32.mxu0 0.0
    %390 = vmatmul.mubr.f32.gmra.mrb[0].mxu0 %v323
    %v391 = vpop.f32.mrb[0].mxu0
    %v392 = vadd.f32 0.0, %v391
    %v393 = vpop.f32.mrb[0].mxu0
    %v394 = vadd.f32 0.0, %v393
    %395 = vdwg.mxu0
    %396 = vmatprep.subr.mxu0 %v320
    %397 = vmatpush1.msra.mxu0 %v319
    %398 = vmatprep.subr.mxu0 0.0
    %399 = vmatpush1.msra.mxu0 0.0
    %400 = vmatprep.subr.mxu0 0.0
    %401 = vmatpush1.msra.mxu0 0.0
    %402 = vmatprep.subr.mxu0 0.0
    %403 = vmatpush1.msra.mxu0 0.0
    %404 = vmatprep.subr.mxu0 0.0
    %405 = vmatpush1.msra.mxu0 0.0
    %406 = vmatprep.subr.mxu0 0.0
    %407 = vmatpush1.msra.mxu0 0.0
    %408 = vmatprep.subr.mxu0 0.0
    %409 = vmatpush1.msra.mxu0 0.0
    %410 = vmatprep.subr.mxu0 0.0
    %411 = vmatpush1.msra.mxu0 0.0
    %412 = vmatprep.subr.mxu0 0.0
    %413 = vmatpush1.msra.mxu0 0.0
    %414 = vmatprep.subr.mxu0 0.0
    %415 = vmatpush1.msra.mxu0 0.0
    %416 = vmatprep.subr.mxu0 0.0
    %417 = vmatpush1.msra.mxu0 0.0
    %418 = vmatprep.subr.mxu0 0.0
    %419 = vmatpush1.msra.mxu0 0.0
    %420 = vmatprep.subr.mxu0 0.0
    %421 = vmatpush1.msra.mxu0 0.0
    %422 = vmatprep.subr.mxu0 0.0
    %423 = vmatpush1.msra.mxu0 0.0
    %424 = vmatprep.subr.mxu0 0.0
    %425 = vmatpush1.msra.mxu0 0.0
    %426 = vmatprep.subr.mxu0 0.0
    %427 = vmatpush1.msra.mxu0 0.0
    %428 = vmatprep.subr.mxu0 0.0
    %429 = vmatpush1.msra.mxu0 0.0
    %430 = vmatprep.subr.mxu0 0.0
    %431 = vmatpush1.msra.mxu0 0.0
    %432 = vmatprep.subr.mxu0 0.0
    %433 = vmatpush1.msra.mxu0 0.0
    %434 = vmatprep.subr.mxu0 0.0
    %435 = vmatpush1.msra.mxu0 0.0
    %436 = vmatprep.subr.mxu0 0.0
    %437 = vmatpush1.msra.mxu0 0.0
    %438 = vmatprep.subr.mxu0 0.0
    %439 = vmatpush1.msra.mxu0 0.0
    %440 = vmatprep.subr.mxu0 0.0
    %441 = vmatpush1.msra.mxu0 0.0
    %442 = vmatprep.subr.mxu0 0.0
    %443 = vmatpush1.msra.mxu0 0.0
    %444 = vmatprep.subr.mxu0 0.0
    %445 = vmatpush1.msra.mxu0 0.0
    %446 = vmatprep.subr.mxu0 0.0
    %447 = vmatpush1.msra.mxu0 0.0
    %448 = vmatprep.subr.mxu0 0.0
    %449 = vmatpush1.msra.mxu0 0.0
    %450 = vmatprep.subr.mxu0 0.0
    %451 = vmatpush1.msra.mxu0 0.0
    %452 = vmatprep.subr.mxu0 0.0
    %453 = vmatpush1.msra.mxu0 0.0
    %454 = vmatprep.subr.mxu0 0.0
    %455 = vmatpush1.msra.mxu0 0.0
    %456 = vmatprep.subr.mxu0 0.0
    %457 = vmatpush1.msra.mxu0 0.0
    %458 = vmatprep.subr.mxu0 0.0
    %459 = vmatpush1.msra.mxu0 0.0
    %460 = vmatprep.mubr.f32.mxu0 0.0
    %461 = vmatmul.mubr.f32.gmra.mrb[0].mxu0 %v323
    %v462 = vpop.f32.mrb[0].mxu0
    %v463 = vadd.f32 0.0, %v462
    %v464 = vpop.f32.mrb[0].mxu0
    %v465 = vadd.f32 0.0, %v464
    %466 = vdwg.mxu0
    %v469 = vunpack.c.l.s4 1983009808
    %v470 = vunpack.c.0.s8 %v469
    %v471 = vlaneseq
    %v472 = vshrl.u32 %v471, 7
    %v473 = vsub.s32 %v470, %v472
    %v474 = vrot.slane %v187, %v473
    %v475 = vcombine.high %v474, %v474
    %478 = vmatprep.subr.mxu0 %v189
    %479 = vmatpush1.msra.mxu0 %v188
    %480 = vmatprep.subr.mxu0 %v193
    %481 = vmatpush1.msra.mxu0 %v192
    %482 = vmatprep.subr.mxu0 %v197
    %483 = vmatpush1.msra.mxu0 %v196
    %484 = vmatprep.subr.mxu0 %v201
    %485 = vmatpush1.msra.mxu0 %v200
    %486 = vmatprep.subr.mxu0 %v205
    %487 = vmatpush1.msra.mxu0 %v204
    %488 = vmatprep.subr.mxu0 %v209
    %489 = vmatpush1.msra.mxu0 %v208
    %490 = vmatprep.subr.mxu0 %v213
    %491 = vmatpush1.msra.mxu0 %v212
    %492 = vmatprep.subr.mxu0 %v217
    %493 = vmatpush1.msra.mxu0 %v216
    %494 = vmatprep.subr.mxu0 %v221
    %495 = vmatpush1.msra.mxu0 %v220
    %496 = vmatprep.subr.mxu0 %v225
    %497 = vmatpush1.msra.mxu0 %v224
    %498 = vmatprep.subr.mxu0 %v229
    %499 = vmatpush1.msra.mxu0 %v228
    %500 = vmatprep.subr.mxu0 %v233
    %501 = vmatpush1.msra.mxu0 %v232
    %502 = vmatprep.subr.mxu0 %v237
    %503 = vmatpush1.msra.mxu0 %v236
    %504 = vmatprep.subr.mxu0 %v241
    %505 = vmatpush1.msra.mxu0 %v240
    %506 = vmatprep.subr.mxu0 %v245
    %507 = vmatpush1.msra.mxu0 %v244
    %508 = vmatprep.subr.mxu0 %v249
    %509 = vmatpush1.msra.mxu0 %v248
    %510 = vmatprep.subr.mxu0 %v253
    %511 = vmatpush1.msra.mxu0 %v252
    %512 = vmatprep.subr.mxu0 %v257
    %513 = vmatpush1.msra.mxu0 %v256
    %514 = vmatprep.subr.mxu0 %v261
    %515 = vmatpush1.msra.mxu0 %v260
    %516 = vmatprep.subr.mxu0 %v265
    %517 = vmatpush1.msra.mxu0 %v264
    %518 = vmatprep.subr.mxu0 %v269
    %519 = vmatpush1.msra.mxu0 %v268
    %520 = vmatprep.subr.mxu0 %v273
    %521 = vmatpush1.msra.mxu0 %v272
    %522 = vmatprep.subr.mxu0 %v277
    %523 = vmatpush1.msra.mxu0 %v276
    %524 = vmatprep.subr.mxu0 %v281
    %525 = vmatpush1.msra.mxu0 %v280
    %526 = vmatprep.subr.mxu0 %v285
    %527 = vmatpush1.msra.mxu0 %v284
    %528 = vmatprep.subr.mxu0 %v289
    %529 = vmatpush1.msra.mxu0 %v288
    %530 = vmatprep.subr.mxu0 %v293
    %531 = vmatpush1.msra.mxu0 %v292
    %532 = vmatprep.subr.mxu0 %v297
    %533 = vmatpush1.msra.mxu0 %v296
    %534 = vmatprep.subr.mxu0 %v301
    %535 = vmatpush1.msra.mxu0 %v300
    %536 = vmatprep.subr.mxu0 %v305
    %537 = vmatpush1.msra.mxu0 %v304
    %538 = vmatprep.subr.mxu0 %v309
    %539 = vmatpush1.msra.mxu0 %v308
    %540 = vmatprep.subr.mxu0 %v313
    %541 = vmatpush1.msra.mxu0 %v312
    %542 = vmatprep.mubr.f32.mxu0 %v475
    %543 = vmatmul.mubr.f32.gmra.mrb[0].mxu0 %v474
    %v544 = vpop.f32.mrb[0].mxu0
    %v545 = vadd.f32 %v392, %v544
    %v546 = vpop.f32.mrb[0].mxu0
    %v547 = vadd.f32 %v394, %v546
    %548 = vdwg.mxu0
    %549 = vmatprep.subr.mxu0 %v191
    %550 = vmatpush1.msra.mxu0 %v190
    %551 = vmatprep.subr.mxu0 %v195
    %552 = vmatpush1.msra.mxu0 %v194
    %553 = vmatprep.subr.mxu0 %v199
    %554 = vmatpush1.msra.mxu0 %v198
    %555 = vmatprep.subr.mxu0 %v203
    %556 = vmatpush1.msra.mxu0 %v202
    %557 = vmatprep.subr.mxu0 %v207
    %558 = vmatpush1.msra.mxu0 %v206
    %559 = vmatprep.subr.mxu0 %v211
    %560 = vmatpush1.msra.mxu0 %v210
    %561 = vmatprep.subr.mxu0 %v215
    %562 = vmatpush1.msra.mxu0 %v214
    %563 = vmatprep.subr.mxu0 %v219
    %564 = vmatpush1.msra.mxu0 %v218
    %565 = vmatprep.subr.mxu0 %v223
    %566 = vmatpush1.msra.mxu0 %v222
    %567 = vmatprep.subr.mxu0 %v227
    %568 = vmatpush1.msra.mxu0 %v226
    %569 = vmatprep.subr.mxu0 %v231
    %570 = vmatpush1.msra.mxu0 %v230
    %571 = vmatprep.subr.mxu0 %v235
    %572 = vmatpush1.msra.mxu0 %v234
    %573 = vmatprep.subr.mxu0 %v239
    %574 = vmatpush1.msra.mxu0 %v238
    %575 = vmatprep.subr.mxu0 %v243
    %576 = vmatpush1.msra.mxu0 %v242
    %577 = vmatprep.subr.mxu0 %v247
    %578 = vmatpush1.msra.mxu0 %v246
    %579 = vmatprep.subr.mxu0 %v251
    %580 = vmatpush1.msra.mxu0 %v250
    %581 = vmatprep.subr.mxu0 %v255
    %582 = vmatpush1.msra.mxu0 %v254
    %583 = vmatprep.subr.mxu0 %v259
    %584 = vmatpush1.msra.mxu0 %v258
    %585 = vmatprep.subr.mxu0 %v263
    %586 = vmatpush1.msra.mxu0 %v262
    %587 = vmatprep.subr.mxu0 %v267
    %588 = vmatpush1.msra.mxu0 %v266
    %589 = vmatprep.subr.mxu0 %v271
    %590 = vmatpush1.msra.mxu0 %v270
    %591 = vmatprep.subr.mxu0 %v275
    %592 = vmatpush1.msra.mxu0 %v274
    %593 = vmatprep.subr.mxu0 %v279
    %594 = vmatpush1.msra.mxu0 %v278
    %595 = vmatprep.subr.mxu0 %v283
    %596 = vmatpush1.msra.mxu0 %v282
    %597 = vmatprep.subr.mxu0 %v287
    %598 = vmatpush1.msra.mxu0 %v286
    %599 = vmatprep.subr.mxu0 %v291
    %600 = vmatpush1.msra.mxu0 %v290
    %601 = vmatprep.subr.mxu0 %v295
    %602 = vmatpush1.msra.mxu0 %v294
    %603 = vmatprep.subr.mxu0 %v299
    %604 = vmatpush1.msra.mxu0 %v298
    %605 = vmatprep.subr.mxu0 %v303
    %606 = vmatpush1.msra.mxu0 %v302
    %607 = vmatprep.subr.mxu0 %v307
    %608 = vmatpush1.msra.mxu0 %v306
    %609 = vmatprep.subr.mxu0 %v311
    %610 = vmatpush1.msra.mxu0 %v310
    %611 = vmatprep.subr.mxu0 %v315
    %612 = vmatpush1.msra.mxu0 %v314
    %613 = vmatprep.mubr.f32.mxu0 %v475
    %614 = vmatmul.mubr.f32.gmra.mrb[0].mxu0 %v474
    %v615 = vpop.f32.mrb[0].mxu0
    %v616 = vadd.f32 %v463, %v615
    %v617 = vpop.f32.mrb[0].mxu0
    %v618 = vadd.f32 %v465, %v617
    %619 = vdwg.mxu0
    %v620 = vld [vmem:[#allocation8] sm:$0xf]
    %v622 = vlaneseq
    %v623 = vshrl.u32 %v622, 7
    %v624 = vsub.s32 0, %v623
    %v625 = vrot.slane %v620, %v624
    %v626 = vlaneseq
    %v627 = vshrl.u32 %v626, 7
    %v628 = vsub.s32 1, %v627
    %v629 = vrot.slane %v620, %v628
    %v630 = vlaneseq
    %v631 = vshrl.u32 %v630, 7
    %v632 = vsub.s32 2, %v631
    %v633 = vrot.slane %v620, %v632
    %v634 = vlaneseq
    %v635 = vshrl.u32 %v634, 7
    %v636 = vsub.s32 3, %v635
    %v637 = vrot.slane %v620, %v636
    %v642 = vadd.f32 %v545, %v625
    %v643 = vadd.f32 %v547, %v629
    %v644 = vadd.f32 %v616, %v633
    %v645 = vadd.f32 %v618, %v637
    %v646 = vmax.f32 %v642, 0.0
    %v647 = vmax.f32 %v643, 0.0
    %v648 = vmax.f32 %v644, 0.0
    %v649 = vmax.f32 %v645, 0.0
    %v650 = vld [vmem:[#allocation10] sm:$0xff]
    %v651 = vld [vmem:[#allocation10 + $0x8] sm:$0xff]
    %v652 = vld [vmem:[#allocation10 + $0x10] sm:$0xff]
    %v653 = vld [vmem:[#allocation10 + $0x18] sm:$0xff]
    %v654 = vld [vmem:[#allocation10 + $0x20] sm:$0xff]
    %v655 = vld [vmem:[#allocation10 + $0x28] sm:$0xff]
    %v656 = vld [vmem:[#allocation10 + $0x30] sm:$0xff]
    %v657 = vld [vmem:[#allocation10 + $0x38] sm:$0xff]
    %v658 = vld [vmem:[#allocation10 + $0x40] sm:$0xff]
    %v659 = vld [vmem:[#allocation10 + $0x48] sm:$0xff]
    %v660 = vld [vmem:[#allocation10 + $0x50] sm:$0xff]
    %v661 = vld [vmem:[#allocation10 + $0x58] sm:$0xff]
    %v662 = vld [vmem:[#allocation10 + $0x60] sm:$0xff]
    %v663 = vld [vmem:[#allocation10 + $0x68] sm:$0xff]
    %v664 = vld [vmem:[#allocation10 + $0x70] sm:$0xff]
    %v665 = vld [vmem:[#allocation10 + $0x78] sm:$0xff]
    %v666 = vld [vmem:[#allocation10 + $0x80] sm:$0xff]
    %v667 = vld [vmem:[#allocation10 + $0x88] sm:$0xff]
    %v668 = vld [vmem:[#allocation10 + $0x90] sm:$0xff]
    %v669 = vld [vmem:[#allocation10 + $0x98] sm:$0xff]
    %v670 = vld [vmem:[#allocation10 + $0xa0] sm:$0xff]
    %v671 = vld [vmem:[#allocation10 + $0xa8] sm:$0xff]
    %v672 = vld [vmem:[#allocation10 + $0xb0] sm:$0xff]
    %v673 = vld [vmem:[#allocation10 + $0xb8] sm:$0xff]
    %v674 = vld [vmem:[#allocation10 + $0xc0] sm:$0xff]
    %v675 = vld [vmem:[#allocation10 + $0xc8] sm:$0xff]
    %v676 = vld [vmem:[#allocation10 + $0xd0] sm:$0xff]
    %v677 = vld [vmem:[#allocation10 + $0xd8] sm:$0xff]
    %v678 = vld [vmem:[#allocation10 + $0xe0] sm:$0xff]
    %v679 = vld [vmem:[#allocation10 + $0xe8] sm:$0xff]
    %v680 = vld [vmem:[#allocation10 + $0xf0] sm:$0xff]
    %v681 = vld [vmem:[#allocation10 + $0xf8] sm:$0xff]
    %v682 = vld [vmem:[#allocation10 + $0x100] sm:$0xff]
    %v683 = vld [vmem:[#allocation10 + $0x108] sm:$0xff]
    %v684 = vld [vmem:[#allocation10 + $0x110] sm:$0xff]
    %v685 = vld [vmem:[#allocation10 + $0x118] sm:$0xff]
    %v686 = vld [vmem:[#allocation10 + $0x120] sm:$0xff]
    %v687 = vld [vmem:[#allocation10 + $0x128] sm:$0xff]
    %v688 = vld [vmem:[#allocation10 + $0x130] sm:$0xff]
    %v689 = vld [vmem:[#allocation10 + $0x138] sm:$0xff]
    %v690 = vld [vmem:[#allocation10 + $0x140] sm:$0xff]
    %v691 = vld [vmem:[#allocation10 + $0x148] sm:$0xff]
    %v692 = vld [vmem:[#allocation10 + $0x150] sm:$0xff]
    %v693 = vld [vmem:[#allocation10 + $0x158] sm:$0xff]
    %v694 = vld [vmem:[#allocation10 + $0x160] sm:$0xff]
    %v695 = vld [vmem:[#allocation10 + $0x168] sm:$0xff]
    %v696 = vld [vmem:[#allocation10 + $0x170] sm:$0xff]
    %v697 = vld [vmem:[#allocation10 + $0x178] sm:$0xff]
    %v698 = vld [vmem:[#allocation10 + $0x180] sm:$0xff]
    %v699 = vld [vmem:[#allocation10 + $0x188] sm:$0xff]
    %v700 = vld [vmem:[#allocation10 + $0x190] sm:$0xff]
    %v701 = vld [vmem:[#allocation10 + $0x198] sm:$0xff]
    %v702 = vld [vmem:[#allocation10 + $0x1a0] sm:$0xff]
    %v703 = vld [vmem:[#allocation10 + $0x1a8] sm:$0xff]
    %v704 = vld [vmem:[#allocation10 + $0x1b0] sm:$0xff]
    %v705 = vld [vmem:[#allocation10 + $0x1b8] sm:$0xff]
    %v706 = vld [vmem:[#allocation10 + $0x1c0] sm:$0xff]
    %v707 = vld [vmem:[#allocation10 + $0x1c8] sm:$0xff]
    %v708 = vld [vmem:[#allocation10 + $0x1d0] sm:$0xff]
    %v709 = vld [vmem:[#allocation10 + $0x1d8] sm:$0xff]
    %v710 = vld [vmem:[#allocation10 + $0x1e0] sm:$0xff]
    %v711 = vld [vmem:[#allocation10 + $0x1e8] sm:$0xff]
    %v712 = vld [vmem:[#allocation10 + $0x1f0] sm:$0xff]
    %v713 = vld [vmem:[#allocation10 + $0x1f8] sm:$0xff]
    %v714 = vld [vmem:[#allocation10 + $0x200] sm:$0xff]
    %v715 = vld [vmem:[#allocation10 + $0x208] sm:$0xff]
    %v716 = vld [vmem:[#allocation10 + $0x210] sm:$0xff]
    %v717 = vld [vmem:[#allocation10 + $0x218] sm:$0xff]
    %v718 = vld [vmem:[#allocation10 + $0x220] sm:$0xff]
    %v719 = vld [vmem:[#allocation10 + $0x228] sm:$0xff]
    %v720 = vld [vmem:[#allocation10 + $0x230] sm:$0xff]
    %v721 = vld [vmem:[#allocation10 + $0x238] sm:$0xff]
    %v722 = vld [vmem:[#allocation10 + $0x240] sm:$0xff]
    %v723 = vld [vmem:[#allocation10 + $0x248] sm:$0xff]
    %v724 = vld [vmem:[#allocation10 + $0x250] sm:$0xff]
    %v725 = vld [vmem:[#allocation10 + $0x258] sm:$0xff]
    %v726 = vld [vmem:[#allocation10 + $0x260] sm:$0xff]
    %v727 = vld [vmem:[#allocation10 + $0x268] sm:$0xff]
    %v728 = vld [vmem:[#allocation10 + $0x270] sm:$0xff]
    %v729 = vld [vmem:[#allocation10 + $0x278] sm:$0xff]
    %v730 = vld [vmem:[#allocation10 + $0x280] sm:$0xff]
    %v731 = vld [vmem:[#allocation10 + $0x288] sm:$0xff]
    %v732 = vld [vmem:[#allocation10 + $0x290] sm:$0xff]
    %v733 = vld [vmem:[#allocation10 + $0x298] sm:$0xff]
    %v734 = vld [vmem:[#allocation10 + $0x2a0] sm:$0xff]
    %v735 = vld [vmem:[#allocation10 + $0x2a8] sm:$0xff]
    %v736 = vld [vmem:[#allocation10 + $0x2b0] sm:$0xff]
    %v737 = vld [vmem:[#allocation10 + $0x2b8] sm:$0xff]
    %v738 = vld [vmem:[#allocation10 + $0x2c0] sm:$0xff]
    %v739 = vld [vmem:[#allocation10 + $0x2c8] sm:$0xff]
    %v740 = vld [vmem:[#allocation10 + $0x2d0] sm:$0xff]
    %v741 = vld [vmem:[#allocation10 + $0x2d8] sm:$0xff]
    %v742 = vld [vmem:[#allocation10 + $0x2e0] sm:$0xff]
    %v743 = vld [vmem:[#allocation10 + $0x2e8] sm:$0xff]
    %v744 = vld [vmem:[#allocation10 + $0x2f0] sm:$0xff]
    %v745 = vld [vmem:[#allocation10 + $0x2f8] sm:$0xff]
    %v746 = vld [vmem:[#allocation10 + $0x300] sm:$0xff]
    %v747 = vld [vmem:[#allocation10 + $0x308] sm:$0xff]
    %v748 = vld [vmem:[#allocation10 + $0x310] sm:$0xff]
    %v749 = vld [vmem:[#allocation10 + $0x318] sm:$0xff]
    %v750 = vld [vmem:[#allocation10 + $0x320] sm:$0xff]
    %v751 = vld [vmem:[#allocation10 + $0x328] sm:$0xff]
    %v752 = vld [vmem:[#allocation10 + $0x330] sm:$0xff]
    %v753 = vld [vmem:[#allocation10 + $0x338] sm:$0xff]
    %v754 = vld [vmem:[#allocation10 + $0x340] sm:$0xff]
    %v755 = vld [vmem:[#allocation10 + $0x348] sm:$0xff]
    %v756 = vld [vmem:[#allocation10 + $0x350] sm:$0xff]
    %v757 = vld [vmem:[#allocation10 + $0x358] sm:$0xff]
    %v758 = vld [vmem:[#allocation10 + $0x360] sm:$0xff]
    %v759 = vld [vmem:[#allocation10 + $0x368] sm:$0xff]
    %v760 = vld [vmem:[#allocation10 + $0x370] sm:$0xff]
    %v761 = vld [vmem:[#allocation10 + $0x378] sm:$0xff]
    %v762 = vld [vmem:[#allocation10 + $0x380] sm:$0xff]
    %v763 = vld [vmem:[#allocation10 + $0x388] sm:$0xff]
    %v764 = vld [vmem:[#allocation10 + $0x390] sm:$0xff]
    %v765 = vld [vmem:[#allocation10 + $0x398] sm:$0xff]
    %v766 = vld [vmem:[#allocation10 + $0x3a0] sm:$0xff]
    %v767 = vld [vmem:[#allocation10 + $0x3a8] sm:$0xff]
    %v768 = vld [vmem:[#allocation10 + $0x3b0] sm:$0xff]
    %v769 = vld [vmem:[#allocation10 + $0x3b8] sm:$0xff]
    %v770 = vld [vmem:[#allocation10 + $0x3c0] sm:$0xff]
    %v771 = vld [vmem:[#allocation10 + $0x3c8] sm:$0xff]
    %v772 = vld [vmem:[#allocation10 + $0x3d0] sm:$0xff]
    %v773 = vld [vmem:[#allocation10 + $0x3d8] sm:$0xff]
    %v774 = vld [vmem:[#allocation10 + $0x3e0] sm:$0xff]
    %v775 = vld [vmem:[#allocation10 + $0x3e8] sm:$0xff]
    %v776 = vld [vmem:[#allocation10 + $0x3f0] sm:$0xff]
    %v777 = vld [vmem:[#allocation10 + $0x3f8] sm:$0xff]
    %v778 = vld [vmem:[#allocation10 + $0x400] sm:$0xff]
    %v779 = vld [vmem:[#allocation10 + $0x408] sm:$0xff]
    %v780 = vld [vmem:[#allocation10 + $0x410] sm:$0xff]
    %v781 = vld [vmem:[#allocation10 + $0x418] sm:$0xff]
    %v782 = vld [vmem:[#allocation10 + $0x420] sm:$0xff]
    %v783 = vld [vmem:[#allocation10 + $0x428] sm:$0xff]
    %v784 = vld [vmem:[#allocation10 + $0x430] sm:$0xff]
    %v785 = vld [vmem:[#allocation10 + $0x438] sm:$0xff]
    %v786 = vld [vmem:[#allocation10 + $0x440] sm:$0xff]
    %v787 = vld [vmem:[#allocation10 + $0x448] sm:$0xff]
    %v788 = vld [vmem:[#allocation10 + $0x450] sm:$0xff]
    %v789 = vld [vmem:[#allocation10 + $0x458] sm:$0xff]
    %v790 = vld [vmem:[#allocation10 + $0x460] sm:$0xff]
    %v791 = vld [vmem:[#allocation10 + $0x468] sm:$0xff]
    %v792 = vld [vmem:[#allocation10 + $0x470] sm:$0xff]
    %v793 = vld [vmem:[#allocation10 + $0x478] sm:$0xff]
    %v794 = vld [vmem:[#allocation10 + $0x480] sm:$0xff]
    %v795 = vld [vmem:[#allocation10 + $0x488] sm:$0xff]
    %v796 = vld [vmem:[#allocation10 + $0x490] sm:$0xff]
    %v797 = vld [vmem:[#allocation10 + $0x498] sm:$0xff]
    %v798 = vld [vmem:[#allocation10 + $0x4a0] sm:$0xff]
    %v799 = vld [vmem:[#allocation10 + $0x4a8] sm:$0xff]
    %v800 = vld [vmem:[#allocation10 + $0x4b0] sm:$0xff]
    %v801 = vld [vmem:[#allocation10 + $0x4b8] sm:$0xff]
    %v802 = vld [vmem:[#allocation10 + $0x4c0] sm:$0xff]
    %v803 = vld [vmem:[#allocation10 + $0x4c8] sm:$0xff]
    %v804 = vld [vmem:[#allocation10 + $0x4d0] sm:$0xff]
    %v805 = vld [vmem:[#allocation10 + $0x4d8] sm:$0xff]
    %v806 = vld [vmem:[#allocation10 + $0x4e0] sm:$0xff]
    %v807 = vld [vmem:[#allocation10 + $0x4e8] sm:$0xff]
    %v808 = vld [vmem:[#allocation10 + $0x4f0] sm:$0xff]
    %v809 = vld [vmem:[#allocation10 + $0x4f8] sm:$0xff]
    %v810 = vld [vmem:[#allocation10 + $0x500] sm:$0xff]
    %v811 = vld [vmem:[#allocation10 + $0x508] sm:$0xff]
    %v812 = vld [vmem:[#allocation10 + $0x510] sm:$0xff]
    %v813 = vld [vmem:[#allocation10 + $0x518] sm:$0xff]
    %v814 = vld [vmem:[#allocation10 + $0x520] sm:$0xff]
    %v815 = vld [vmem:[#allocation10 + $0x528] sm:$0xff]
    %v816 = vld [vmem:[#allocation10 + $0x530] sm:$0xff]
    %v817 = vld [vmem:[#allocation10 + $0x538] sm:$0xff]
    %v818 = vld [vmem:[#allocation10 + $0x540] sm:$0xff]
    %v819 = vld [vmem:[#allocation10 + $0x548] sm:$0xff]
    %v820 = vld [vmem:[#allocation10 + $0x550] sm:$0xff]
    %v821 = vld [vmem:[#allocation10 + $0x558] sm:$0xff]
    %v822 = vld [vmem:[#allocation10 + $0x560] sm:$0xff]
    %v823 = vld [vmem:[#allocation10 + $0x568] sm:$0xff]
    %v824 = vld [vmem:[#allocation10 + $0x570] sm:$0xff]
    %v825 = vld [vmem:[#allocation10 + $0x578] sm:$0xff]
    %v826 = vld [vmem:[#allocation10 + $0x580] sm:$0xff]
    %v827 = vld [vmem:[#allocation10 + $0x588] sm:$0xff]
    %v828 = vld [vmem:[#allocation10 + $0x590] sm:$0xff]
    %v829 = vld [vmem:[#allocation10 + $0x598] sm:$0xff]
    %v830 = vld [vmem:[#allocation10 + $0x5a0] sm:$0xff]
    %v831 = vld [vmem:[#allocation10 + $0x5a8] sm:$0xff]
    %v832 = vld [vmem:[#allocation10 + $0x5b0] sm:$0xff]
    %v833 = vld [vmem:[#allocation10 + $0x5b8] sm:$0xff]
    %v834 = vld [vmem:[#allocation10 + $0x5c0] sm:$0xff]
    %v835 = vld [vmem:[#allocation10 + $0x5c8] sm:$0xff]
    %v836 = vld [vmem:[#allocation10 + $0x5d0] sm:$0xff]
    %v837 = vld [vmem:[#allocation10 + $0x5d8] sm:$0xff]
    %v838 = vld [vmem:[#allocation10 + $0x5e0] sm:$0xff]
    %v839 = vld [vmem:[#allocation10 + $0x5e8] sm:$0xff]
    %v840 = vld [vmem:[#allocation10 + $0x5f0] sm:$0xff]
    %v841 = vld [vmem:[#allocation10 + $0x5f8] sm:$0xff]
    %v842 = vld [vmem:[#allocation10 + $0x600] sm:$0xff]
    %v843 = vld [vmem:[#allocation10 + $0x608] sm:$0xff]
    %v844 = vld [vmem:[#allocation10 + $0x610] sm:$0xff]
    %v845 = vld [vmem:[#allocation10 + $0x618] sm:$0xff]
    %v846 = vld [vmem:[#allocation10 + $0x620] sm:$0xff]
    %v847 = vld [vmem:[#allocation10 + $0x628] sm:$0xff]
    %v848 = vld [vmem:[#allocation10 + $0x630] sm:$0xff]
    %v849 = vld [vmem:[#allocation10 + $0x638] sm:$0xff]
    %v850 = vld [vmem:[#allocation10 + $0x640] sm:$0xff]
    %v851 = vld [vmem:[#allocation10 + $0x648] sm:$0xff]
    %v852 = vld [vmem:[#allocation10 + $0x650] sm:$0xff]
    %v853 = vld [vmem:[#allocation10 + $0x658] sm:$0xff]
    %v854 = vld [vmem:[#allocation10 + $0x660] sm:$0xff]
    %v855 = vld [vmem:[#allocation10 + $0x668] sm:$0xff]
    %v856 = vld [vmem:[#allocation10 + $0x670] sm:$0xff]
    %v857 = vld [vmem:[#allocation10 + $0x678] sm:$0xff]
    %v858 = vld [vmem:[#allocation10 + $0x680] sm:$0xff]
    %v859 = vld [vmem:[#allocation10 + $0x688] sm:$0xff]
    %v860 = vld [vmem:[#allocation10 + $0x690] sm:$0xff]
    %v861 = vld [vmem:[#allocation10 + $0x698] sm:$0xff]
    %v862 = vld [vmem:[#allocation10 + $0x6a0] sm:$0xff]
    %v863 = vld [vmem:[#allocation10 + $0x6a8] sm:$0xff]
    %v864 = vld [vmem:[#allocation10 + $0x6b0] sm:$0xff]
    %v865 = vld [vmem:[#allocation10 + $0x6b8] sm:$0xff]
    %v866 = vld [vmem:[#allocation10 + $0x6c0] sm:$0xff]
    %v867 = vld [vmem:[#allocation10 + $0x6c8] sm:$0xff]
    %v868 = vld [vmem:[#allocation10 + $0x6d0] sm:$0xff]
    %v869 = vld [vmem:[#allocation10 + $0x6d8] sm:$0xff]
    %v870 = vld [vmem:[#allocation10 + $0x6e0] sm:$0xff]
    %v871 = vld [vmem:[#allocation10 + $0x6e8] sm:$0xff]
    %v872 = vld [vmem:[#allocation10 + $0x6f0] sm:$0xff]
    %v873 = vld [vmem:[#allocation10 + $0x6f8] sm:$0xff]
    %v874 = vld [vmem:[#allocation10 + $0x700] sm:$0xff]
    %v875 = vld [vmem:[#allocation10 + $0x708] sm:$0xff]
    %v876 = vld [vmem:[#allocation10 + $0x710] sm:$0xff]
    %v877 = vld [vmem:[#allocation10 + $0x718] sm:$0xff]
    %v878 = vld [vmem:[#allocation10 + $0x720] sm:$0xff]
    %v879 = vld [vmem:[#allocation10 + $0x728] sm:$0xff]
    %v880 = vld [vmem:[#allocation10 + $0x730] sm:$0xff]
    %v881 = vld [vmem:[#allocation10 + $0x738] sm:$0xff]
    %v882 = vld [vmem:[#allocation10 + $0x740] sm:$0xff]
    %v883 = vld [vmem:[#allocation10 + $0x748] sm:$0xff]
    %v884 = vld [vmem:[#allocation10 + $0x750] sm:$0xff]
    %v885 = vld [vmem:[#allocation10 + $0x758] sm:$0xff]
    %v886 = vld [vmem:[#allocation10 + $0x760] sm:$0xff]
    %v887 = vld [vmem:[#allocation10 + $0x768] sm:$0xff]
    %v888 = vld [vmem:[#allocation10 + $0x770] sm:$0xff]
    %v889 = vld [vmem:[#allocation10 + $0x778] sm:$0xff]
    %v890 = vld [vmem:[#allocation10 + $0x780] sm:$0xff]
    %v891 = vld [vmem:[#allocation10 + $0x788] sm:$0xff]
    %v892 = vld [vmem:[#allocation10 + $0x790] sm:$0xff]
    %v893 = vld [vmem:[#allocation10 + $0x798] sm:$0xff]
    %v894 = vld [vmem:[#allocation10 + $0x7a0] sm:$0xff]
    %v895 = vld [vmem:[#allocation10 + $0x7a8] sm:$0xff]
    %v896 = vld [vmem:[#allocation10 + $0x7b0] sm:$0xff]
    %v897 = vld [vmem:[#allocation10 + $0x7b8] sm:$0xff]
    %v898 = vld [vmem:[#allocation10 + $0x7c0] sm:$0xff]
    %v899 = vld [vmem:[#allocation10 + $0x7c8] sm:$0xff]
    %v900 = vld [vmem:[#allocation10 + $0x7d0] sm:$0xff]
    %v901 = vld [vmem:[#allocation10 + $0x7d8] sm:$0xff]
    %v902 = vld [vmem:[#allocation10 + $0x7e0] sm:$0xff]
    %v903 = vld [vmem:[#allocation10 + $0x7e8] sm:$0xff]
    %v904 = vld [vmem:[#allocation10 + $0x7f0] sm:$0xff]
    %v905 = vld [vmem:[#allocation10 + $0x7f8] sm:$0xff]
    %v906 = vld [vmem:[#allocation11] sm:$0xf]
    %v908 = vlaneseq
    %v909 = vshrl.u32 %v908, 7
    %v910 = vsub.s32 0, %v909
    %v911 = vrot.slane %v906, %v910
    %v912 = vlaneseq
    %v913 = vshrl.u32 %v912, 7
    %v914 = vsub.s32 1, %v913
    %v915 = vrot.slane %v906, %v914
    %v916 = vlaneseq
    %v917 = vshrl.u32 %v916, 7
    %v918 = vsub.s32 2, %v917
    %v919 = vrot.slane %v906, %v918
    %v920 = vlaneseq
    %v921 = vshrl.u32 %v920, 7
    %v922 = vsub.s32 3, %v921
    %v923 = vrot.slane %v906, %v922
    %928 = vmatprep.subr.mxu0 %v651
    %929 = vmatpush1.msra.mxu0 %v650
    %930 = vmatprep.subr.mxu0 %v655
    %931 = vmatpush1.msra.mxu0 %v654
    %932 = vmatprep.subr.mxu0 %v659
    %933 = vmatpush1.msra.mxu0 %v658
    %934 = vmatprep.subr.mxu0 %v663
    %935 = vmatpush1.msra.mxu0 %v662
    %936 = vmatprep.subr.mxu0 %v667
    %937 = vmatpush1.msra.mxu0 %v666
    %938 = vmatprep.subr.mxu0 %v671
    %939 = vmatpush1.msra.mxu0 %v670
    %940 = vmatprep.subr.mxu0 %v675
    %941 = vmatpush1.msra.mxu0 %v674
    %942 = vmatprep.subr.mxu0 %v679
    %943 = vmatpush1.msra.mxu0 %v678
    %944 = vmatprep.subr.mxu0 %v683
    %945 = vmatpush1.msra.mxu0 %v682
    %946 = vmatprep.subr.mxu0 %v687
    %947 = vmatpush1.msra.mxu0 %v686
    %948 = vmatprep.subr.mxu0 %v691
    %949 = vmatpush1.msra.mxu0 %v690
    %950 = vmatprep.subr.mxu0 %v695
    %951 = vmatpush1.msra.mxu0 %v694
    %952 = vmatprep.subr.mxu0 %v699
    %953 = vmatpush1.msra.mxu0 %v698
    %954 = vmatprep.subr.mxu0 %v703
    %955 = vmatpush1.msra.mxu0 %v702
    %956 = vmatprep.subr.mxu0 %v707
    %957 = vmatpush1.msra.mxu0 %v706
    %958 = vmatprep.subr.mxu0 %v711
    %959 = vmatpush1.msra.mxu0 %v710
    %960 = vmatprep.subr.mxu0 %v715
    %961 = vmatpush1.msra.mxu0 %v714
    %962 = vmatprep.subr.mxu0 %v719
    %963 = vmatpush1.msra.mxu0 %v718
    %964 = vmatprep.subr.mxu0 %v723
    %965 = vmatpush1.msra.mxu0 %v722
    %966 = vmatprep.subr.mxu0 %v727
    %967 = vmatpush1.msra.mxu0 %v726
    %968 = vmatprep.subr.mxu0 %v731
    %969 = vmatpush1.msra.mxu0 %v730
    %970 = vmatprep.subr.mxu0 %v735
    %971 = vmatpush1.msra.mxu0 %v734
    %972 = vmatprep.subr.mxu0 %v739
    %973 = vmatpush1.msra.mxu0 %v738
    %974 = vmatprep.subr.mxu0 %v743
    %975 = vmatpush1.msra.mxu0 %v742
    %976 = vmatprep.subr.mxu0 %v747
    %977 = vmatpush1.msra.mxu0 %v746
    %978 = vmatprep.subr.mxu0 %v751
    %979 = vmatpush1.msra.mxu0 %v750
    %980 = vmatprep.subr.mxu0 %v755
    %981 = vmatpush1.msra.mxu0 %v754
    %982 = vmatprep.subr.mxu0 %v759
    %983 = vmatpush1.msra.mxu0 %v758
    %984 = vmatprep.subr.mxu0 %v763
    %985 = vmatpush1.msra.mxu0 %v762
    %986 = vmatprep.subr.mxu0 %v767
    %987 = vmatpush1.msra.mxu0 %v766
    %988 = vmatprep.subr.mxu0 %v771
    %989 = vmatpush1.msra.mxu0 %v770
    %990 = vmatprep.subr.mxu0 %v775
    %991 = vmatpush1.msra.mxu0 %v774
    %992 = vmatprep.mubr.f32.mxu0 %v647
    %993 = vmatmul.mubr.f32.gmra.mrb[0].mxu0 %v646
    %v994 = vpop.f32.mrb[0].mxu0
    %v995 = vadd.f32 %v911, %v994
    %v996 = vpop.f32.mrb[0].mxu0
    %v997 = vadd.f32 %v915, %v996
    %998 = vdwg.mxu0
    %999 = vmatprep.subr.mxu0 %v779
    %1000 = vmatpush1.msra.mxu0 %v778
    %1001 = vmatprep.subr.mxu0 %v783
    %1002 = vmatpush1.msra.mxu0 %v782
    %1003 = vmatprep.subr.mxu0 %v787
    %1004 = vmatpush1.msra.mxu0 %v786
    %1005 = vmatprep.subr.mxu0 %v791
    %1006 = vmatpush1.msra.mxu0 %v790
    %1007 = vmatprep.subr.mxu0 %v795
    %1008 = vmatpush1.msra.mxu0 %v794
    %1009 = vmatprep.subr.mxu0 %v799
    %1010 = vmatpush1.msra.mxu0 %v798
    %1011 = vmatprep.subr.mxu0 %v803
    %1012 = vmatpush1.msra.mxu0 %v802
    %1013 = vmatprep.subr.mxu0 %v807
    %1014 = vmatpush1.msra.mxu0 %v806
    %1015 = vmatprep.subr.mxu0 %v811
    %1016 = vmatpush1.msra.mxu0 %v810
    %1017 = vmatprep.subr.mxu0 %v815
    %1018 = vmatpush1.msra.mxu0 %v814
    %1019 = vmatprep.subr.mxu0 %v819
    %1020 = vmatpush1.msra.mxu0 %v818
    %1021 = vmatprep.subr.mxu0 %v823
    %1022 = vmatpush1.msra.mxu0 %v822
    %1023 = vmatprep.subr.mxu0 %v827
    %1024 = vmatpush1.msra.mxu0 %v826
    %1025 = vmatprep.subr.mxu0 %v831
    %1026 = vmatpush1.msra.mxu0 %v830
    %1027 = vmatprep.subr.mxu0 %v835
    %1028 = vmatpush1.msra.mxu0 %v834
    %1029 = vmatprep.subr.mxu0 %v839
    %1030 = vmatpush1.msra.mxu0 %v838
    %1031 = vmatprep.subr.mxu0 %v843
    %1032 = vmatpush1.msra.mxu0 %v842
    %1033 = vmatprep.subr.mxu0 %v847
    %1034 = vmatpush1.msra.mxu0 %v846
    %1035 = vmatprep.subr.mxu0 %v851
    %1036 = vmatpush1.msra.mxu0 %v850
    %1037 = vmatprep.subr.mxu0 %v855
    %1038 = vmatpush1.msra.mxu0 %v854
    %1039 = vmatprep.subr.mxu0 %v859
    %1040 = vmatpush1.msra.mxu0 %v858
    %1041 = vmatprep.subr.mxu0 %v863
    %1042 = vmatpush1.msra.mxu0 %v862
    %1043 = vmatprep.subr.mxu0 %v867
    %1044 = vmatpush1.msra.mxu0 %v866
    %1045 = vmatprep.subr.mxu0 %v871
    %1046 = vmatpush1.msra.mxu0 %v870
    %1047 = vmatprep.subr.mxu0 %v875
    %1048 = vmatpush1.msra.mxu0 %v874
    %1049 = vmatprep.subr.mxu0 %v879
    %1050 = vmatpush1.msra.mxu0 %v878
    %1051 = vmatprep.subr.mxu0 %v883
    %1052 = vmatpush1.msra.mxu0 %v882
    %1053 = vmatprep.subr.mxu0 %v887
    %1054 = vmatpush1.msra.mxu0 %v886
    %1055 = vmatprep.subr.mxu0 %v891
    %1056 = vmatpush1.msra.mxu0 %v890
    %1057 = vmatprep.subr.mxu0 %v895
    %1058 = vmatpush1.msra.mxu0 %v894
    %1059 = vmatprep.subr.mxu0 %v899
    %1060 = vmatpush1.msra.mxu0 %v898
    %1061 = vmatprep.subr.mxu0 %v903
    %1062 = vmatpush1.msra.mxu0 %v902
    %1063 = vmatprep.mubr.f32.mxu0 %v649
    %1064 = vmatmul.mubr.f32.gmra.mrb[0].mxu0 %v648
    %v1065 = vpop.f32.mrb[0].mxu0
    %v1066 = vadd.f32 %v995, %v1065
    %v1067 = vpop.f32.mrb[0].mxu0
    %v1068 = vadd.f32 %v997, %v1067
    %1069 = vdwg.mxu0
    %1070 = vmatprep.subr.mxu0 %v653
    %1071 = vmatpush1.msra.mxu0 %v652
    %1072 = vmatprep.subr.mxu0 %v657
    %1073 = vmatpush1.msra.mxu0 %v656
    %1074 = vmatprep.subr.mxu0 %v661
    %1075 = vmatpush1.msra.mxu0 %v660
    %1076 = vmatprep.subr.mxu0 %v665
    %1077 = vmatpush1.msra.mxu0 %v664
    %1078 = vmatprep.subr.mxu0 %v669
    %1079 = vmatpush1.msra.mxu0 %v668
    %1080 = vmatprep.subr.mxu0 %v673
    %1081 = vmatpush1.msra.mxu0 %v672
    %1082 = vmatprep.subr.mxu0 %v677
    %1083 = vmatpush1.msra.mxu0 %v676
    %1084 = vmatprep.subr.mxu0 %v681
    %1085 = vmatpush1.msra.mxu0 %v680
    %1086 = vmatprep.subr.mxu0 %v685
    %1087 = vmatpush1.msra.mxu0 %v684
    %1088 = vmatprep.subr.mxu0 %v689
    %1089 = vmatpush1.msra.mxu0 %v688
    %1090 = vmatprep.subr.mxu0 %v693
    %1091 = vmatpush1.msra.mxu0 %v692
    %1092 = vmatprep.subr.mxu0 %v697
    %1093 = vmatpush1.msra.mxu0 %v696
    %1094 = vmatprep.subr.mxu0 %v701
    %1095 = vmatpush1.msra.mxu0 %v700
    %1096 = vmatprep.subr.mxu0 %v705
    %1097 = vmatpush1.msra.mxu0 %v704
    %1098 = vmatprep.subr.mxu0 %v709
    %1099 = vmatpush1.msra.mxu0 %v708
    %1100 = vmatprep.subr.mxu0 %v713
    %1101 = vmatpush1.msra.mxu0 %v712
    %1102 = vmatprep.subr.mxu0 %v717
    %1103 = vmatpush1.msra.mxu0 %v716
    %1104 = vmatprep.subr.mxu0 %v721
    %1105 = vmatpush1.msra.mxu0 %v720
    %1106 = vmatprep.subr.mxu0 %v725
    %1107 = vmatpush1.msra.mxu0 %v724
    %1108 = vmatprep.subr.mxu0 %v729
    %1109 = vmatpush1.msra.mxu0 %v728
    %1110 = vmatprep.subr.mxu0 %v733
    %1111 = vmatpush1.msra.mxu0 %v732
    %1112 = vmatprep.subr.mxu0 %v737
    %1113 = vmatpush1.msra.mxu0 %v736
    %1114 = vmatprep.subr.mxu0 %v741
    %1115 = vmatpush1.msra.mxu0 %v740
    %1116 = vmatprep.subr.mxu0 %v745
    %1117 = vmatpush1.msra.mxu0 %v744
    %1118 = vmatprep.subr.mxu0 %v749
    %1119 = vmatpush1.msra.mxu0 %v748
    %1120 = vmatprep.subr.mxu0 %v753
    %1121 = vmatpush1.msra.mxu0 %v752
    %1122 = vmatprep.subr.mxu0 %v757
    %1123 = vmatpush1.msra.mxu0 %v756
    %1124 = vmatprep.subr.mxu0 %v761
    %1125 = vmatpush1.msra.mxu0 %v760
    %1126 = vmatprep.subr.mxu0 %v765
    %1127 = vmatpush1.msra.mxu0 %v764
    %1128 = vmatprep.subr.mxu0 %v769
    %1129 = vmatpush1.msra.mxu0 %v768
    %1130 = vmatprep.subr.mxu0 %v773
    %1131 = vmatpush1.msra.mxu0 %v772
    %1132 = vmatprep.subr.mxu0 %v777
    %1133 = vmatpush1.msra.mxu0 %v776
    %1134 = vmatprep.mubr.f32.mxu0 %v647
    %1135 = vmatmul.mubr.f32.gmra.mrb[0].mxu0 %v646
    %v1136 = vpop.f32.mrb[0].mxu0
    %v1137 = vadd.f32 %v919, %v1136
    %v1138 = vpop.f32.mrb[0].mxu0
    %v1139 = vadd.f32 %v923, %v1138
    %1140 = vdwg.mxu0
    %1141 = vmatprep.subr.mxu0 %v781
    %1142 = vmatpush1.msra.mxu0 %v780
    %1143 = vmatprep.subr.mxu0 %v785
    %1144 = vmatpush1.msra.mxu0 %v784
    %1145 = vmatprep.subr.mxu0 %v789
    %1146 = vmatpush1.msra.mxu0 %v788
    %1147 = vmatprep.subr.mxu0 %v793
    %1148 = vmatpush1.msra.mxu0 %v792
    %1149 = vmatprep.subr.mxu0 %v797
    %1150 = vmatpush1.msra.mxu0 %v796
    %1151 = vmatprep.subr.mxu0 %v801
    %1152 = vmatpush1.msra.mxu0 %v800
    %1153 = vmatprep.subr.mxu0 %v805
    %1154 = vmatpush1.msra.mxu0 %v804
    %1155 = vmatprep.subr.mxu0 %v809
    %1156 = vmatpush1.msra.mxu0 %v808
    %1157 = vmatprep.subr.mxu0 %v813
    %1158 = vmatpush1.msra.mxu0 %v812
    %1159 = vmatprep.subr.mxu0 %v817
    %1160 = vmatpush1.msra.mxu0 %v816
    %1161 = vmatprep.subr.mxu0 %v821
    %1162 = vmatpush1.msra.mxu0 %v820
    %1163 = vmatprep.subr.mxu0 %v825
    %1164 = vmatpush1.msra.mxu0 %v824
    %1165 = vmatprep.subr.mxu0 %v829
    %1166 = vmatpush1.msra.mxu0 %v828
    %1167 = vmatprep.subr.mxu0 %v833
    %1168 = vmatpush1.msra.mxu0 %v832
    %1169 = vmatprep.subr.mxu0 %v837
    %1170 = vmatpush1.msra.mxu0 %v836
    %1171 = vmatprep.subr.mxu0 %v841
    %1172 = vmatpush1.msra.mxu0 %v840
    %1173 = vmatprep.subr.mxu0 %v845
    %1174 = vmatpush1.msra.mxu0 %v844
    %1175 = vmatprep.subr.mxu0 %v849
    %1176 = vmatpush1.msra.mxu0 %v848
    %1177 = vmatprep.subr.mxu0 %v853
    %1178 = vmatpush1.msra.mxu0 %v852
    %1179 = vmatprep.subr.mxu0 %v857
    %1180 = vmatpush1.msra.mxu0 %v856
    %1181 = vmatprep.subr.mxu0 %v861
    %1182 = vmatpush1.msra.mxu0 %v860
    %1183 = vmatprep.subr.mxu0 %v865
    %1184 = vmatpush1.msra.mxu0 %v864
    %1185 = vmatprep.subr.mxu0 %v869
    %1186 = vmatpush1.msra.mxu0 %v868
    %1187 = vmatprep.subr.mxu0 %v873
    %1188 = vmatpush1.msra.mxu0 %v872
    %1189 = vmatprep.subr.mxu0 %v877
    %1190 = vmatpush1.msra.mxu0 %v876
    %1191 = vmatprep.subr.mxu0 %v881
    %1192 = vmatpush1.msra.mxu0 %v880
    %1193 = vmatprep.subr.mxu0 %v885
    %1194 = vmatpush1.msra.mxu0 %v884
    %1195 = vmatprep.subr.mxu0 %v889
    %1196 = vmatpush1.msra.mxu0 %v888
    %1197 = vmatprep.subr.mxu0 %v893
    %1198 = vmatpush1.msra.mxu0 %v892
    %1199 = vmatprep.subr.mxu0 %v897
    %1200 = vmatpush1.msra.mxu0 %v896
    %1201 = vmatprep.subr.mxu0 %v901
    %1202 = vmatpush1.msra.mxu0 %v900
    %1203 = vmatprep.subr.mxu0 %v905
    %1204 = vmatpush1.msra.mxu0 %v904
    %1205 = vmatprep.mubr.f32.mxu0 %v649
    %1206 = vmatmul.mubr.f32.gmra.mrb[0].mxu0 %v648
    %v1207 = vpop.f32.mrb[0].mxu0
    %v1208 = vadd.f32 %v1137, %v1207
    %v1209 = vpop.f32.mrb[0].mxu0
    %v1210 = vadd.f32 %v1139, %v1209
    %1211 = vdwg.mxu0
    %v1212 = vmax.f32 %v1066, 0.0
    %v1213 = vmax.f32 %v1068, 0.0
    %v1214 = vmax.f32 %v1208, 0.0
    %v1215 = vmax.f32 %v1210, 0.0
    %v1216 = vld [vmem:[#allocation13] sm:$0xff]
    %v1217 = vld [vmem:[#allocation13 + $0x8] sm:$0xff]
    %v1218 = vld [vmem:[#allocation13 + $0x10] sm:$0xff]
    %v1219 = vld [vmem:[#allocation13 + $0x18] sm:$0xff]
    %v1220 = vld [vmem:[#allocation13 + $0x20] sm:$0xff]
    %v1221 = vld [vmem:[#allocation13 + $0x28] sm:$0xff]
    %v1222 = vld [vmem:[#allocation13 + $0x30] sm:$0xff]
    %v1223 = vld [vmem:[#allocation13 + $0x38] sm:$0xff]
    %v1224 = vld [vmem:[#allocation13 + $0x40] sm:$0xff]
    %v1225 = vld [vmem:[#allocation13 + $0x48] sm:$0xff]
    %v1226 = vld [vmem:[#allocation13 + $0x50] sm:$0xff]
    %v1227 = vld [vmem:[#allocation13 + $0x58] sm:$0xff]
    %v1228 = vld [vmem:[#allocation13 + $0x60] sm:$0xff]
    %v1229 = vld [vmem:[#allocation13 + $0x68] sm:$0xff]
    %v1230 = vld [vmem:[#allocation13 + $0x70] sm:$0xff]
    %v1231 = vld [vmem:[#allocation13 + $0x78] sm:$0xff]
    %v1232 = vld [vmem:[#allocation13 + $0x80] sm:$0xff]
    %v1233 = vld [vmem:[#allocation13 + $0x88] sm:$0xff]
    %v1234 = vld [vmem:[#allocation13 + $0x90] sm:$0xff]
    %v1235 = vld [vmem:[#allocation13 + $0x98] sm:$0xff]
    %v1236 = vld [vmem:[#allocation13 + $0xa0] sm:$0xff]
    %v1237 = vld [vmem:[#allocation13 + $0xa8] sm:$0xff]
    %v1238 = vld [vmem:[#allocation13 + $0xb0] sm:$0xff]
    %v1239 = vld [vmem:[#allocation13 + $0xb8] sm:$0xff]
    %v1240 = vld [vmem:[#allocation13 + $0xc0] sm:$0xff]
    %v1241 = vld [vmem:[#allocation13 + $0xc8] sm:$0xff]
    %v1242 = vld [vmem:[#allocation13 + $0xd0] sm:$0xff]
    %v1243 = vld [vmem:[#allocation13 + $0xd8] sm:$0xff]
    %v1244 = vld [vmem:[#allocation13 + $0xe0] sm:$0xff]
    %v1245 = vld [vmem:[#allocation13 + $0xe8] sm:$0xff]
    %v1246 = vld [vmem:[#allocation13 + $0xf0] sm:$0xff]
    %v1247 = vld [vmem:[#allocation13 + $0xf8] sm:$0xff]
    %v1248 = vld [vmem:[#allocation13 + $0x100] sm:$0xff]
    %v1249 = vld [vmem:[#allocation13 + $0x108] sm:$0xff]
    %v1250 = vld [vmem:[#allocation13 + $0x110] sm:$0xff]
    %v1251 = vld [vmem:[#allocation13 + $0x118] sm:$0xff]
    %v1252 = vld [vmem:[#allocation13 + $0x120] sm:$0xff]
    %v1253 = vld [vmem:[#allocation13 + $0x128] sm:$0xff]
    %v1254 = vld [vmem:[#allocation13 + $0x130] sm:$0xff]
    %v1255 = vld [vmem:[#allocation13 + $0x138] sm:$0xff]
    %v1256 = vld [vmem:[#allocation13 + $0x140] sm:$0xff]
    %v1257 = vld [vmem:[#allocation13 + $0x148] sm:$0xff]
    %v1258 = vld [vmem:[#allocation13 + $0x150] sm:$0xff]
    %v1259 = vld [vmem:[#allocation13 + $0x158] sm:$0xff]
    %v1260 = vld [vmem:[#allocation13 + $0x160] sm:$0xff]
    %v1261 = vld [vmem:[#allocation13 + $0x168] sm:$0xff]
    %v1262 = vld [vmem:[#allocation13 + $0x170] sm:$0xff]
    %v1263 = vld [vmem:[#allocation13 + $0x178] sm:$0xff]
    %v1264 = vld [vmem:[#allocation13 + $0x180] sm:$0xff]
    %v1265 = vld [vmem:[#allocation13 + $0x188] sm:$0xff]
    %v1266 = vld [vmem:[#allocation13 + $0x190] sm:$0xff]
    %v1267 = vld [vmem:[#allocation13 + $0x198] sm:$0xff]
    %v1268 = vld [vmem:[#allocation13 + $0x1a0] sm:$0xff]
    %v1269 = vld [vmem:[#allocation13 + $0x1a8] sm:$0xff]
    %v1270 = vld [vmem:[#allocation13 + $0x1b0] sm:$0xff]
    %v1271 = vld [vmem:[#allocation13 + $0x1b8] sm:$0xff]
    %v1272 = vld [vmem:[#allocation13 + $0x1c0] sm:$0xff]
    %v1273 = vld [vmem:[#allocation13 + $0x1c8] sm:$0xff]
    %v1274 = vld [vmem:[#allocation13 + $0x1d0] sm:$0xff]
    %v1275 = vld [vmem:[#allocation13 + $0x1d8] sm:$0xff]
    %v1276 = vld [vmem:[#allocation13 + $0x1e0] sm:$0xff]
    %v1277 = vld [vmem:[#allocation13 + $0x1e8] sm:$0xff]
    %v1278 = vld [vmem:[#allocation13 + $0x1f0] sm:$0xff]
    %v1279 = vld [vmem:[#allocation13 + $0x1f8] sm:$0xff]
    %v1280 = vld [vmem:[#allocation13 + $0x200] sm:$0xff]
    %v1281 = vld [vmem:[#allocation13 + $0x208] sm:$0xff]
    %v1282 = vld [vmem:[#allocation13 + $0x210] sm:$0xff]
    %v1283 = vld [vmem:[#allocation13 + $0x218] sm:$0xff]
    %v1284 = vld [vmem:[#allocation13 + $0x220] sm:$0xff]
    %v1285 = vld [vmem:[#allocation13 + $0x228] sm:$0xff]
    %v1286 = vld [vmem:[#allocation13 + $0x230] sm:$0xff]
    %v1287 = vld [vmem:[#allocation13 + $0x238] sm:$0xff]
    %v1288 = vld [vmem:[#allocation13 + $0x240] sm:$0xff]
    %v1289 = vld [vmem:[#allocation13 + $0x248] sm:$0xff]
    %v1290 = vld [vmem:[#allocation13 + $0x250] sm:$0xff]
    %v1291 = vld [vmem:[#allocation13 + $0x258] sm:$0xff]
    %v1292 = vld [vmem:[#allocation13 + $0x260] sm:$0xff]
    %v1293 = vld [vmem:[#allocation13 + $0x268] sm:$0xff]
    %v1294 = vld [vmem:[#allocation13 + $0x270] sm:$0xff]
    %v1295 = vld [vmem:[#allocation13 + $0x278] sm:$0xff]
    %v1296 = vld [vmem:[#allocation13 + $0x280] sm:$0xff]
    %v1297 = vld [vmem:[#allocation13 + $0x288] sm:$0xff]
    %v1298 = vld [vmem:[#allocation13 + $0x290] sm:$0xff]
    %v1299 = vld [vmem:[#allocation13 + $0x298] sm:$0xff]
    %v1300 = vld [vmem:[#allocation13 + $0x2a0] sm:$0xff]
    %v1301 = vld [vmem:[#allocation13 + $0x2a8] sm:$0xff]
    %v1302 = vld [vmem:[#allocation13 + $0x2b0] sm:$0xff]
    %v1303 = vld [vmem:[#allocation13 + $0x2b8] sm:$0xff]
    %v1304 = vld [vmem:[#allocation13 + $0x2c0] sm:$0xff]
    %v1305 = vld [vmem:[#allocation13 + $0x2c8] sm:$0xff]
    %v1306 = vld [vmem:[#allocation13 + $0x2d0] sm:$0xff]
    %v1307 = vld [vmem:[#allocation13 + $0x2d8] sm:$0xff]
    %v1308 = vld [vmem:[#allocation13 + $0x2e0] sm:$0xff]
    %v1309 = vld [vmem:[#allocation13 + $0x2e8] sm:$0xff]
    %v1310 = vld [vmem:[#allocation13 + $0x2f0] sm:$0xff]
    %v1311 = vld [vmem:[#allocation13 + $0x2f8] sm:$0xff]
    %v1312 = vld [vmem:[#allocation13 + $0x300] sm:$0xff]
    %v1313 = vld [vmem:[#allocation13 + $0x308] sm:$0xff]
    %v1314 = vld [vmem:[#allocation13 + $0x310] sm:$0xff]
    %v1315 = vld [vmem:[#allocation13 + $0x318] sm:$0xff]
    %v1316 = vld [vmem:[#allocation13 + $0x320] sm:$0xff]
    %v1317 = vld [vmem:[#allocation13 + $0x328] sm:$0xff]
    %v1318 = vld [vmem:[#allocation13 + $0x330] sm:$0xff]
    %v1319 = vld [vmem:[#allocation13 + $0x338] sm:$0xff]
    %v1320 = vld [vmem:[#allocation13 + $0x340] sm:$0xff]
    %v1321 = vld [vmem:[#allocation13 + $0x348] sm:$0xff]
    %v1322 = vld [vmem:[#allocation13 + $0x350] sm:$0xff]
    %v1323 = vld [vmem:[#allocation13 + $0x358] sm:$0xff]
    %v1324 = vld [vmem:[#allocation13 + $0x360] sm:$0xff]
    %v1325 = vld [vmem:[#allocation13 + $0x368] sm:$0xff]
    %v1326 = vld [vmem:[#allocation13 + $0x370] sm:$0xff]
    %v1327 = vld [vmem:[#allocation13 + $0x378] sm:$0xff]
    %v1328 = vld [vmem:[#allocation13 + $0x380] sm:$0xff]
    %v1329 = vld [vmem:[#allocation13 + $0x388] sm:$0xff]
    %v1330 = vld [vmem:[#allocation13 + $0x390] sm:$0xff]
    %v1331 = vld [vmem:[#allocation13 + $0x398] sm:$0xff]
    %v1332 = vld [vmem:[#allocation13 + $0x3a0] sm:$0xff]
    %v1333 = vld [vmem:[#allocation13 + $0x3a8] sm:$0xff]
    %v1334 = vld [vmem:[#allocation13 + $0x3b0] sm:$0xff]
    %v1335 = vld [vmem:[#allocation13 + $0x3b8] sm:$0xff]
    %v1336 = vld [vmem:[#allocation13 + $0x3c0] sm:$0xff]
    %v1337 = vld [vmem:[#allocation13 + $0x3c8] sm:$0xff]
    %v1338 = vld [vmem:[#allocation13 + $0x3d0] sm:$0xff]
    %v1339 = vld [vmem:[#allocation13 + $0x3d8] sm:$0xff]
    %v1340 = vld [vmem:[#allocation13 + $0x3e0] sm:$0xff]
    %v1341 = vld [vmem:[#allocation13 + $0x3e8] sm:$0xff]
    %v1342 = vld [vmem:[#allocation13 + $0x3f0] sm:$0xff]
    %v1343 = vld [vmem:[#allocation13 + $0x3f8] sm:$0xff]
    %v1344 = vld [vmem:[#allocation13 + $0x400] sm:$0xff]
    %v1345 = vld [vmem:[#allocation13 + $0x408] sm:$0xff]
    %v1346 = vld [vmem:[#allocation13 + $0x410] sm:$0xff]
    %v1347 = vld [vmem:[#allocation13 + $0x418] sm:$0xff]
    %v1348 = vld [vmem:[#allocation13 + $0x420] sm:$0xff]
    %v1349 = vld [vmem:[#allocation13 + $0x428] sm:$0xff]
    %v1350 = vld [vmem:[#allocation13 + $0x430] sm:$0xff]
    %v1351 = vld [vmem:[#allocation13 + $0x438] sm:$0xff]
    %v1352 = vld [vmem:[#allocation13 + $0x440] sm:$0xff]
    %v1353 = vld [vmem:[#allocation13 + $0x448] sm:$0xff]
    %v1354 = vld [vmem:[#allocation13 + $0x450] sm:$0xff]
    %v1355 = vld [vmem:[#allocation13 + $0x458] sm:$0xff]
    %v1356 = vld [vmem:[#allocation13 + $0x460] sm:$0xff]
    %v1357 = vld [vmem:[#allocation13 + $0x468] sm:$0xff]
    %v1358 = vld [vmem:[#allocation13 + $0x470] sm:$0xff]
    %v1359 = vld [vmem:[#allocation13 + $0x478] sm:$0xff]
    %v1360 = vld [vmem:[#allocation13 + $0x480] sm:$0xff]
    %v1361 = vld [vmem:[#allocation13 + $0x488] sm:$0xff]
    %v1362 = vld [vmem:[#allocation13 + $0x490] sm:$0xff]
    %v1363 = vld [vmem:[#allocation13 + $0x498] sm:$0xff]
    %v1364 = vld [vmem:[#allocation13 + $0x4a0] sm:$0xff]
    %v1365 = vld [vmem:[#allocation13 + $0x4a8] sm:$0xff]
    %v1366 = vld [vmem:[#allocation13 + $0x4b0] sm:$0xff]
    %v1367 = vld [vmem:[#allocation13 + $0x4b8] sm:$0xff]
    %v1368 = vld [vmem:[#allocation13 + $0x4c0] sm:$0xff]
    %v1369 = vld [vmem:[#allocation13 + $0x4c8] sm:$0xff]
    %v1370 = vld [vmem:[#allocation13 + $0x4d0] sm:$0xff]
    %v1371 = vld [vmem:[#allocation13 + $0x4d8] sm:$0xff]
    %v1372 = vld [vmem:[#allocation13 + $0x4e0] sm:$0xff]
    %v1373 = vld [vmem:[#allocation13 + $0x4e8] sm:$0xff]
    %v1374 = vld [vmem:[#allocation13 + $0x4f0] sm:$0xff]
    %v1375 = vld [vmem:[#allocation13 + $0x4f8] sm:$0xff]
    %v1376 = vld [vmem:[#allocation13 + $0x500] sm:$0xff]
    %v1377 = vld [vmem:[#allocation13 + $0x508] sm:$0xff]
    %v1378 = vld [vmem:[#allocation13 + $0x510] sm:$0xff]
    %v1379 = vld [vmem:[#allocation13 + $0x518] sm:$0xff]
    %v1380 = vld [vmem:[#allocation13 + $0x520] sm:$0xff]
    %v1381 = vld [vmem:[#allocation13 + $0x528] sm:$0xff]
    %v1382 = vld [vmem:[#allocation13 + $0x530] sm:$0xff]
    %v1383 = vld [vmem:[#allocation13 + $0x538] sm:$0xff]
    %v1384 = vld [vmem:[#allocation13 + $0x540] sm:$0xff]
    %v1385 = vld [vmem:[#allocation13 + $0x548] sm:$0xff]
    %v1386 = vld [vmem:[#allocation13 + $0x550] sm:$0xff]
    %v1387 = vld [vmem:[#allocation13 + $0x558] sm:$0xff]
    %v1388 = vld [vmem:[#allocation13 + $0x560] sm:$0xff]
    %v1389 = vld [vmem:[#allocation13 + $0x568] sm:$0xff]
    %v1390 = vld [vmem:[#allocation13 + $0x570] sm:$0xff]
    %v1391 = vld [vmem:[#allocation13 + $0x578] sm:$0xff]
    %v1392 = vld [vmem:[#allocation13 + $0x580] sm:$0xff]
    %v1393 = vld [vmem:[#allocation13 + $0x588] sm:$0xff]
    %v1394 = vld [vmem:[#allocation13 + $0x590] sm:$0xff]
    %v1395 = vld [vmem:[#allocation13 + $0x598] sm:$0xff]
    %v1396 = vld [vmem:[#allocation13 + $0x5a0] sm:$0xff]
    %v1397 = vld [vmem:[#allocation13 + $0x5a8] sm:$0xff]
    %v1398 = vld [vmem:[#allocation13 + $0x5b0] sm:$0xff]
    %v1399 = vld [vmem:[#allocation13 + $0x5b8] sm:$0xff]
    %v1400 = vld [vmem:[#allocation13 + $0x5c0] sm:$0xff]
    %v1401 = vld [vmem:[#allocation13 + $0x5c8] sm:$0xff]
    %v1402 = vld [vmem:[#allocation13 + $0x5d0] sm:$0xff]
    %v1403 = vld [vmem:[#allocation13 + $0x5d8] sm:$0xff]
    %v1404 = vld [vmem:[#allocation13 + $0x5e0] sm:$0xff]
    %v1405 = vld [vmem:[#allocation13 + $0x5e8] sm:$0xff]
    %v1406 = vld [vmem:[#allocation13 + $0x5f0] sm:$0xff]
    %v1407 = vld [vmem:[#allocation13 + $0x5f8] sm:$0xff]
    %v1408 = vld [vmem:[#allocation13 + $0x600] sm:$0xff]
    %v1409 = vld [vmem:[#allocation13 + $0x608] sm:$0xff]
    %v1410 = vld [vmem:[#allocation13 + $0x610] sm:$0xff]
    %v1411 = vld [vmem:[#allocation13 + $0x618] sm:$0xff]
    %v1412 = vld [vmem:[#allocation13 + $0x620] sm:$0xff]
    %v1413 = vld [vmem:[#allocation13 + $0x628] sm:$0xff]
    %v1414 = vld [vmem:[#allocation13 + $0x630] sm:$0xff]
    %v1415 = vld [vmem:[#allocation13 + $0x638] sm:$0xff]
    %v1416 = vld [vmem:[#allocation13 + $0x640] sm:$0xff]
    %v1417 = vld [vmem:[#allocation13 + $0x648] sm:$0xff]
    %v1418 = vld [vmem:[#allocation13 + $0x650] sm:$0xff]
    %v1419 = vld [vmem:[#allocation13 + $0x658] sm:$0xff]
    %v1420 = vld [vmem:[#allocation13 + $0x660] sm:$0xff]
    %v1421 = vld [vmem:[#allocation13 + $0x668] sm:$0xff]
    %v1422 = vld [vmem:[#allocation13 + $0x670] sm:$0xff]
    %v1423 = vld [vmem:[#allocation13 + $0x678] sm:$0xff]
    %v1424 = vld [vmem:[#allocation13 + $0x680] sm:$0xff]
    %v1425 = vld [vmem:[#allocation13 + $0x688] sm:$0xff]
    %v1426 = vld [vmem:[#allocation13 + $0x690] sm:$0xff]
    %v1427 = vld [vmem:[#allocation13 + $0x698] sm:$0xff]
    %v1428 = vld [vmem:[#allocation13 + $0x6a0] sm:$0xff]
    %v1429 = vld [vmem:[#allocation13 + $0x6a8] sm:$0xff]
    %v1430 = vld [vmem:[#allocation13 + $0x6b0] sm:$0xff]
    %v1431 = vld [vmem:[#allocation13 + $0x6b8] sm:$0xff]
    %v1432 = vld [vmem:[#allocation13 + $0x6c0] sm:$0xff]
    %v1433 = vld [vmem:[#allocation13 + $0x6c8] sm:$0xff]
    %v1434 = vld [vmem:[#allocation13 + $0x6d0] sm:$0xff]
    %v1435 = vld [vmem:[#allocation13 + $0x6d8] sm:$0xff]
    %v1436 = vld [vmem:[#allocation13 + $0x6e0] sm:$0xff]
    %v1437 = vld [vmem:[#allocation13 + $0x6e8] sm:$0xff]
    %v1438 = vld [vmem:[#allocation13 + $0x6f0] sm:$0xff]
    %v1439 = vld [vmem:[#allocation13 + $0x6f8] sm:$0xff]
    %v1440 = vld [vmem:[#allocation13 + $0x700] sm:$0xff]
    %v1441 = vld [vmem:[#allocation13 + $0x708] sm:$0xff]
    %v1442 = vld [vmem:[#allocation13 + $0x710] sm:$0xff]
    %v1443 = vld [vmem:[#allocation13 + $0x718] sm:$0xff]
    %v1444 = vld [vmem:[#allocation13 + $0x720] sm:$0xff]
    %v1445 = vld [vmem:[#allocation13 + $0x728] sm:$0xff]
    %v1446 = vld [vmem:[#allocation13 + $0x730] sm:$0xff]
    %v1447 = vld [vmem:[#allocation13 + $0x738] sm:$0xff]
    %v1448 = vld [vmem:[#allocation13 + $0x740] sm:$0xff]
    %v1449 = vld [vmem:[#allocation13 + $0x748] sm:$0xff]
    %v1450 = vld [vmem:[#allocation13 + $0x750] sm:$0xff]
    %v1451 = vld [vmem:[#allocation13 + $0x758] sm:$0xff]
    %v1452 = vld [vmem:[#allocation13 + $0x760] sm:$0xff]
    %v1453 = vld [vmem:[#allocation13 + $0x768] sm:$0xff]
    %v1454 = vld [vmem:[#allocation13 + $0x770] sm:$0xff]
    %v1455 = vld [vmem:[#allocation13 + $0x778] sm:$0xff]
    %v1456 = vld [vmem:[#allocation13 + $0x780] sm:$0xff]
    %v1457 = vld [vmem:[#allocation13 + $0x788] sm:$0xff]
    %v1458 = vld [vmem:[#allocation13 + $0x790] sm:$0xff]
    %v1459 = vld [vmem:[#allocation13 + $0x798] sm:$0xff]
    %v1460 = vld [vmem:[#allocation13 + $0x7a0] sm:$0xff]
    %v1461 = vld [vmem:[#allocation13 + $0x7a8] sm:$0xff]
    %v1462 = vld [vmem:[#allocation13 + $0x7b0] sm:$0xff]
    %v1463 = vld [vmem:[#allocation13 + $0x7b8] sm:$0xff]
    %v1464 = vld [vmem:[#allocation13 + $0x7c0] sm:$0xff]
    %v1465 = vld [vmem:[#allocation13 + $0x7c8] sm:$0xff]
    %v1466 = vld [vmem:[#allocation13 + $0x7d0] sm:$0xff]
    %v1467 = vld [vmem:[#allocation13 + $0x7d8] sm:$0xff]
    %v1468 = vld [vmem:[#allocation13 + $0x7e0] sm:$0xff]
    %v1469 = vld [vmem:[#allocation13 + $0x7e8] sm:$0xff]
    %v1470 = vld [vmem:[#allocation13 + $0x7f0] sm:$0xff]
    %v1471 = vld [vmem:[#allocation13 + $0x7f8] sm:$0xff]
    %v1472 = vld [vmem:[#allocation13 + $0x800] sm:$0xff]
    %v1473 = vld [vmem:[#allocation13 + $0x808] sm:$0xff]
    %v1474 = vld [vmem:[#allocation13 + $0x810] sm:$0xff]
    %v1475 = vld [vmem:[#allocation13 + $0x818] sm:$0xff]
    %v1476 = vld [vmem:[#allocation13 + $0x820] sm:$0xff]
    %v1477 = vld [vmem:[#allocation13 + $0x828] sm:$0xff]
    %v1478 = vld [vmem:[#allocation13 + $0x830] sm:$0xff]
    %v1479 = vld [vmem:[#allocation13 + $0x838] sm:$0xff]
    %v1480 = vld [vmem:[#allocation13 + $0x840] sm:$0xff]
    %v1481 = vld [vmem:[#allocation13 + $0x848] sm:$0xff]
    %v1482 = vld [vmem:[#allocation13 + $0x850] sm:$0xff]
    %v1483 = vld [vmem:[#allocation13 + $0x858] sm:$0xff]
    %v1484 = vld [vmem:[#allocation13 + $0x860] sm:$0xff]
    %v1485 = vld [vmem:[#allocation13 + $0x868] sm:$0xff]
    %v1486 = vld [vmem:[#allocation13 + $0x870] sm:$0xff]
    %v1487 = vld [vmem:[#allocation13 + $0x878] sm:$0xff]
    %v1488 = vld [vmem:[#allocation13 + $0x880] sm:$0xff]
    %v1489 = vld [vmem:[#allocation13 + $0x888] sm:$0xff]
    %v1490 = vld [vmem:[#allocation13 + $0x890] sm:$0xff]
    %v1491 = vld [vmem:[#allocation13 + $0x898] sm:$0xff]
    %v1492 = vld [vmem:[#allocation13 + $0x8a0] sm:$0xff]
    %v1493 = vld [vmem:[#allocation13 + $0x8a8] sm:$0xff]
    %v1494 = vld [vmem:[#allocation13 + $0x8b0] sm:$0xff]
    %v1495 = vld [vmem:[#allocation13 + $0x8b8] sm:$0xff]
    %v1496 = vld [vmem:[#allocation13 + $0x8c0] sm:$0xff]
    %v1497 = vld [vmem:[#allocation13 + $0x8c8] sm:$0xff]
    %v1498 = vld [vmem:[#allocation13 + $0x8d0] sm:$0xff]
    %v1499 = vld [vmem:[#allocation13 + $0x8d8] sm:$0xff]
    %v1500 = vld [vmem:[#allocation13 + $0x8e0] sm:$0xff]
    %v1501 = vld [vmem:[#allocation13 + $0x8e8] sm:$0xff]
    %v1502 = vld [vmem:[#allocation13 + $0x8f0] sm:$0xff]
    %v1503 = vld [vmem:[#allocation13 + $0x8f8] sm:$0xff]
    %v1504 = vld [vmem:[#allocation13 + $0x900] sm:$0xff]
    %v1505 = vld [vmem:[#allocation13 + $0x908] sm:$0xff]
    %v1506 = vld [vmem:[#allocation13 + $0x910] sm:$0xff]
    %v1507 = vld [vmem:[#allocation13 + $0x918] sm:$0xff]
    %v1508 = vld [vmem:[#allocation13 + $0x920] sm:$0xff]
    %v1509 = vld [vmem:[#allocation13 + $0x928] sm:$0xff]
    %v1510 = vld [vmem:[#allocation13 + $0x930] sm:$0xff]
    %v1511 = vld [vmem:[#allocation13 + $0x938] sm:$0xff]
    %v1512 = vld [vmem:[#allocation13 + $0x940] sm:$0xff]
    %v1513 = vld [vmem:[#allocation13 + $0x948] sm:$0xff]
    %v1514 = vld [vmem:[#allocation13 + $0x950] sm:$0xff]
    %v1515 = vld [vmem:[#allocation13 + $0x958] sm:$0xff]
    %v1516 = vld [vmem:[#allocation13 + $0x960] sm:$0xff]
    %v1517 = vld [vmem:[#allocation13 + $0x968] sm:$0xff]
    %v1518 = vld [vmem:[#allocation13 + $0x970] sm:$0xff]
    %v1519 = vld [vmem:[#allocation13 + $0x978] sm:$0xff]
    %v1520 = vld [vmem:[#allocation13 + $0x980] sm:$0xff]
    %v1521 = vld [vmem:[#allocation13 + $0x988] sm:$0xff]
    %v1522 = vld [vmem:[#allocation13 + $0x990] sm:$0xff]
    %v1523 = vld [vmem:[#allocation13 + $0x998] sm:$0xff]
    %v1524 = vld [vmem:[#allocation13 + $0x9a0] sm:$0xff]
    %v1525 = vld [vmem:[#allocation13 + $0x9a8] sm:$0xff]
    %v1526 = vld [vmem:[#allocation13 + $0x9b0] sm:$0xff]
    %v1527 = vld [vmem:[#allocation13 + $0x9b8] sm:$0xff]
    %v1528 = vld [vmem:[#allocation13 + $0x9c0] sm:$0xff]
    %v1529 = vld [vmem:[#allocation13 + $0x9c8] sm:$0xff]
    %v1530 = vld [vmem:[#allocation13 + $0x9d0] sm:$0xff]
    %v1531 = vld [vmem:[#allocation13 + $0x9d8] sm:$0xff]
    %v1532 = vld [vmem:[#allocation13 + $0x9e0] sm:$0xff]
    %v1533 = vld [vmem:[#allocation13 + $0x9e8] sm:$0xff]
    %v1534 = vld [vmem:[#allocation13 + $0x9f0] sm:$0xff]
    %v1535 = vld [vmem:[#allocation13 + $0x9f8] sm:$0xff]
    %v1536 = vld [vmem:[#allocation13 + $0xa00] sm:$0xff]
    %v1537 = vld [vmem:[#allocation13 + $0xa08] sm:$0xff]
    %v1538 = vld [vmem:[#allocation13 + $0xa10] sm:$0xff]
    %v1539 = vld [vmem:[#allocation13 + $0xa18] sm:$0xff]
    %v1540 = vld [vmem:[#allocation13 + $0xa20] sm:$0xff]
    %v1541 = vld [vmem:[#allocation13 + $0xa28] sm:$0xff]
    %v1542 = vld [vmem:[#allocation13 + $0xa30] sm:$0xff]
    %v1543 = vld [vmem:[#allocation13 + $0xa38] sm:$0xff]
    %v1544 = vld [vmem:[#allocation13 + $0xa40] sm:$0xff]
    %v1545 = vld [vmem:[#allocation13 + $0xa48] sm:$0xff]
    %v1546 = vld [vmem:[#allocation13 + $0xa50] sm:$0xff]
    %v1547 = vld [vmem:[#allocation13 + $0xa58] sm:$0xff]
    %v1548 = vld [vmem:[#allocation13 + $0xa60] sm:$0xff]
    %v1549 = vld [vmem:[#allocation13 + $0xa68] sm:$0xff]
    %v1550 = vld [vmem:[#allocation13 + $0xa70] sm:$0xff]
    %v1551 = vld [vmem:[#allocation13 + $0xa78] sm:$0xff]
    %v1552 = vld [vmem:[#allocation13 + $0xa80] sm:$0xff]
    %v1553 = vld [vmem:[#allocation13 + $0xa88] sm:$0xff]
    %v1554 = vld [vmem:[#allocation13 + $0xa90] sm:$0xff]
    %v1555 = vld [vmem:[#allocation13 + $0xa98] sm:$0xff]
    %v1556 = vld [vmem:[#allocation13 + $0xaa0] sm:$0xff]
    %v1557 = vld [vmem:[#allocation13 + $0xaa8] sm:$0xff]
    %v1558 = vld [vmem:[#allocation13 + $0xab0] sm:$0xff]
    %v1559 = vld [vmem:[#allocation13 + $0xab8] sm:$0xff]
    %v1560 = vld [vmem:[#allocation13 + $0xac0] sm:$0xff]
    %v1561 = vld [vmem:[#allocation13 + $0xac8] sm:$0xff]
    %v1562 = vld [vmem:[#allocation13 + $0xad0] sm:$0xff]
    %v1563 = vld [vmem:[#allocation13 + $0xad8] sm:$0xff]
    %v1564 = vld [vmem:[#allocation13 + $0xae0] sm:$0xff]
    %v1565 = vld [vmem:[#allocation13 + $0xae8] sm:$0xff]
    %v1566 = vld [vmem:[#allocation13 + $0xaf0] sm:$0xff]
    %v1567 = vld [vmem:[#allocation13 + $0xaf8] sm:$0xff]
    %v1568 = vld [vmem:[#allocation13 + $0xb00] sm:$0xff]
    %v1569 = vld [vmem:[#allocation13 + $0xb08] sm:$0xff]
    %v1570 = vld [vmem:[#allocation13 + $0xb10] sm:$0xff]
    %v1571 = vld [vmem:[#allocation13 + $0xb18] sm:$0xff]
    %v1572 = vld [vmem:[#allocation13 + $0xb20] sm:$0xff]
    %v1573 = vld [vmem:[#allocation13 + $0xb28] sm:$0xff]
    %v1574 = vld [vmem:[#allocation13 + $0xb30] sm:$0xff]
    %v1575 = vld [vmem:[#allocation13 + $0xb38] sm:$0xff]
    %v1576 = vld [vmem:[#allocation13 + $0xb40] sm:$0xff]
    %v1577 = vld [vmem:[#allocation13 + $0xb48] sm:$0xff]
    %v1578 = vld [vmem:[#allocation13 + $0xb50] sm:$0xff]
    %v1579 = vld [vmem:[#allocation13 + $0xb58] sm:$0xff]
    %v1580 = vld [vmem:[#allocation13 + $0xb60] sm:$0xff]
    %v1581 = vld [vmem:[#allocation13 + $0xb68] sm:$0xff]
    %v1582 = vld [vmem:[#allocation13 + $0xb70] sm:$0xff]
    %v1583 = vld [vmem:[#allocation13 + $0xb78] sm:$0xff]
    %v1584 = vld [vmem:[#allocation13 + $0xb80] sm:$0xff]
    %v1585 = vld [vmem:[#allocation13 + $0xb88] sm:$0xff]
    %v1586 = vld [vmem:[#allocation13 + $0xb90] sm:$0xff]
    %v1587 = vld [vmem:[#allocation13 + $0xb98] sm:$0xff]
    %v1588 = vld [vmem:[#allocation13 + $0xba0] sm:$0xff]
    %v1589 = vld [vmem:[#allocation13 + $0xba8] sm:$0xff]
    %v1590 = vld [vmem:[#allocation13 + $0xbb0] sm:$0xff]
    %v1591 = vld [vmem:[#allocation13 + $0xbb8] sm:$0xff]
    %v1592 = vld [vmem:[#allocation13 + $0xbc0] sm:$0xff]
    %v1593 = vld [vmem:[#allocation13 + $0xbc8] sm:$0xff]
    %v1594 = vld [vmem:[#allocation13 + $0xbd0] sm:$0xff]
    %v1595 = vld [vmem:[#allocation13 + $0xbd8] sm:$0xff]
    %v1596 = vld [vmem:[#allocation13 + $0xbe0] sm:$0xff]
    %v1597 = vld [vmem:[#allocation13 + $0xbe8] sm:$0xff]
    %v1598 = vld [vmem:[#allocation13 + $0xbf0] sm:$0xff]
    %v1599 = vld [vmem:[#allocation13 + $0xbf8] sm:$0xff]
    %v1600 = vld [vmem:[#allocation13 + $0xc00] sm:$0xff]
    %v1601 = vld [vmem:[#allocation13 + $0xc08] sm:$0xff]
    %v1602 = vld [vmem:[#allocation13 + $0xc10] sm:$0xff]
    %v1603 = vld [vmem:[#allocation13 + $0xc18] sm:$0xff]
    %v1604 = vld [vmem:[#allocation13 + $0xc20] sm:$0xff]
    %v1605 = vld [vmem:[#allocation13 + $0xc28] sm:$0xff]
    %v1606 = vld [vmem:[#allocation13 + $0xc30] sm:$0xff]
    %v1607 = vld [vmem:[#allocation13 + $0xc38] sm:$0xff]
    %v1608 = vld [vmem:[#allocation13 + $0xc40] sm:$0xff]
    %v1609 = vld [vmem:[#allocation13 + $0xc48] sm:$0xff]
    %v1610 = vld [vmem:[#allocation13 + $0xc50] sm:$0xff]
    %v1611 = vld [vmem:[#allocation13 + $0xc58] sm:$0xff]
    %v1612 = vld [vmem:[#allocation13 + $0xc60] sm:$0xff]
    %v1613 = vld [vmem:[#allocation13 + $0xc68] sm:$0xff]
    %v1614 = vld [vmem:[#allocation13 + $0xc70] sm:$0xff]
    %v1615 = vld [vmem:[#allocation13 + $0xc78] sm:$0xff]
    %v1616 = vld [vmem:[#allocation13 + $0xc80] sm:$0xff]
    %v1617 = vld [vmem:[#allocation13 + $0xc88] sm:$0xff]
    %v1618 = vld [vmem:[#allocation13 + $0xc90] sm:$0xff]
    %v1619 = vld [vmem:[#allocation13 + $0xc98] sm:$0xff]
    %v1620 = vld [vmem:[#allocation13 + $0xca0] sm:$0xff]
    %v1621 = vld [vmem:[#allocation13 + $0xca8] sm:$0xff]
    %v1622 = vld [vmem:[#allocation13 + $0xcb0] sm:$0xff]
    %v1623 = vld [vmem:[#allocation13 + $0xcb8] sm:$0xff]
    %v1624 = vld [vmem:[#allocation13 + $0xcc0] sm:$0xff]
    %v1625 = vld [vmem:[#allocation13 + $0xcc8] sm:$0xff]
    %v1626 = vld [vmem:[#allocation13 + $0xcd0] sm:$0xff]
    %v1627 = vld [vmem:[#allocation13 + $0xcd8] sm:$0xff]
    %v1628 = vld [vmem:[#allocation13 + $0xce0] sm:$0xff]
    %v1629 = vld [vmem:[#allocation13 + $0xce8] sm:$0xff]
    %v1630 = vld [vmem:[#allocation13 + $0xcf0] sm:$0xff]
    %v1631 = vld [vmem:[#allocation13 + $0xcf8] sm:$0xff]
    %v1632 = vld [vmem:[#allocation13 + $0xd00] sm:$0xff]
    %v1633 = vld [vmem:[#allocation13 + $0xd08] sm:$0xff]
    %v1634 = vld [vmem:[#allocation13 + $0xd10] sm:$0xff]
    %v1635 = vld [vmem:[#allocation13 + $0xd18] sm:$0xff]
    %v1636 = vld [vmem:[#allocation13 + $0xd20] sm:$0xff]
    %v1637 = vld [vmem:[#allocation13 + $0xd28] sm:$0xff]
    %v1638 = vld [vmem:[#allocation13 + $0xd30] sm:$0xff]
    %v1639 = vld [vmem:[#allocation13 + $0xd38] sm:$0xff]
    %v1640 = vld [vmem:[#allocation13 + $0xd40] sm:$0xff]
    %v1641 = vld [vmem:[#allocation13 + $0xd48] sm:$0xff]
    %v1642 = vld [vmem:[#allocation13 + $0xd50] sm:$0xff]
    %v1643 = vld [vmem:[#allocation13 + $0xd58] sm:$0xff]
    %v1644 = vld [vmem:[#allocation13 + $0xd60] sm:$0xff]
    %v1645 = vld [vmem:[#allocation13 + $0xd68] sm:$0xff]
    %v1646 = vld [vmem:[#allocation13 + $0xd70] sm:$0xff]
    %v1647 = vld [vmem:[#allocation13 + $0xd78] sm:$0xff]
    %v1648 = vld [vmem:[#allocation13 + $0xd80] sm:$0xff]
    %v1649 = vld [vmem:[#allocation13 + $0xd88] sm:$0xff]
    %v1650 = vld [vmem:[#allocation13 + $0xd90] sm:$0xff]
    %v1651 = vld [vmem:[#allocation13 + $0xd98] sm:$0xff]
    %v1652 = vld [vmem:[#allocation13 + $0xda0] sm:$0xff]
    %v1653 = vld [vmem:[#allocation13 + $0xda8] sm:$0xff]
    %v1654 = vld [vmem:[#allocation13 + $0xdb0] sm:$0xff]
    %v1655 = vld [vmem:[#allocation13 + $0xdb8] sm:$0xff]
    %v1656 = vld [vmem:[#allocation13 + $0xdc0] sm:$0xff]
    %v1657 = vld [vmem:[#allocation13 + $0xdc8] sm:$0xff]
    %v1658 = vld [vmem:[#allocation13 + $0xdd0] sm:$0xff]
    %v1659 = vld [vmem:[#allocation13 + $0xdd8] sm:$0xff]
    %v1660 = vld [vmem:[#allocation13 + $0xde0] sm:$0xff]
    %v1661 = vld [vmem:[#allocation13 + $0xde8] sm:$0xff]
    %v1662 = vld [vmem:[#allocation13 + $0xdf0] sm:$0xff]
    %v1663 = vld [vmem:[#allocation13 + $0xdf8] sm:$0xff]
    %v1664 = vld [vmem:[#allocation13 + $0xe00] sm:$0xff]
    %v1665 = vld [vmem:[#allocation13 + $0xe08] sm:$0xff]
    %v1666 = vld [vmem:[#allocation13 + $0xe10] sm:$0xff]
    %v1667 = vld [vmem:[#allocation13 + $0xe18] sm:$0xff]
    %v1668 = vld [vmem:[#allocation13 + $0xe20] sm:$0xff]
    %v1669 = vld [vmem:[#allocation13 + $0xe28] sm:$0xff]
    %v1670 = vld [vmem:[#allocation13 + $0xe30] sm:$0xff]
    %v1671 = vld [vmem:[#allocation13 + $0xe38] sm:$0xff]
    %v1672 = vld [vmem:[#allocation13 + $0xe40] sm:$0xff]
    %v1673 = vld [vmem:[#allocation13 + $0xe48] sm:$0xff]
    %v1674 = vld [vmem:[#allocation13 + $0xe50] sm:$0xff]
    %v1675 = vld [vmem:[#allocation13 + $0xe58] sm:$0xff]
    %v1676 = vld [vmem:[#allocation13 + $0xe60] sm:$0xff]
    %v1677 = vld [vmem:[#allocation13 + $0xe68] sm:$0xff]
    %v1678 = vld [vmem:[#allocation13 + $0xe70] sm:$0xff]
    %v1679 = vld [vmem:[#allocation13 + $0xe78] sm:$0xff]
    %v1680 = vld [vmem:[#allocation13 + $0xe80] sm:$0xff]
    %v1681 = vld [vmem:[#allocation13 + $0xe88] sm:$0xff]
    %v1682 = vld [vmem:[#allocation13 + $0xe90] sm:$0xff]
    %v1683 = vld [vmem:[#allocation13 + $0xe98] sm:$0xff]
    %v1684 = vld [vmem:[#allocation13 + $0xea0] sm:$0xff]
    %v1685 = vld [vmem:[#allocation13 + $0xea8] sm:$0xff]
    %v1686 = vld [vmem:[#allocation13 + $0xeb0] sm:$0xff]
    %v1687 = vld [vmem:[#allocation13 + $0xeb8] sm:$0xff]
    %v1688 = vld [vmem:[#allocation13 + $0xec0] sm:$0xff]
    %v1689 = vld [vmem:[#allocation13 + $0xec8] sm:$0xff]
    %v1690 = vld [vmem:[#allocation13 + $0xed0] sm:$0xff]
    %v1691 = vld [vmem:[#allocation13 + $0xed8] sm:$0xff]
    %v1692 = vld [vmem:[#allocation13 + $0xee0] sm:$0xff]
    %v1693 = vld [vmem:[#allocation13 + $0xee8] sm:$0xff]
    %v1694 = vld [vmem:[#allocation13 + $0xef0] sm:$0xff]
    %v1695 = vld [vmem:[#allocation13 + $0xef8] sm:$0xff]
    %v1696 = vld [vmem:[#allocation13 + $0xf00] sm:$0xff]
    %v1697 = vld [vmem:[#allocation13 + $0xf08] sm:$0xff]
    %v1698 = vld [vmem:[#allocation13 + $0xf10] sm:$0xff]
    %v1699 = vld [vmem:[#allocation13 + $0xf18] sm:$0xff]
    %v1700 = vld [vmem:[#allocation13 + $0xf20] sm:$0xff]
    %v1701 = vld [vmem:[#allocation13 + $0xf28] sm:$0xff]
    %v1702 = vld [vmem:[#allocation13 + $0xf30] sm:$0xff]
    %v1703 = vld [vmem:[#allocation13 + $0xf38] sm:$0xff]
    %v1704 = vld [vmem:[#allocation13 + $0xf40] sm:$0xff]
    %v1705 = vld [vmem:[#allocation13 + $0xf48] sm:$0xff]
    %v1706 = vld [vmem:[#allocation13 + $0xf50] sm:$0xff]
    %v1707 = vld [vmem:[#allocation13 + $0xf58] sm:$0xff]
    %v1708 = vld [vmem:[#allocation13 + $0xf60] sm:$0xff]
    %v1709 = vld [vmem:[#allocation13 + $0xf68] sm:$0xff]
    %v1710 = vld [vmem:[#allocation13 + $0xf70] sm:$0xff]
    %v1711 = vld [vmem:[#allocation13 + $0xf78] sm:$0xff]
    %v1712 = vld [vmem:[#allocation13 + $0xf80] sm:$0xff]
    %v1713 = vld [vmem:[#allocation13 + $0xf88] sm:$0xff]
    %v1714 = vld [vmem:[#allocation13 + $0xf90] sm:$0xff]
    %v1715 = vld [vmem:[#allocation13 + $0xf98] sm:$0xff]
    %v1716 = vld [vmem:[#allocation13 + $0xfa0] sm:$0xff]
    %v1717 = vld [vmem:[#allocation13 + $0xfa8] sm:$0xff]
    %v1718 = vld [vmem:[#allocation13 + $0xfb0] sm:$0xff]
    %v1719 = vld [vmem:[#allocation13 + $0xfb8] sm:$0xff]
    %v1720 = vld [vmem:[#allocation13 + $0xfc0] sm:$0xff]
    %v1721 = vld [vmem:[#allocation13 + $0xfc8] sm:$0xff]
    %v1722 = vld [vmem:[#allocation13 + $0xfd0] sm:$0xff]
    %v1723 = vld [vmem:[#allocation13 + $0xfd8] sm:$0xff]
    %v1724 = vld [vmem:[#allocation13 + $0xfe0] sm:$0xff]
    %v1725 = vld [vmem:[#allocation13 + $0xfe8] sm:$0xff]
    %v1726 = vld [vmem:[#allocation13 + $0xff0] sm:$0xff]
    %v1727 = vld [vmem:[#allocation13 + $0xff8] sm:$0xff]
    %v1728 = vld [vmem:[#allocation14] sm:$0xff]
    %v1730 = vlaneseq
    %v1731 = vshrl.u32 %v1730, 7
    %v1732 = vsub.s32 0, %v1731
    %v1733 = vrot.slane %v1728, %v1732
    %v1734 = vlaneseq
    %v1735 = vshrl.u32 %v1734, 7
    %v1736 = vsub.s32 1, %v1735
    %v1737 = vrot.slane %v1728, %v1736
    %v1738 = vlaneseq
    %v1739 = vshrl.u32 %v1738, 7
    %v1740 = vsub.s32 2, %v1739
    %v1741 = vrot.slane %v1728, %v1740
    %v1742 = vlaneseq
    %v1743 = vshrl.u32 %v1742, 7
    %v1744 = vsub.s32 3, %v1743
    %v1745 = vrot.slane %v1728, %v1744
    %v1746 = vlaneseq
    %v1747 = vshrl.u32 %v1746, 7
    %v1748 = vsub.s32 4, %v1747
    %v1749 = vrot.slane %v1728, %v1748
    %v1750 = vlaneseq
    %v1751 = vshrl.u32 %v1750, 7
    %v1752 = vsub.s32 5, %v1751
    %v1753 = vrot.slane %v1728, %v1752
    %v1754 = vlaneseq
    %v1755 = vshrl.u32 %v1754, 7
    %v1756 = vsub.s32 6, %v1755
    %v1757 = vrot.slane %v1728, %v1756
    %v1758 = vlaneseq
    %v1759 = vshrl.u32 %v1758, 7
    %v1760 = vsub.s32 7, %v1759
    %v1761 = vrot.slane %v1728, %v1760
    %1770 = vmatprep.subr.mxu0 %v1217
    %1771 = vmatpush1.msra.mxu0 %v1216
    %1772 = vmatprep.subr.mxu0 %v1225
    %1773 = vmatpush1.msra.mxu0 %v1224
    %1774 = vmatprep.subr.mxu0 %v1233
    %1775 = vmatpush1.msra.mxu0 %v1232
    %1776 = vmatprep.subr.mxu0 %v1241
    %1777 = vmatpush1.msra.mxu0 %v1240
    %1778 = vmatprep.subr.mxu0 %v1249
    %1779 = vmatpush1.msra.mxu0 %v1248
    %1780 = vmatprep.subr.mxu0 %v1257
    %1781 = vmatpush1.msra.mxu0 %v1256
    %1782 = vmatprep.subr.mxu0 %v1265
    %1783 = vmatpush1.msra.mxu0 %v1264
    %1784 = vmatprep.subr.mxu0 %v1273
    %1785 = vmatpush1.msra.mxu0 %v1272
    %1786 = vmatprep.subr.mxu0 %v1281
    %1787 = vmatpush1.msra.mxu0 %v1280
    %1788 = vmatprep.subr.mxu0 %v1289
    %1789 = vmatpush1.msra.mxu0 %v1288
    %1790 = vmatprep.subr.mxu0 %v1297
    %1791 = vmatpush1.msra.mxu0 %v1296
    %1792 = vmatprep.subr.mxu0 %v1305
    %1793 = vmatpush1.msra.mxu0 %v1304
    %1794 = vmatprep.subr.mxu0 %v1313
    %1795 = vmatpush1.msra.mxu0 %v1312
    %1796 = vmatprep.subr.mxu0 %v1321
    %1797 = vmatpush1.msra.mxu0 %v1320
    %1798 = vmatprep.subr.mxu0 %v1329
    %1799 = vmatpush1.msra.mxu0 %v1328
    %1800 = vmatprep.subr.mxu0 %v1337
    %1801 = vmatpush1.msra.mxu0 %v1336
    %1802 = vmatprep.subr.mxu0 %v1345
    %1803 = vmatpush1.msra.mxu0 %v1344
    %1804 = vmatprep.subr.mxu0 %v1353
    %1805 = vmatpush1.msra.mxu0 %v1352
    %1806 = vmatprep.subr.mxu0 %v1361
    %1807 = vmatpush1.msra.mxu0 %v1360
    %1808 = vmatprep.subr.mxu0 %v1369
    %1809 = vmatpush1.msra.mxu0 %v1368
    %1810 = vmatprep.subr.mxu0 %v1377
    %1811 = vmatpush1.msra.mxu0 %v1376
    %1812 = vmatprep.subr.mxu0 %v1385
    %1813 = vmatpush1.msra.mxu0 %v1384
    %1814 = vmatprep.subr.mxu0 %v1393
    %1815 = vmatpush1.msra.mxu0 %v1392
    %1816 = vmatprep.subr.mxu0 %v1401
    %1817 = vmatpush1.msra.mxu0 %v1400
    %1818 = vmatprep.subr.mxu0 %v1409
    %1819 = vmatpush1.msra.mxu0 %v1408
    %1820 = vmatprep.subr.mxu0 %v1417
    %1821 = vmatpush1.msra.mxu0 %v1416
    %1822 = vmatprep.subr.mxu0 %v1425
    %1823 = vmatpush1.msra.mxu0 %v1424
    %1824 = vmatprep.subr.mxu0 %v1433
    %1825 = vmatpush1.msra.mxu0 %v1432
    %1826 = vmatprep.subr.mxu0 %v1441
    %1827 = vmatpush1.msra.mxu0 %v1440
    %1828 = vmatprep.subr.mxu0 %v1449
    %1829 = vmatpush1.msra.mxu0 %v1448
    %1830 = vmatprep.subr.mxu0 %v1457
    %1831 = vmatpush1.msra.mxu0 %v1456
    %1832 = vmatprep.subr.mxu0 %v1465
    %1833 = vmatpush1.msra.mxu0 %v1464
    %1834 = vmatprep.mubr.f32.mxu0 %v1213
    %1835 = vmatmul.mubr.f32.gmra.mrb[0].mxu0 %v1212
    %v1836 = vpop.f32.mrb[0].mxu0
    %v1837 = vadd.f32 %v1733, %v1836
    %v1838 = vpop.f32.mrb[0].mxu0
    %v1839 = vadd.f32 %v1737, %v1838
    %1840 = vdwg.mxu0
    %1841 = vmatprep.subr.mxu0 %v1473
    %1842 = vmatpush1.msra.mxu0 %v1472
    %1843 = vmatprep.subr.mxu0 %v1481
    %1844 = vmatpush1.msra.mxu0 %v1480
    %1845 = vmatprep.subr.mxu0 %v1489
    %1846 = vmatpush1.msra.mxu0 %v1488
    %1847 = vmatprep.subr.mxu0 %v1497
    %1848 = vmatpush1.msra.mxu0 %v1496
    %1849 = vmatprep.subr.mxu0 %v1505
    %1850 = vmatpush1.msra.mxu0 %v1504
    %1851 = vmatprep.subr.mxu0 %v1513
    %1852 = vmatpush1.msra.mxu0 %v1512
    %1853 = vmatprep.subr.mxu0 %v1521
    %1854 = vmatpush1.msra.mxu0 %v1520
    %1855 = vmatprep.subr.mxu0 %v1529
    %1856 = vmatpush1.msra.mxu0 %v1528
    %1857 = vmatprep.subr.mxu0 %v1537
    %1858 = vmatpush1.msra.mxu0 %v1536
    %1859 = vmatprep.subr.mxu0 %v1545
    %1860 = vmatpush1.msra.mxu0 %v1544
    %1861 = vmatprep.subr.mxu0 %v1553
    %1862 = vmatpush1.msra.mxu0 %v1552
    %1863 = vmatprep.subr.mxu0 %v1561
    %1864 = vmatpush1.msra.mxu0 %v1560
    %1865 = vmatprep.subr.mxu0 %v1569
    %1866 = vmatpush1.msra.mxu0 %v1568
    %1867 = vmatprep.subr.mxu0 %v1577
    %1868 = vmatpush1.msra.mxu0 %v1576
    %1869 = vmatprep.subr.mxu0 %v1585
    %1870 = vmatpush1.msra.mxu0 %v1584
    %1871 = vmatprep.subr.mxu0 %v1593
    %1872 = vmatpush1.msra.mxu0 %v1592
    %1873 = vmatprep.subr.mxu0 %v1601
    %1874 = vmatpush1.msra.mxu0 %v1600
    %1875 = vmatprep.subr.mxu0 %v1609
    %1876 = vmatpush1.msra.mxu0 %v1608
    %1877 = vmatprep.subr.mxu0 %v1617
    %1878 = vmatpush1.msra.mxu0 %v1616
    %1879 = vmatprep.subr.mxu0 %v1625
    %1880 = vmatpush1.msra.mxu0 %v1624
    %1881 = vmatprep.subr.mxu0 %v1633
    %1882 = vmatpush1.msra.mxu0 %v1632
    %1883 = vmatprep.subr.mxu0 %v1641
    %1884 = vmatpush1.msra.mxu0 %v1640
    %1885 = vmatprep.subr.mxu0 %v1649
    %1886 = vmatpush1.msra.mxu0 %v1648
    %1887 = vmatprep.subr.mxu0 %v1657
    %1888 = vmatpush1.msra.mxu0 %v1656
    %1889 = vmatprep.subr.mxu0 %v1665
    %1890 = vmatpush1.msra.mxu0 %v1664
    %1891 = vmatprep.subr.mxu0 %v1673
    %1892 = vmatpush1.msra.mxu0 %v1672
    %1893 = vmatprep.subr.mxu0 %v1681
    %1894 = vmatpush1.msra.mxu0 %v1680
    %1895 = vmatprep.subr.mxu0 %v1689
    %1896 = vmatpush1.msra.mxu0 %v1688
    %1897 = vmatprep.subr.mxu0 %v1697
    %1898 = vmatpush1.msra.mxu0 %v1696
    %1899 = vmatprep.subr.mxu0 %v1705
    %1900 = vmatpush1.msra.mxu0 %v1704
    %1901 = vmatprep.subr.mxu0 %v1713
    %1902 = vmatpush1.msra.mxu0 %v1712
    %1903 = vmatprep.subr.mxu0 %v1721
    %1904 = vmatpush1.msra.mxu0 %v1720
    %1905 = vmatprep.mubr.f32.mxu0 %v1215
    %1906 = vmatmul.mubr.f32.gmra.mrb[0].mxu0 %v1214
    %v1907 = vpop.f32.mrb[0].mxu0
    %v1908 = vadd.f32 %v1837, %v1907
    %v1909 = vpop.f32.mrb[0].mxu0
    %v1910 = vadd.f32 %v1839, %v1909
    %1911 = vdwg.mxu0
    %1912 = vmatprep.subr.mxu0 %v1219
    %1913 = vmatpush1.msra.mxu0 %v1218
    %1914 = vmatprep.subr.mxu0 %v1227
    %1915 = vmatpush1.msra.mxu0 %v1226
    %1916 = vmatprep.subr.mxu0 %v1235
    %1917 = vmatpush1.msra.mxu0 %v1234
    %1918 = vmatprep.subr.mxu0 %v1243
    %1919 = vmatpush1.msra.mxu0 %v1242
    %1920 = vmatprep.subr.mxu0 %v1251
    %1921 = vmatpush1.msra.mxu0 %v1250
    %1922 = vmatprep.subr.mxu0 %v1259
    %1923 = vmatpush1.msra.mxu0 %v1258
    %1924 = vmatprep.subr.mxu0 %v1267
    %1925 = vmatpush1.msra.mxu0 %v1266
    %1926 = vmatprep.subr.mxu0 %v1275
    %1927 = vmatpush1.msra.mxu0 %v1274
    %1928 = vmatprep.subr.mxu0 %v1283
    %1929 = vmatpush1.msra.mxu0 %v1282
    %1930 = vmatprep.subr.mxu0 %v1291
    %1931 = vmatpush1.msra.mxu0 %v1290
    %1932 = vmatprep.subr.mxu0 %v1299
    %1933 = vmatpush1.msra.mxu0 %v1298
    %1934 = vmatprep.subr.mxu0 %v1307
    %1935 = vmatpush1.msra.mxu0 %v1306
    %1936 = vmatprep.subr.mxu0 %v1315
    %1937 = vmatpush1.msra.mxu0 %v1314
    %1938 = vmatprep.subr.mxu0 %v1323
    %1939 = vmatpush1.msra.mxu0 %v1322
    %1940 = vmatprep.subr.mxu0 %v1331
    %1941 = vmatpush1.msra.mxu0 %v1330
    %1942 = vmatprep.subr.mxu0 %v1339
    %1943 = vmatpush1.msra.mxu0 %v1338
    %1944 = vmatprep.subr.mxu0 %v1347
    %1945 = vmatpush1.msra.mxu0 %v1346
    %1946 = vmatprep.subr.mxu0 %v1355
    %1947 = vmatpush1.msra.mxu0 %v1354
    %1948 = vmatprep.subr.mxu0 %v1363
    %1949 = vmatpush1.msra.mxu0 %v1362
    %1950 = vmatprep.subr.mxu0 %v1371
    %1951 = vmatpush1.msra.mxu0 %v1370
    %1952 = vmatprep.subr.mxu0 %v1379
    %1953 = vmatpush1.msra.mxu0 %v1378
    %1954 = vmatprep.subr.mxu0 %v1387
    %1955 = vmatpush1.msra.mxu0 %v1386
    %1956 = vmatprep.subr.mxu0 %v1395
    %1957 = vmatpush1.msra.mxu0 %v1394
    %1958 = vmatprep.subr.mxu0 %v1403
    %1959 = vmatpush1.msra.mxu0 %v1402
    %1960 = vmatprep.subr.mxu0 %v1411
    %1961 = vmatpush1.msra.mxu0 %v1410
    %1962 = vmatprep.subr.mxu0 %v1419
    %1963 = vmatpush1.msra.mxu0 %v1418
    %1964 = vmatprep.subr.mxu0 %v1427
    %1965 = vmatpush1.msra.mxu0 %v1426
    %1966 = vmatprep.subr.mxu0 %v1435
    %1967 = vmatpush1.msra.mxu0 %v1434
    %1968 = vmatprep.subr.mxu0 %v1443
    %1969 = vmatpush1.msra.mxu0 %v1442
    %1970 = vmatprep.subr.mxu0 %v1451
    %1971 = vmatpush1.msra.mxu0 %v1450
    %1972 = vmatprep.subr.mxu0 %v1459
    %1973 = vmatpush1.msra.mxu0 %v1458
    %1974 = vmatprep.subr.mxu0 %v1467
    %1975 = vmatpush1.msra.mxu0 %v1466
    %1976 = vmatprep.mubr.f32.mxu0 %v1213
    %1977 = vmatmul.mubr.f32.gmra.mrb[0].mxu0 %v1212
    %v1978 = vpop.f32.mrb[0].mxu0
    %v1979 = vadd.f32 %v1741, %v1978
    %v1980 = vpop.f32.mrb[0].mxu0
    %v1981 = vadd.f32 %v1745, %v1980
    %1982 = vdwg.mxu0
    %1983 = vmatprep.subr.mxu0 %v1475
    %1984 = vmatpush1.msra.mxu0 %v1474
    %1985 = vmatprep.subr.mxu0 %v1483
    %1986 = vmatpush1.msra.mxu0 %v1482
    %1987 = vmatprep.subr.mxu0 %v1491
    %1988 = vmatpush1.msra.mxu0 %v1490
    %1989 = vmatprep.subr.mxu0 %v1499
    %1990 = vmatpush1.msra.mxu0 %v1498
    %1991 = vmatprep.subr.mxu0 %v1507
    %1992 = vmatpush1.msra.mxu0 %v1506
    %1993 = vmatprep.subr.mxu0 %v1515
    %1994 = vmatpush1.msra.mxu0 %v1514
    %1995 = vmatprep.subr.mxu0 %v1523
    %1996 = vmatpush1.msra.mxu0 %v1522
    %1997 = vmatprep.subr.mxu0 %v1531
    %1998 = vmatpush1.msra.mxu0 %v1530
    %1999 = vmatprep.subr.mxu0 %v1539
    %2000 = vmatpush1.msra.mxu0 %v1538
    %2001 = vmatprep.subr.mxu0 %v1547
    %2002 = vmatpush1.msra.mxu0 %v1546
    %2003 = vmatprep.subr.mxu0 %v1555
    %2004 = vmatpush1.msra.mxu0 %v1554
    %2005 = vmatprep.subr.mxu0 %v1563
    %2006 = vmatpush1.msra.mxu0 %v1562
    %2007 = vmatprep.subr.mxu0 %v1571
    %2008 = vmatpush1.msra.mxu0 %v1570
    %2009 = vmatprep.subr.mxu0 %v1579
    %2010 = vmatpush1.msra.mxu0 %v1578
    %2011 = vmatprep.subr.mxu0 %v1587
    %2012 = vmatpush1.msra.mxu0 %v1586
    %2013 = vmatprep.subr.mxu0 %v1595
    %2014 = vmatpush1.msra.mxu0 %v1594
    %2015 = vmatprep.subr.mxu0 %v1603
    %2016 = vmatpush1.msra.mxu0 %v1602
    %2017 = vmatprep.subr.mxu0 %v1611
    %2018 = vmatpush1.msra.mxu0 %v1610
    %2019 = vmatprep.subr.mxu0 %v1619
    %2020 = vmatpush1.msra.mxu0 %v1618
    %2021 = vmatprep.subr.mxu0 %v1627
    %2022 = vmatpush1.msra.mxu0 %v1626
    %2023 = vmatprep.subr.mxu0 %v1635
    %2024 = vmatpush1.msra.mxu0 %v1634
    %2025 = vmatprep.subr.mxu0 %v1643
    %2026 = vmatpush1.msra.mxu0 %v1642
    %2027 = vmatprep.subr.mxu0 %v1651
    %2028 = vmatpush1.msra.mxu0 %v1650
    %2029 = vmatprep.subr.mxu0 %v1659
    %2030 = vmatpush1.msra.mxu0 %v1658
    %2031 = vmatprep.subr.mxu0 %v1667
    %2032 = vmatpush1.msra.mxu0 %v1666
    %2033 = vmatprep.subr.mxu0 %v1675
    %2034 = vmatpush1.msra.mxu0 %v1674
    %2035 = vmatprep.subr.mxu0 %v1683
    %2036 = vmatpush1.msra.mxu0 %v1682
    %2037 = vmatprep.subr.mxu0 %v1691
    %2038 = vmatpush1.msra.mxu0 %v1690
    %2039 = vmatprep.subr.mxu0 %v1699
    %2040 = vmatpush1.msra.mxu0 %v1698
    %2041 = vmatprep.subr.mxu0 %v1707
    %2042 = vmatpush1.msra.mxu0 %v1706
    %2043 = vmatprep.subr.mxu0 %v1715
    %2044 = vmatpush1.msra.mxu0 %v1714
    %2045 = vmatprep.subr.mxu0 %v1723
    %2046 = vmatpush1.msra.mxu0 %v1722
    %2047 = vmatprep.mubr.f32.mxu0 %v1215
    %2048 = vmatmul.mubr.f32.gmra.mrb[0].mxu0 %v1214
    %v2049 = vpop.f32.mrb[0].mxu0
    %v2050 = vadd.f32 %v1979, %v2049
    %v2051 = vpop.f32.mrb[0].mxu0
    %v2052 = vadd.f32 %v1981, %v2051
    %2053 = vdwg.mxu0
    %2054 = vmatprep.subr.mxu0 %v1221
    %2055 = vmatpush1.msra.mxu0 %v1220
    %2056 = vmatprep.subr.mxu0 %v1229
    %2057 = vmatpush1.msra.mxu0 %v1228
    %2058 = vmatprep.subr.mxu0 %v1237
    %2059 = vmatpush1.msra.mxu0 %v1236
    %2060 = vmatprep.subr.mxu0 %v1245
    %2061 = vmatpush1.msra.mxu0 %v1244
    %2062 = vmatprep.subr.mxu0 %v1253
    %2063 = vmatpush1.msra.mxu0 %v1252
    %2064 = vmatprep.subr.mxu0 %v1261
    %2065 = vmatpush1.msra.mxu0 %v1260
    %2066 = vmatprep.subr.mxu0 %v1269
    %2067 = vmatpush1.msra.mxu0 %v1268
    %2068 = vmatprep.subr.mxu0 %v1277
    %2069 = vmatpush1.msra.mxu0 %v1276
    %2070 = vmatprep.subr.mxu0 %v1285
    %2071 = vmatpush1.msra.mxu0 %v1284
    %2072 = vmatprep.subr.mxu0 %v1293
    %2073 = vmatpush1.msra.mxu0 %v1292
    %2074 = vmatprep.subr.mxu0 %v1301
    %2075 = vmatpush1.msra.mxu0 %v1300
    %2076 = vmatprep.subr.mxu0 %v1309
    %2077 = vmatpush1.msra.mxu0 %v1308
    %2078 = vmatprep.subr.mxu0 %v1317
    %2079 = vmatpush1.msra.mxu0 %v1316
    %2080 = vmatprep.subr.mxu0 %v1325
    %2081 = vmatpush1.msra.mxu0 %v1324
    %2082 = vmatprep.subr.mxu0 %v1333
    %2083 = vmatpush1.msra.mxu0 %v1332
    %2084 = vmatprep.subr.mxu0 %v1341
    %2085 = vmatpush1.msra.mxu0 %v1340
    %2086 = vmatprep.subr.mxu0 %v1349
    %2087 = vmatpush1.msra.mxu0 %v1348
    %2088 = vmatprep.subr.mxu0 %v1357
    %2089 = vmatpush1.msra.mxu0 %v1356
    %2090 = vmatprep.subr.mxu0 %v1365
    %2091 = vmatpush1.msra.mxu0 %v1364
    %2092 = vmatprep.subr.mxu0 %v1373
    %2093 = vmatpush1.msra.mxu0 %v1372
    %2094 = vmatprep.subr.mxu0 %v1381
    %2095 = vmatpush1.msra.mxu0 %v1380
    %2096 = vmatprep.subr.mxu0 %v1389
    %2097 = vmatpush1.msra.mxu0 %v1388
    %2098 = vmatprep.subr.mxu0 %v1397
    %2099 = vmatpush1.msra.mxu0 %v1396
    %2100 = vmatprep.subr.mxu0 %v1405
    %2101 = vmatpush1.msra.mxu0 %v1404
    %2102 = vmatprep.subr.mxu0 %v1413
    %2103 = vmatpush1.msra.mxu0 %v1412
    %2104 = vmatprep.subr.mxu0 %v1421
    %2105 = vmatpush1.msra.mxu0 %v1420
    %2106 = vmatprep.subr.mxu0 %v1429
    %2107 = vmatpush1.msra.mxu0 %v1428
    %2108 = vmatprep.subr.mxu0 %v1437
    %2109 = vmatpush1.msra.mxu0 %v1436
    %2110 = vmatprep.subr.mxu0 %v1445
    %2111 = vmatpush1.msra.mxu0 %v1444
    %2112 = vmatprep.subr.mxu0 %v1453
    %2113 = vmatpush1.msra.mxu0 %v1452
    %2114 = vmatprep.subr.mxu0 %v1461
    %2115 = vmatpush1.msra.mxu0 %v1460
    %2116 = vmatprep.subr.mxu0 %v1469
    %2117 = vmatpush1.msra.mxu0 %v1468
    %2118 = vmatprep.mubr.f32.mxu0 %v1213
    %2119 = vmatmul.mubr.f32.gmra.mrb[0].mxu0 %v1212
    %v2120 = vpop.f32.mrb[0].mxu0
    %v2121 = vadd.f32 %v1749, %v2120
    %v2122 = vpop.f32.mrb[0].mxu0
    %v2123 = vadd.f32 %v1753, %v2122
    %2124 = vdwg.mxu0
    %2125 = vmatprep.subr.mxu0 %v1477
    %2126 = vmatpush1.msra.mxu0 %v1476
    %2127 = vmatprep.subr.mxu0 %v1485
    %2128 = vmatpush1.msra.mxu0 %v1484
    %2129 = vmatprep.subr.mxu0 %v1493
    %2130 = vmatpush1.msra.mxu0 %v1492
    %2131 = vmatprep.subr.mxu0 %v1501
    %2132 = vmatpush1.msra.mxu0 %v1500
    %2133 = vmatprep.subr.mxu0 %v1509
    %2134 = vmatpush1.msra.mxu0 %v1508
    %2135 = vmatprep.subr.mxu0 %v1517
    %2136 = vmatpush1.msra.mxu0 %v1516
    %2137 = vmatprep.subr.mxu0 %v1525
    %2138 = vmatpush1.msra.mxu0 %v1524
    %2139 = vmatprep.subr.mxu0 %v1533
    %2140 = vmatpush1.msra.mxu0 %v1532
    %2141 = vmatprep.subr.mxu0 %v1541
    %2142 = vmatpush1.msra.mxu0 %v1540
    %2143 = vmatprep.subr.mxu0 %v1549
    %2144 = vmatpush1.msra.mxu0 %v1548
    %2145 = vmatprep.subr.mxu0 %v1557
    %2146 = vmatpush1.msra.mxu0 %v1556
    %2147 = vmatprep.subr.mxu0 %v1565
    %2148 = vmatpush1.msra.mxu0 %v1564
    %2149 = vmatprep.subr.mxu0 %v1573
    %2150 = vmatpush1.msra.mxu0 %v1572
    %2151 = vmatprep.subr.mxu0 %v1581
    %2152 = vmatpush1.msra.mxu0 %v1580
    %2153 = vmatprep.subr.mxu0 %v1589
    %2154 = vmatpush1.msra.mxu0 %v1588
    %2155 = vmatprep.subr.mxu0 %v1597
    %2156 = vmatpush1.msra.mxu0 %v1596
    %2157 = vmatprep.subr.mxu0 %v1605
    %2158 = vmatpush1.msra.mxu0 %v1604
    %2159 = vmatprep.subr.mxu0 %v1613
    %2160 = vmatpush1.msra.mxu0 %v1612
    %2161 = vmatprep.subr.mxu0 %v1621
    %2162 = vmatpush1.msra.mxu0 %v1620
    %2163 = vmatprep.subr.mxu0 %v1629
    %2164 = vmatpush1.msra.mxu0 %v1628
    %2165 = vmatprep.subr.mxu0 %v1637
    %2166 = vmatpush1.msra.mxu0 %v1636
    %2167 = vmatprep.subr.mxu0 %v1645
    %2168 = vmatpush1.msra.mxu0 %v1644
    %2169 = vmatprep.subr.mxu0 %v1653
    %2170 = vmatpush1.msra.mxu0 %v1652
    %2171 = vmatprep.subr.mxu0 %v1661
    %2172 = vmatpush1.msra.mxu0 %v1660
    %2173 = vmatprep.subr.mxu0 %v1669
    %2174 = vmatpush1.msra.mxu0 %v1668
    %2175 = vmatprep.subr.mxu0 %v1677
    %2176 = vmatpush1.msra.mxu0 %v1676
    %2177 = vmatprep.subr.mxu0 %v1685
    %2178 = vmatpush1.msra.mxu0 %v1684
    %2179 = vmatprep.subr.mxu0 %v1693
    %2180 = vmatpush1.msra.mxu0 %v1692
    %2181 = vmatprep.subr.mxu0 %v1701
    %2182 = vmatpush1.msra.mxu0 %v1700
    %2183 = vmatprep.subr.mxu0 %v1709
    %2184 = vmatpush1.msra.mxu0 %v1708
    %2185 = vmatprep.subr.mxu0 %v1717
    %2186 = vmatpush1.msra.mxu0 %v1716
    %2187 = vmatprep.subr.mxu0 %v1725
    %2188 = vmatpush1.msra.mxu0 %v1724
    %2189 = vmatprep.mubr.f32.mxu0 %v1215
    %2190 = vmatmul.mubr.f32.gmra.mrb[0].mxu0 %v1214
    %v2191 = vpop.f32.mrb[0].mxu0
    %v2192 = vadd.f32 %v2121, %v2191
    %v2193 = vpop.f32.mrb[0].mxu0
    %v2194 = vadd.f32 %v2123, %v2193
    %2195 = vdwg.mxu0
    %2196 = vmatprep.subr.mxu0 %v1223
    %2197 = vmatpush1.msra.mxu0 %v1222
    %2198 = vmatprep.subr.mxu0 %v1231
    %2199 = vmatpush1.msra.mxu0 %v1230
    %2200 = vmatprep.subr.mxu0 %v1239
    %2201 = vmatpush1.msra.mxu0 %v1238
    %2202 = vmatprep.subr.mxu0 %v1247
    %2203 = vmatpush1.msra.mxu0 %v1246
    %2204 = vmatprep.subr.mxu0 %v1255
    %2205 = vmatpush1.msra.mxu0 %v1254
    %2206 = vmatprep.subr.mxu0 %v1263
    %2207 = vmatpush1.msra.mxu0 %v1262
    %2208 = vmatprep.subr.mxu0 %v1271
    %2209 = vmatpush1.msra.mxu0 %v1270
    %2210 = vmatprep.subr.mxu0 %v1279
    %2211 = vmatpush1.msra.mxu0 %v1278
    %2212 = vmatprep.subr.mxu0 %v1287
    %2213 = vmatpush1.msra.mxu0 %v1286
    %2214 = vmatprep.subr.mxu0 %v1295
    %2215 = vmatpush1.msra.mxu0 %v1294
    %2216 = vmatprep.subr.mxu0 %v1303
    %2217 = vmatpush1.msra.mxu0 %v1302
    %2218 = vmatprep.subr.mxu0 %v1311
    %2219 = vmatpush1.msra.mxu0 %v1310
    %2220 = vmatprep.subr.mxu0 %v1319
    %2221 = vmatpush1.msra.mxu0 %v1318
    %2222 = vmatprep.subr.mxu0 %v1327
    %2223 = vmatpush1.msra.mxu0 %v1326
    %2224 = vmatprep.subr.mxu0 %v1335
    %2225 = vmatpush1.msra.mxu0 %v1334
    %2226 = vmatprep.subr.mxu0 %v1343
    %2227 = vmatpush1.msra.mxu0 %v1342
    %2228 = vmatprep.subr.mxu0 %v1351
    %2229 = vmatpush1.msra.mxu0 %v1350
    %2230 = vmatprep.subr.mxu0 %v1359
    %2231 = vmatpush1.msra.mxu0 %v1358
    %2232 = vmatprep.subr.mxu0 %v1367
    %2233 = vmatpush1.msra.mxu0 %v1366
    %2234 = vmatprep.subr.mxu0 %v1375
    %2235 = vmatpush1.msra.mxu0 %v1374
    %2236 = vmatprep.subr.mxu0 %v1383
    %2237 = vmatpush1.msra.mxu0 %v1382
    %2238 = vmatprep.subr.mxu0 %v1391
    %2239 = vmatpush1.msra.mxu0 %v1390
    %2240 = vmatprep.subr.mxu0 %v1399
    %2241 = vmatpush1.msra.mxu0 %v1398
    %2242 = vmatprep.subr.mxu0 %v1407
    %2243 = vmatpush1.msra.mxu0 %v1406
    %2244 = vmatprep.subr.mxu0 %v1415
    %2245 = vmatpush1.msra.mxu0 %v1414
    %2246 = vmatprep.subr.mxu0 %v1423
    %2247 = vmatpush1.msra.mxu0 %v1422
    %2248 = vmatprep.subr.mxu0 %v1431
    %2249 = vmatpush1.msra.mxu0 %v1430
    %2250 = vmatprep.subr.mxu0 %v1439
    %2251 = vmatpush1.msra.mxu0 %v1438
    %2252 = vmatprep.subr.mxu0 %v1447
    %2253 = vmatpush1.msra.mxu0 %v1446
    %2254 = vmatprep.subr.mxu0 %v1455
    %2255 = vmatpush1.msra.mxu0 %v1454
    %2256 = vmatprep.subr.mxu0 %v1463
    %2257 = vmatpush1.msra.mxu0 %v1462
    %2258 = vmatprep.subr.mxu0 %v1471
    %2259 = vmatpush1.msra.mxu0 %v1470
    %2260 = vmatprep.mubr.f32.mxu0 %v1213
    %2261 = vmatmul.mubr.f32.gmra.mrb[0].mxu0 %v1212
    %v2262 = vpop.f32.mrb[0].mxu0
    %v2263 = vadd.f32 %v1757, %v2262
    %v2264 = vpop.f32.mrb[0].mxu0
    %v2265 = vadd.f32 %v1761, %v2264
    %2266 = vdwg.mxu0
    %2267 = vmatprep.subr.mxu0 %v1479
    %2268 = vmatpush1.msra.mxu0 %v1478
    %2269 = vmatprep.subr.mxu0 %v1487
    %2270 = vmatpush1.msra.mxu0 %v1486
    %2271 = vmatprep.subr.mxu0 %v1495
    %2272 = vmatpush1.msra.mxu0 %v1494
    %2273 = vmatprep.subr.mxu0 %v1503
    %2274 = vmatpush1.msra.mxu0 %v1502
    %2275 = vmatprep.subr.mxu0 %v1511
    %2276 = vmatpush1.msra.mxu0 %v1510
    %2277 = vmatprep.subr.mxu0 %v1519
    %2278 = vmatpush1.msra.mxu0 %v1518
    %2279 = vmatprep.subr.mxu0 %v1527
    %2280 = vmatpush1.msra.mxu0 %v1526
    %2281 = vmatprep.subr.mxu0 %v1535
    %2282 = vmatpush1.msra.mxu0 %v1534
    %2283 = vmatprep.subr.mxu0 %v1543
    %2284 = vmatpush1.msra.mxu0 %v1542
    %2285 = vmatprep.subr.mxu0 %v1551
    %2286 = vmatpush1.msra.mxu0 %v1550
    %2287 = vmatprep.subr.mxu0 %v1559
    %2288 = vmatpush1.msra.mxu0 %v1558
    %2289 = vmatprep.subr.mxu0 %v1567
    %2290 = vmatpush1.msra.mxu0 %v1566
    %2291 = vmatprep.subr.mxu0 %v1575
    %2292 = vmatpush1.msra.mxu0 %v1574
    %2293 = vmatprep.subr.mxu0 %v1583
    %2294 = vmatpush1.msra.mxu0 %v1582
    %2295 = vmatprep.subr.mxu0 %v1591
    %2296 = vmatpush1.msra.mxu0 %v1590
    %2297 = vmatprep.subr.mxu0 %v1599
    %2298 = vmatpush1.msra.mxu0 %v1598
    %2299 = vmatprep.subr.mxu0 %v1607
    %2300 = vmatpush1.msra.mxu0 %v1606
    %2301 = vmatprep.subr.mxu0 %v1615
    %2302 = vmatpush1.msra.mxu0 %v1614
    %2303 = vmatprep.subr.mxu0 %v1623
    %2304 = vmatpush1.msra.mxu0 %v1622
    %2305 = vmatprep.subr.mxu0 %v1631
    %2306 = vmatpush1.msra.mxu0 %v1630
    %2307 = vmatprep.subr.mxu0 %v1639
    %2308 = vmatpush1.msra.mxu0 %v1638
    %2309 = vmatprep.subr.mxu0 %v1647
    %2310 = vmatpush1.msra.mxu0 %v1646
    %2311 = vmatprep.subr.mxu0 %v1655
    %2312 = vmatpush1.msra.mxu0 %v1654
    %2313 = vmatprep.subr.mxu0 %v1663
    %2314 = vmatpush1.msra.mxu0 %v1662
    %2315 = vmatprep.subr.mxu0 %v1671
    %2316 = vmatpush1.msra.mxu0 %v1670
    %2317 = vmatprep.subr.mxu0 %v1679
    %2318 = vmatpush1.msra.mxu0 %v1678
    %2319 = vmatprep.subr.mxu0 %v1687
    %2320 = vmatpush1.msra.mxu0 %v1686
    %2321 = vmatprep.subr.mxu0 %v1695
    %2322 = vmatpush1.msra.mxu0 %v1694
    %2323 = vmatprep.subr.mxu0 %v1703
    %2324 = vmatpush1.msra.mxu0 %v1702
    %2325 = vmatprep.subr.mxu0 %v1711
    %2326 = vmatpush1.msra.mxu0 %v1710
    %2327 = vmatprep.subr.mxu0 %v1719
    %2328 = vmatpush1.msra.mxu0 %v1718
    %2329 = vmatprep.subr.mxu0 %v1727
    %2330 = vmatpush1.msra.mxu0 %v1726
    %2331 = vmatprep.mubr.f32.mxu0 %v1215
    %2332 = vmatmul.mubr.f32.gmra.mrb[0].mxu0 %v1214
    %v2333 = vpop.f32.mrb[0].mxu0
    %v2334 = vadd.f32 %v2263, %v2333
    %v2335 = vpop.f32.mrb[0].mxu0
    %v2336 = vadd.f32 %v2265, %v2335
    %2337 = vdwg.mxu0
    %v2338 = vmax.f32 %v1908, 0.0
    %v2339 = vmax.f32 %v1910, 0.0
    %v2340 = vmax.f32 %v2050, 0.0
    %v2341 = vmax.f32 %v2052, 0.0
    %v2342 = vmax.f32 %v2192, 0.0
    %v2343 = vmax.f32 %v2194, 0.0
    %v2344 = vmax.f32 %v2334, 0.0
    %v2345 = vmax.f32 %v2336, 0.0
    %v2346 = vld [vmem:[#allocation16] sm:$0xff]
    %v2347 = vld [vmem:[#allocation16 + $0x8] sm:$0xff]
    %v2348 = vld [vmem:[#allocation16 + $0x10] sm:$0xff]
    %v2349 = vld [vmem:[#allocation16 + $0x18] sm:$0xff]
    %v2350 = vld [vmem:[#allocation16 + $0x20] sm:$0xff]
    %v2351 = vld [vmem:[#allocation16 + $0x28] sm:$0xff]
    %v2352 = vld [vmem:[#allocation16 + $0x30] sm:$0xff]
    %v2353 = vld [vmem:[#allocation16 + $0x38] sm:$0xff]
    %v2354 = vld [vmem:[#allocation16 + $0x40] sm:$0xff]
    %v2355 = vld [vmem:[#allocation16 + $0x48] sm:$0xff]
    %v2356 = vld [vmem:[#allocation16 + $0x50] sm:$0xff]
    %v2357 = vld [vmem:[#allocation16 + $0x58] sm:$0xff]
    %v2358 = vld [vmem:[#allocation16 + $0x60] sm:$0xff]
    %v2359 = vld [vmem:[#allocation16 + $0x68] sm:$0xff]
    %v2360 = vld [vmem:[#allocation16 + $0x70] sm:$0xff]
    %v2361 = vld [vmem:[#allocation16 + $0x78] sm:$0xff]
    %v2362 = vld [vmem:[#allocation16 + $0x80] sm:$0xff]
    %v2363 = vld [vmem:[#allocation16 + $0x88] sm:$0xff]
    %v2364 = vld [vmem:[#allocation16 + $0x90] sm:$0xff]
    %v2365 = vld [vmem:[#allocation16 + $0x98] sm:$0xff]
    %v2366 = vld [vmem:[#allocation16 + $0xa0] sm:$0xff]
    %v2367 = vld [vmem:[#allocation16 + $0xa8] sm:$0xff]
    %v2368 = vld [vmem:[#allocation16 + $0xb0] sm:$0xff]
    %v2369 = vld [vmem:[#allocation16 + $0xb8] sm:$0xff]
    %v2370 = vld [vmem:[#allocation16 + $0xc0] sm:$0xff]
    %v2371 = vld [vmem:[#allocation16 + $0xc8] sm:$0xff]
    %v2372 = vld [vmem:[#allocation16 + $0xd0] sm:$0xff]
    %v2373 = vld [vmem:[#allocation16 + $0xd8] sm:$0xff]
    %v2374 = vld [vmem:[#allocation16 + $0xe0] sm:$0xff]
    %v2375 = vld [vmem:[#allocation16 + $0xe8] sm:$0xff]
    %v2376 = vld [vmem:[#allocation16 + $0xf0] sm:$0xff]
    %v2377 = vld [vmem:[#allocation16 + $0xf8] sm:$0xff]
    %v2378 = vld [vmem:[#allocation16 + $0x100] sm:$0xff]
    %v2379 = vld [vmem:[#allocation16 + $0x108] sm:$0xff]
    %v2380 = vld [vmem:[#allocation16 + $0x110] sm:$0xff]
    %v2381 = vld [vmem:[#allocation16 + $0x118] sm:$0xff]
    %v2382 = vld [vmem:[#allocation16 + $0x120] sm:$0xff]
    %v2383 = vld [vmem:[#allocation16 + $0x128] sm:$0xff]
    %v2384 = vld [vmem:[#allocation16 + $0x130] sm:$0xff]
    %v2385 = vld [vmem:[#allocation16 + $0x138] sm:$0xff]
    %v2386 = vld [vmem:[#allocation16 + $0x140] sm:$0xff]
    %v2387 = vld [vmem:[#allocation16 + $0x148] sm:$0xff]
    %v2388 = vld [vmem:[#allocation16 + $0x150] sm:$0xff]
    %v2389 = vld [vmem:[#allocation16 + $0x158] sm:$0xff]
    %v2390 = vld [vmem:[#allocation16 + $0x160] sm:$0xff]
    %v2391 = vld [vmem:[#allocation16 + $0x168] sm:$0xff]
    %v2392 = vld [vmem:[#allocation16 + $0x170] sm:$0xff]
    %v2393 = vld [vmem:[#allocation16 + $0x178] sm:$0xff]
    %v2394 = vld [vmem:[#allocation16 + $0x180] sm:$0xff]
    %v2395 = vld [vmem:[#allocation16 + $0x188] sm:$0xff]
    %v2396 = vld [vmem:[#allocation16 + $0x190] sm:$0xff]
    %v2397 = vld [vmem:[#allocation16 + $0x198] sm:$0xff]
    %v2398 = vld [vmem:[#allocation16 + $0x1a0] sm:$0xff]
    %v2399 = vld [vmem:[#allocation16 + $0x1a8] sm:$0xff]
    %v2400 = vld [vmem:[#allocation16 + $0x1b0] sm:$0xff]
    %v2401 = vld [vmem:[#allocation16 + $0x1b8] sm:$0xff]
    %v2402 = vld [vmem:[#allocation16 + $0x1c0] sm:$0xff]
    %v2403 = vld [vmem:[#allocation16 + $0x1c8] sm:$0xff]
    %v2404 = vld [vmem:[#allocation16 + $0x1d0] sm:$0xff]
    %v2405 = vld [vmem:[#allocation16 + $0x1d8] sm:$0xff]
    %v2406 = vld [vmem:[#allocation16 + $0x1e0] sm:$0xff]
    %v2407 = vld [vmem:[#allocation16 + $0x1e8] sm:$0xff]
    %v2408 = vld [vmem:[#allocation16 + $0x1f0] sm:$0xff]
    %v2409 = vld [vmem:[#allocation16 + $0x1f8] sm:$0xff]
    %v2410 = vld [vmem:[#allocation16 + $0x200] sm:$0xff]
    %v2411 = vld [vmem:[#allocation16 + $0x208] sm:$0xff]
    %v2412 = vld [vmem:[#allocation16 + $0x210] sm:$0xff]
    %v2413 = vld [vmem:[#allocation16 + $0x218] sm:$0xff]
    %v2414 = vld [vmem:[#allocation16 + $0x220] sm:$0xff]
    %v2415 = vld [vmem:[#allocation16 + $0x228] sm:$0xff]
    %v2416 = vld [vmem:[#allocation16 + $0x230] sm:$0xff]
    %v2417 = vld [vmem:[#allocation16 + $0x238] sm:$0xff]
    %v2418 = vld [vmem:[#allocation16 + $0x240] sm:$0xff]
    %v2419 = vld [vmem:[#allocation16 + $0x248] sm:$0xff]
    %v2420 = vld [vmem:[#allocation16 + $0x250] sm:$0xff]
    %v2421 = vld [vmem:[#allocation16 + $0x258] sm:$0xff]
    %v2422 = vld [vmem:[#allocation16 + $0x260] sm:$0xff]
    %v2423 = vld [vmem:[#allocation16 + $0x268] sm:$0xff]
    %v2424 = vld [vmem:[#allocation16 + $0x270] sm:$0xff]
    %v2425 = vld [vmem:[#allocation16 + $0x278] sm:$0xff]
    %v2426 = vld [vmem:[#allocation16 + $0x280] sm:$0xff]
    %v2427 = vld [vmem:[#allocation16 + $0x288] sm:$0xff]
    %v2428 = vld [vmem:[#allocation16 + $0x290] sm:$0xff]
    %v2429 = vld [vmem:[#allocation16 + $0x298] sm:$0xff]
    %v2430 = vld [vmem:[#allocation16 + $0x2a0] sm:$0xff]
    %v2431 = vld [vmem:[#allocation16 + $0x2a8] sm:$0xff]
    %v2432 = vld [vmem:[#allocation16 + $0x2b0] sm:$0xff]
    %v2433 = vld [vmem:[#allocation16 + $0x2b8] sm:$0xff]
    %v2434 = vld [vmem:[#allocation16 + $0x2c0] sm:$0xff]
    %v2435 = vld [vmem:[#allocation16 + $0x2c8] sm:$0xff]
    %v2436 = vld [vmem:[#allocation16 + $0x2d0] sm:$0xff]
    %v2437 = vld [vmem:[#allocation16 + $0x2d8] sm:$0xff]
    %v2438 = vld [vmem:[#allocation16 + $0x2e0] sm:$0xff]
    %v2439 = vld [vmem:[#allocation16 + $0x2e8] sm:$0xff]
    %v2440 = vld [vmem:[#allocation16 + $0x2f0] sm:$0xff]
    %v2441 = vld [vmem:[#allocation16 + $0x2f8] sm:$0xff]
    %v2442 = vld [vmem:[#allocation16 + $0x300] sm:$0xff]
    %v2443 = vld [vmem:[#allocation16 + $0x308] sm:$0xff]
    %v2444 = vld [vmem:[#allocation16 + $0x310] sm:$0xff]
    %v2445 = vld [vmem:[#allocation16 + $0x318] sm:$0xff]
    %v2446 = vld [vmem:[#allocation16 + $0x320] sm:$0xff]
    %v2447 = vld [vmem:[#allocation16 + $0x328] sm:$0xff]
    %v2448 = vld [vmem:[#allocation16 + $0x330] sm:$0xff]
    %v2449 = vld [vmem:[#allocation16 + $0x338] sm:$0xff]
    %v2450 = vld [vmem:[#allocation16 + $0x340] sm:$0xff]
    %v2451 = vld [vmem:[#allocation16 + $0x348] sm:$0xff]
    %v2452 = vld [vmem:[#allocation16 + $0x350] sm:$0xff]
    %v2453 = vld [vmem:[#allocation16 + $0x358] sm:$0xff]
    %v2454 = vld [vmem:[#allocation16 + $0x360] sm:$0xff]
    %v2455 = vld [vmem:[#allocation16 + $0x368] sm:$0xff]
    %v2456 = vld [vmem:[#allocation16 + $0x370] sm:$0xff]
    %v2457 = vld [vmem:[#allocation16 + $0x378] sm:$0xff]
    %v2458 = vld [vmem:[#allocation16 + $0x380] sm:$0xff]
    %v2459 = vld [vmem:[#allocation16 + $0x388] sm:$0xff]
    %v2460 = vld [vmem:[#allocation16 + $0x390] sm:$0xff]
    %v2461 = vld [vmem:[#allocation16 + $0x398] sm:$0xff]
    %v2462 = vld [vmem:[#allocation16 + $0x3a0] sm:$0xff]
    %v2463 = vld [vmem:[#allocation16 + $0x3a8] sm:$0xff]
    %v2464 = vld [vmem:[#allocation16 + $0x3b0] sm:$0xff]
    %v2465 = vld [vmem:[#allocation16 + $0x3b8] sm:$0xff]
    %v2466 = vld [vmem:[#allocation16 + $0x3c0] sm:$0xff]
    %v2467 = vld [vmem:[#allocation16 + $0x3c8] sm:$0xff]
    %v2468 = vld [vmem:[#allocation16 + $0x3d0] sm:$0xff]
    %v2469 = vld [vmem:[#allocation16 + $0x3d8] sm:$0xff]
    %v2470 = vld [vmem:[#allocation16 + $0x3e0] sm:$0xff]
    %v2471 = vld [vmem:[#allocation16 + $0x3e8] sm:$0xff]
    %v2472 = vld [vmem:[#allocation16 + $0x3f0] sm:$0xff]
    %v2473 = vld [vmem:[#allocation16 + $0x3f8] sm:$0xff]
    %v2474 = vld [vmem:[#allocation17] sm:$0x1]
    %v2476 = vlaneseq
    %v2477 = vshrl.u32 %v2476, 7
    %v2478 = vsub.s32 0, %v2477
    %v2479 = vrot.slane %v2474, %v2478
    %2481 = vmatprep.subr.mxu0 0.0
    %2482 = vmatpush1.msra.mxu0 %v2346
    %2483 = vmatprep.subr.mxu0 0.0
    %2484 = vmatpush1.msra.mxu0 %v2347
    %2485 = vmatprep.subr.mxu0 0.0
    %2486 = vmatpush1.msra.mxu0 %v2348
    %2487 = vmatprep.subr.mxu0 0.0
    %2488 = vmatpush1.msra.mxu0 %v2349
    %2489 = vmatprep.subr.mxu0 0.0
    %2490 = vmatpush1.msra.mxu0 %v2350
    %2491 = vmatprep.subr.mxu0 0.0
    %2492 = vmatpush1.msra.mxu0 %v2351
    %2493 = vmatprep.subr.mxu0 0.0
    %2494 = vmatpush1.msra.mxu0 %v2352
    %2495 = vmatprep.subr.mxu0 0.0
    %2496 = vmatpush1.msra.mxu0 %v2353
    %2497 = vmatprep.subr.mxu0 0.0
    %2498 = vmatpush1.msra.mxu0 %v2354
    %2499 = vmatprep.subr.mxu0 0.0
    %2500 = vmatpush1.msra.mxu0 %v2355
    %2501 = vmatprep.subr.mxu0 0.0
    %2502 = vmatpush1.msra.mxu0 %v2356
    %2503 = vmatprep.subr.mxu0 0.0
    %2504 = vmatpush1.msra.mxu0 %v2357
    %2505 = vmatprep.subr.mxu0 0.0
    %2506 = vmatpush1.msra.mxu0 %v2358
    %2507 = vmatprep.subr.mxu0 0.0
    %2508 = vmatpush1.msra.mxu0 %v2359
    %2509 = vmatprep.subr.mxu0 0.0
    %2510 = vmatpush1.msra.mxu0 %v2360
    %2511 = vmatprep.subr.mxu0 0.0
    %2512 = vmatpush1.msra.mxu0 %v2361
    %2513 = vmatprep.subr.mxu0 0.0
    %2514 = vmatpush1.msra.mxu0 %v2362
    %2515 = vmatprep.subr.mxu0 0.0
    %2516 = vmatpush1.msra.mxu0 %v2363
    %2517 = vmatprep.subr.mxu0 0.0
    %2518 = vmatpush1.msra.mxu0 %v2364
    %2519 = vmatprep.subr.mxu0 0.0
    %2520 = vmatpush1.msra.mxu0 %v2365
    %2521 = vmatprep.subr.mxu0 0.0
    %2522 = vmatpush1.msra.mxu0 %v2366
    %2523 = vmatprep.subr.mxu0 0.0
    %2524 = vmatpush1.msra.mxu0 %v2367
    %2525 = vmatprep.subr.mxu0 0.0
    %2526 = vmatpush1.msra.mxu0 %v2368
    %2527 = vmatprep.subr.mxu0 0.0
    %2528 = vmatpush1.msra.mxu0 %v2369
    %2529 = vmatprep.subr.mxu0 0.0
    %2530 = vmatpush1.msra.mxu0 %v2370
    %2531 = vmatprep.subr.mxu0 0.0
    %2532 = vmatpush1.msra.mxu0 %v2371
    %2533 = vmatprep.subr.mxu0 0.0
    %2534 = vmatpush1.msra.mxu0 %v2372
    %2535 = vmatprep.subr.mxu0 0.0
    %2536 = vmatpush1.msra.mxu0 %v2373
    %2537 = vmatprep.subr.mxu0 0.0
    %2538 = vmatpush1.msra.mxu0 %v2374
    %2539 = vmatprep.subr.mxu0 0.0
    %2540 = vmatpush1.msra.mxu0 %v2375
    %2541 = vmatprep.subr.mxu0 0.0
    %2542 = vmatpush1.msra.mxu0 %v2376
    %2543 = vmatprep.subr.mxu0 0.0
    %2544 = vmatpush1.msra.mxu0 %v2377
    %2545 = vmatprep.mubr.f32.mxu0 %v2339
    %2546 = vmatmul.mubr.f32.gmra.mrb[0].mxu0 %v2338
    %v2547 = vpop.f32.mrb[0].mxu0
    %v2548 = vadd.f32 %v2479, %v2547
    %v2549 = vpop.f32.mrb[0].mxu0
    %2550 = vdwg.mxu0
    %2551 = vmatprep.subr.mxu0 0.0
    %2552 = vmatpush1.msra.mxu0 %v2378
    %2553 = vmatprep.subr.mxu0 0.0
    %2554 = vmatpush1.msra.mxu0 %v2379
    %2555 = vmatprep.subr.mxu0 0.0
    %2556 = vmatpush1.msra.mxu0 %v2380
    %2557 = vmatprep.subr.mxu0 0.0
    %2558 = vmatpush1.msra.mxu0 %v2381
    %2559 = vmatprep.subr.mxu0 0.0
    %2560 = vmatpush1.msra.mxu0 %v2382
    %2561 = vmatprep.subr.mxu0 0.0
    %2562 = vmatpush1.msra.mxu0 %v2383
    %2563 = vmatprep.subr.mxu0 0.0
    %2564 = vmatpush1.msra.mxu0 %v2384
    %2565 = vmatprep.subr.mxu0 0.0
    %2566 = vmatpush1.msra.mxu0 %v2385
    %2567 = vmatprep.subr.mxu0 0.0
    %2568 = vmatpush1.msra.mxu0 %v2386
    %2569 = vmatprep.subr.mxu0 0.0
    %2570 = vmatpush1.msra.mxu0 %v2387
    %2571 = vmatprep.subr.mxu0 0.0
    %2572 = vmatpush1.msra.mxu0 %v2388
    %2573 = vmatprep.subr.mxu0 0.0
    %2574 = vmatpush1.msra.mxu0 %v2389
    %2575 = vmatprep.subr.mxu0 0.0
    %2576 = vmatpush1.msra.mxu0 %v2390
    %2577 = vmatprep.subr.mxu0 0.0
    %2578 = vmatpush1.msra.mxu0 %v2391
    %2579 = vmatprep.subr.mxu0 0.0
    %2580 = vmatpush1.msra.mxu0 %v2392
    %2581 = vmatprep.subr.mxu0 0.0
    %2582 = vmatpush1.msra.mxu0 %v2393
    %2583 = vmatprep.subr.mxu0 0.0
    %2584 = vmatpush1.msra.mxu0 %v2394
    %2585 = vmatprep.subr.mxu0 0.0
    %2586 = vmatpush1.msra.mxu0 %v2395
    %2587 = vmatprep.subr.mxu0 0.0
    %2588 = vmatpush1.msra.mxu0 %v2396
    %2589 = vmatprep.subr.mxu0 0.0
    %2590 = vmatpush1.msra.mxu0 %v2397
    %2591 = vmatprep.subr.mxu0 0.0
    %2592 = vmatpush1.msra.mxu0 %v2398
    %2593 = vmatprep.subr.mxu0 0.0
    %2594 = vmatpush1.msra.mxu0 %v2399
    %2595 = vmatprep.subr.mxu0 0.0
    %2596 = vmatpush1.msra.mxu0 %v2400
    %2597 = vmatprep.subr.mxu0 0.0
    %2598 = vmatpush1.msra.mxu0 %v2401
    %2599 = vmatprep.subr.mxu0 0.0
    %2600 = vmatpush1.msra.mxu0 %v2402
    %2601 = vmatprep.subr.mxu0 0.0
    %2602 = vmatpush1.msra.mxu0 %v2403
    %2603 = vmatprep.subr.mxu0 0.0
    %2604 = vmatpush1.msra.mxu0 %v2404
    %2605 = vmatprep.subr.mxu0 0.0
    %2606 = vmatpush1.msra.mxu0 %v2405
    %2607 = vmatprep.subr.mxu0 0.0
    %2608 = vmatpush1.msra.mxu0 %v2406
    %2609 = vmatprep.subr.mxu0 0.0
    %2610 = vmatpush1.msra.mxu0 %v2407
    %2611 = vmatprep.subr.mxu0 0.0
    %2612 = vmatpush1.msra.mxu0 %v2408
    %2613 = vmatprep.subr.mxu0 0.0
    %2614 = vmatpush1.msra.mxu0 %v2409
    %2615 = vmatprep.mubr.f32.mxu0 %v2341
    %2616 = vmatmul.mubr.f32.gmra.mrb[0].mxu0 %v2340
    %v2617 = vpop.f32.mrb[0].mxu0
    %v2618 = vadd.f32 %v2548, %v2617
    %v2619 = vpop.f32.mrb[0].mxu0
    %2620 = vdwg.mxu0
    %2621 = vmatprep.subr.mxu0 0.0
    %2622 = vmatpush1.msra.mxu0 %v2410
    %2623 = vmatprep.subr.mxu0 0.0
    %2624 = vmatpush1.msra.mxu0 %v2411
    %2625 = vmatprep.subr.mxu0 0.0
    %2626 = vmatpush1.msra.mxu0 %v2412
    %2627 = vmatprep.subr.mxu0 0.0
    %2628 = vmatpush1.msra.mxu0 %v2413
    %2629 = vmatprep.subr.mxu0 0.0
    %2630 = vmatpush1.msra.mxu0 %v2414
    %2631 = vmatprep.subr.mxu0 0.0
    %2632 = vmatpush1.msra.mxu0 %v2415
    %2633 = vmatprep.subr.mxu0 0.0
    %2634 = vmatpush1.msra.mxu0 %v2416
    %2635 = vmatprep.subr.mxu0 0.0
    %2636 = vmatpush1.msra.mxu0 %v2417
    %2637 = vmatprep.subr.mxu0 0.0
    %2638 = vmatpush1.msra.mxu0 %v2418
    %2639 = vmatprep.subr.mxu0 0.0
    %2640 = vmatpush1.msra.mxu0 %v2419
    %2641 = vmatprep.subr.mxu0 0.0
    %2642 = vmatpush1.msra.mxu0 %v2420
    %2643 = vmatprep.subr.mxu0 0.0
    %2644 = vmatpush1.msra.mxu0 %v2421
    %2645 = vmatprep.subr.mxu0 0.0
    %2646 = vmatpush1.msra.mxu0 %v2422
    %2647 = vmatprep.subr.mxu0 0.0
    %2648 = vmatpush1.msra.mxu0 %v2423
    %2649 = vmatprep.subr.mxu0 0.0
    %2650 = vmatpush1.msra.mxu0 %v2424
    %2651 = vmatprep.subr.mxu0 0.0
    %2652 = vmatpush1.msra.mxu0 %v2425
    %2653 = vmatprep.subr.mxu0 0.0
    %2654 = vmatpush1.msra.mxu0 %v2426
    %2655 = vmatprep.subr.mxu0 0.0
    %2656 = vmatpush1.msra.mxu0 %v2427
    %2657 = vmatprep.subr.mxu0 0.0
    %2658 = vmatpush1.msra.mxu0 %v2428
    %2659 = vmatprep.subr.mxu0 0.0
    %2660 = vmatpush1.msra.mxu0 %v2429
    %2661 = vmatprep.subr.mxu0 0.0
    %2662 = vmatpush1.msra.mxu0 %v2430
    %2663 = vmatprep.subr.mxu0 0.0
    %2664 = vmatpush1.msra.mxu0 %v2431
    %2665 = vmatprep.subr.mxu0 0.0
    %2666 = vmatpush1.msra.mxu0 %v2432
    %2667 = vmatprep.subr.mxu0 0.0
    %2668 = vmatpush1.msra.mxu0 %v2433
    %2669 = vmatprep.subr.mxu0 0.0
    %2670 = vmatpush1.msra.mxu0 %v2434
    %2671 = vmatprep.subr.mxu0 0.0
    %2672 = vmatpush1.msra.mxu0 %v2435
    %2673 = vmatprep.subr.mxu0 0.0
    %2674 = vmatpush1.msra.mxu0 %v2436
    %2675 = vmatprep.subr.mxu0 0.0
    %2676 = vmatpush1.msra.mxu0 %v2437
    %2677 = vmatprep.subr.mxu0 0.0
    %2678 = vmatpush1.msra.mxu0 %v2438
    %2679 = vmatprep.subr.mxu0 0.0
    %2680 = vmatpush1.msra.mxu0 %v2439
    %2681 = vmatprep.subr.mxu0 0.0
    %2682 = vmatpush1.msra.mxu0 %v2440
    %2683 = vmatprep.subr.mxu0 0.0
    %2684 = vmatpush1.msra.mxu0 %v2441
    %2685 = vmatprep.mubr.f32.mxu0 %v2343
    %2686 = vmatmul.mubr.f32.gmra.mrb[0].mxu0 %v2342
    %v2687 = vpop.f32.mrb[0].mxu0
    %v2688 = vadd.f32 %v2618, %v2687
    %v2689 = vpop.f32.mrb[0].mxu0
    %2690 = vdwg.mxu0
    %2691 = vmatprep.subr.mxu0 0.0
    %2692 = vmatpush1.msra.mxu0 %v2442
    %2693 = vmatprep.subr.mxu0 0.0
    %2694 = vmatpush1.msra.mxu0 %v2443
    %2695 = vmatprep.subr.mxu0 0.0
    %2696 = vmatpush1.msra.mxu0 %v2444
    %2697 = vmatprep.subr.mxu0 0.0
    %2698 = vmatpush1.msra.mxu0 %v2445
    %2699 = vmatprep.subr.mxu0 0.0
    %2700 = vmatpush1.msra.mxu0 %v2446
    %2701 = vmatprep.subr.mxu0 0.0
    %2702 = vmatpush1.msra.mxu0 %v2447
    %2703 = vmatprep.subr.mxu0 0.0
    %2704 = vmatpush1.msra.mxu0 %v2448
    %2705 = vmatprep.subr.mxu0 0.0
    %2706 = vmatpush1.msra.mxu0 %v2449
    %2707 = vmatprep.subr.mxu0 0.0
    %2708 = vmatpush1.msra.mxu0 %v2450
    %2709 = vmatprep.subr.mxu0 0.0
    %2710 = vmatpush1.msra.mxu0 %v2451
    %2711 = vmatprep.subr.mxu0 0.0
    %2712 = vmatpush1.msra.mxu0 %v2452
    %2713 = vmatprep.subr.mxu0 0.0
    %2714 = vmatpush1.msra.mxu0 %v2453
    %2715 = vmatprep.subr.mxu0 0.0
    %2716 = vmatpush1.msra.mxu0 %v2454
    %2717 = vmatprep.subr.mxu0 0.0
    %2718 = vmatpush1.msra.mxu0 %v2455
    %2719 = vmatprep.subr.mxu0 0.0
    %2720 = vmatpush1.msra.mxu0 %v2456
    %2721 = vmatprep.subr.mxu0 0.0
    %2722 = vmatpush1.msra.mxu0 %v2457
    %2723 = vmatprep.subr.mxu0 0.0
    %2724 = vmatpush1.msra.mxu0 %v2458
    %2725 = vmatprep.subr.mxu0 0.0
    %2726 = vmatpush1.msra.mxu0 %v2459
    %2727 = vmatprep.subr.mxu0 0.0
    %2728 = vmatpush1.msra.mxu0 %v2460
    %2729 = vmatprep.subr.mxu0 0.0
    %2730 = vmatpush1.msra.mxu0 %v2461
    %2731 = vmatprep.subr.mxu0 0.0
    %2732 = vmatpush1.msra.mxu0 %v2462
    %2733 = vmatprep.subr.mxu0 0.0
    %2734 = vmatpush1.msra.mxu0 %v2463
    %2735 = vmatprep.subr.mxu0 0.0
    %2736 = vmatpush1.msra.mxu0 %v2464
    %2737 = vmatprep.subr.mxu0 0.0
    %2738 = vmatpush1.msra.mxu0 %v2465
    %2739 = vmatprep.subr.mxu0 0.0
    %2740 = vmatpush1.msra.mxu0 %v2466
    %2741 = vmatprep.subr.mxu0 0.0
    %2742 = vmatpush1.msra.mxu0 %v2467
    %2743 = vmatprep.subr.mxu0 0.0
    %2744 = vmatpush1.msra.mxu0 %v2468
    %2745 = vmatprep.subr.mxu0 0.0
    %2746 = vmatpush1.msra.mxu0 %v2469
    %2747 = vmatprep.subr.mxu0 0.0
    %2748 = vmatpush1.msra.mxu0 %v2470
    %2749 = vmatprep.subr.mxu0 0.0
    %2750 = vmatpush1.msra.mxu0 %v2471
    %2751 = vmatprep.subr.mxu0 0.0
    %2752 = vmatpush1.msra.mxu0 %v2472
    %2753 = vmatprep.subr.mxu0 0.0
    %2754 = vmatpush1.msra.mxu0 %v2473
    %2755 = vmatprep.mubr.f32.mxu0 %v2345
    %2756 = vmatmul.mubr.f32.gmra.mrb[0].mxu0 %v2344
    %v2757 = vpop.f32.mrb[0].mxu0
    %v2758 = vadd.f32 %v2688, %v2757
    %v2759 = vpop.f32.mrb[0].mxu0
    %2760 = vdwg.mxu0
    %v2761 = vmax.f32 %v2758, 0.0
    %v2762 = vld [vmem:[%s11] sm:$0xff]
    %v2763 = vld [vmem:[%s11 + $0x8] sm:$0xff]
    %v2764 = vld [vmem:[%s11 + $0x10] sm:$0xff]
    %v2765 = vld [vmem:[%s11 + $0x18] sm:$0xff]
    %v2766 = vld [vmem:[%s11 + $0x20] sm:$0xff]
    %v2767 = vld [vmem:[%s11 + $0x28] sm:$0xff]
    %v2768 = vld [vmem:[%s11 + $0x30] sm:$0xff]
    %v2769 = vld [vmem:[%s11 + $0x38] sm:$0xff]
    %v2770 = vld [vmem:[%s11 + $0x40] sm:$0xff]
    %v2771 = vld [vmem:[%s11 + $0x48] sm:$0xff]
    %v2772 = vld [vmem:[%s11 + $0x50] sm:$0xff]
    %v2773 = vld [vmem:[%s11 + $0x58] sm:$0xff]
    %v2774 = vld [vmem:[%s11 + $0x60] sm:$0xff]
    %v2775 = vld [vmem:[%s11 + $0x68] sm:$0xff]
    %v2776 = vld [vmem:[%s11 + $0x70] sm:$0xff]
    %v2777 = vld [vmem:[%s11 + $0x78] sm:$0xff]
    %v2778 = vld [vmem:[#allocation19] sm:$0x1]
    %v2780 = vlaneseq
    %v2781 = vshrl.u32 %v2780, 7
    %v2782 = vsub.s32 0, %v2781
    %v2783 = vrot.slane %v2778, %v2782
    %2785 = vmatprep.subr.mxu0 0.0
    %2786 = vmatpush1.msra.mxu0 %v2762
    %2787 = vmatprep.subr.mxu0 0.0
    %2788 = vmatpush1.msra.mxu0 %v2763
    %2789 = vmatprep.subr.mxu0 0.0
    %2790 = vmatpush1.msra.mxu0 %v2764
    %2791 = vmatprep.subr.mxu0 0.0
    %2792 = vmatpush1.msra.mxu0 %v2765
    %2793 = vmatprep.subr.mxu0 0.0
    %2794 = vmatpush1.msra.mxu0 %v2766
    %2795 = vmatprep.subr.mxu0 0.0
    %2796 = vmatpush1.msra.mxu0 %v2767
    %2797 = vmatprep.subr.mxu0 0.0
    %2798 = vmatpush1.msra.mxu0 %v2768
    %2799 = vmatprep.subr.mxu0 0.0
    %2800 = vmatpush1.msra.mxu0 %v2769
    %2801 = vmatprep.subr.mxu0 0.0
    %2802 = vmatpush1.msra.mxu0 %v2770
    %2803 = vmatprep.subr.mxu0 0.0
    %2804 = vmatpush1.msra.mxu0 %v2771
    %2805 = vmatprep.subr.mxu0 0.0
    %2806 = vmatpush1.msra.mxu0 %v2772
    %2807 = vmatprep.subr.mxu0 0.0
    %2808 = vmatpush1.msra.mxu0 %v2773
    %2809 = vmatprep.subr.mxu0 0.0
    %2810 = vmatpush1.msra.mxu0 %v2774
    %2811 = vmatprep.subr.mxu0 0.0
    %2812 = vmatpush1.msra.mxu0 %v2775
    %2813 = vmatprep.subr.mxu0 0.0
    %2814 = vmatpush1.msra.mxu0 %v2776
    %2815 = vmatprep.subr.mxu0 0.0
    %2816 = vmatpush1.msra.mxu0 %v2777
    %2817 = vmatprep.subr.mxu0 0.0
    %2818 = vmatpush1.msra.mxu0 0.0
    %2819 = vmatprep.subr.mxu0 0.0
    %2820 = vmatpush1.msra.mxu0 0.0
    %2821 = vmatprep.subr.mxu0 0.0
    %2822 = vmatpush1.msra.mxu0 0.0
    %2823 = vmatprep.subr.mxu0 0.0
    %2824 = vmatpush1.msra.mxu0 0.0
    %2825 = vmatprep.subr.mxu0 0.0
    %2826 = vmatpush1.msra.mxu0 0.0
    %2827 = vmatprep.subr.mxu0 0.0
    %2828 = vmatpush1.msra.mxu0 0.0
    %2829 = vmatprep.subr.mxu0 0.0
    %2830 = vmatpush1.msra.mxu0 0.0
    %2831 = vmatprep.subr.mxu0 0.0
    %2832 = vmatpush1.msra.mxu0 0.0
    %2833 = vmatprep.subr.mxu0 0.0
    %2834 = vmatpush1.msra.mxu0 0.0
    %2835 = vmatprep.subr.mxu0 0.0
    %2836 = vmatpush1.msra.mxu0 0.0
    %2837 = vmatprep.subr.mxu0 0.0
    %2838 = vmatpush1.msra.mxu0 0.0
    %2839 = vmatprep.subr.mxu0 0.0
    %2840 = vmatpush1.msra.mxu0 0.0
    %2841 = vmatprep.subr.mxu0 0.0
    %2842 = vmatpush1.msra.mxu0 0.0
    %2843 = vmatprep.subr.mxu0 0.0
    %2844 = vmatpush1.msra.mxu0 0.0
    %2845 = vmatprep.subr.mxu0 0.0
    %2846 = vmatpush1.msra.mxu0 0.0
    %2847 = vmatprep.subr.mxu0 0.0
    %2848 = vmatpush1.msra.mxu0 0.0
    %2849 = vmatprep.mubr.f32.mxu0 0.0
    %2850 = vmatmul.mubr.f32.gmra.mrb[0].mxu0 %v2761
    %v2851 = vpop.f32.mrb[0].mxu0
    %v2852 = vadd.f32 %v2783, %v2851
    %v2853 = vpop.f32.mrb[0].mxu0
    %2854 = vdwg.mxu0
    %v2855 = vmax.f32 %v2852, 0.0
    %v2856 = vld [vmem:[%s13] sm:$0xff]
    %v2857 = vld [vmem:[%s13 + $0x8] sm:$0xff]
    %v2858 = vld [vmem:[%s13 + $0x10] sm:$0xff]
    %v2859 = vld [vmem:[%s13 + $0x18] sm:$0xff]
    %v2860 = vld [vmem:[#allocation2] sm:$0x1]
    %v2862 = vlaneseq
    %v2863 = vshrl.u32 %v2862, 7
    %v2864 = vsub.s32 0, %v2863
    %v2865 = vrot.slane %v2860, %v2864
    %vm2867 = vcmask 261120
    %v2869 = vsel %vm2867, %v2855, 0
    %2871 = vmatprep.subr.mxu0 0.0
    %2872 = vmatpush1.msra.mxu0 %v2856
    %2873 = vmatprep.subr.mxu0 0.0
    %2874 = vmatpush1.msra.mxu0 %v2857
    %2875 = vmatprep.subr.mxu0 0.0
    %2876 = vmatpush1.msra.mxu0 %v2858
    %2877 = vmatprep.subr.mxu0 0.0
    %2878 = vmatpush1.msra.mxu0 %v2859
    %2879 = vmatprep.subr.mxu0 0.0
    %2880 = vmatpush1.msra.mxu0 0.0
    %2881 = vmatprep.subr.mxu0 0.0
    %2882 = vmatpush1.msra.mxu0 0.0
    %2883 = vmatprep.subr.mxu0 0.0
    %2884 = vmatpush1.msra.mxu0 0.0
    %2885 = vmatprep.subr.mxu0 0.0
    %2886 = vmatpush1.msra.mxu0 0.0
    %2887 = vmatprep.subr.mxu0 0.0
    %2888 = vmatpush1.msra.mxu0 0.0
    %2889 = vmatprep.subr.mxu0 0.0
    %2890 = vmatpush1.msra.mxu0 0.0
    %2891 = vmatprep.subr.mxu0 0.0
    %2892 = vmatpush1.msra.mxu0 0.0
    %2893 = vmatprep.subr.mxu0 0.0
    %2894 = vmatpush1.msra.mxu0 0.0
    %2895 = vmatprep.subr.mxu0 0.0
    %2896 = vmatpush1.msra.mxu0 0.0
    %2897 = vmatprep.subr.mxu0 0.0
    %2898 = vmatpush1.msra.mxu0 0.0
    %2899 = vmatprep.subr.mxu0 0.0
    %2900 = vmatpush1.msra.mxu0 0.0
    %2901 = vmatprep.subr.mxu0 0.0
    %2902 = vmatpush1.msra.mxu0 0.0
    %2903 = vmatprep.subr.mxu0 0.0
    %2904 = vmatpush1.msra.mxu0 0.0
    %2905 = vmatprep.subr.mxu0 0.0
    %2906 = vmatpush1.msra.mxu0 0.0
    %2907 = vmatprep.subr.mxu0 0.0
    %2908 = vmatpush1.msra.mxu0 0.0
    %2909 = vmatprep.subr.mxu0 0.0
    %2910 = vmatpush1.msra.mxu0 0.0
    %2911 = vmatprep.subr.mxu0 0.0
    %2912 = vmatpush1.msra.mxu0 0.0
    %2913 = vmatprep.subr.mxu0 0.0
    %2914 = vmatpush1.msra.mxu0 0.0
    %2915 = vmatprep.subr.mxu0 0.0
    %2916 = vmatpush1.msra.mxu0 0.0
    %2917 = vmatprep.subr.mxu0 0.0
    %2918 = vmatpush1.msra.mxu0 0.0
    %2919 = vmatprep.subr.mxu0 0.0
    %2920 = vmatpush1.msra.mxu0 0.0
    %2921 = vmatprep.subr.mxu0 0.0
    %2922 = vmatpush1.msra.mxu0 0.0
    %2923 = vmatprep.subr.mxu0 0.0
    %2924 = vmatpush1.msra.mxu0 0.0
    %2925 = vmatprep.subr.mxu0 0.0
    %2926 = vmatpush1.msra.mxu0 0.0
    %2927 = vmatprep.subr.mxu0 0.0
    %2928 = vmatpush1.msra.mxu0 0.0
    %2929 = vmatprep.subr.mxu0 0.0
    %2930 = vmatpush1.msra.mxu0 0.0
    %2931 = vmatprep.subr.mxu0 0.0
    %2932 = vmatpush1.msra.mxu0 0.0
    %2933 = vmatprep.subr.mxu0 0.0
    %2934 = vmatpush1.msra.mxu0 0.0
    %2935 = vmatprep.mubr.f32.mxu0 0.0
    %2936 = vmatmul.mubr.f32.gmra.mrb[0].mxu0 %v2869
    %v2937 = vpop.f32.mrb[0].mxu0
    %v2938 = vadd.f32 %v2865, %v2937
    %v2939 = vpop.f32.mrb[0].mxu0
    %2940 = vdwg.mxu0
    %vm2941 = vcmask 1024
    %2942 = vst.msk [vmem:[%s15] sm:$0x3] %vm2941, %v2938
    // Predicated region
    $region106: #{forward.1} parent=1 // pred_check
      _
    $region107: #{forward.1} parent=1 // pred_check_branch
      %2944 = sbr.rel (0) target = $region109
    $region108: #{forward.1} parent=1 // pred_region
      _
    $region109: #{forward.1} parent=1 // pred_fallthru
      _
    // Predicated region
    $region110: #{forward.1} parent=1 // pred_check
      _
    $region111: #{forward.1} parent=1 // pred_check_branch
      %2946 = sbr.rel (0) target = $region113
    $region112: #{forward.1} parent=1 // pred_region
      _
    $region113: #{forward.1} parent=1 // pred_fallthru
      _
    %2947 = vsyncpa [#allocation4], 1
    %2948 = vsyncpa [#allocation6], 1
    %2949 = vsyncpa [#allocation9], 1
    %2950 = vsyncpa [#allocation12], 1
    %2951 = vsyncpa [#allocation15], 1
    %2952 = vsyncpa [#allocation18], 1

</llo_original>
